<compile_context>
chip_gen: v7x
topology: tpu7x:2x2x1
jax: 0.10.0
libtpu: 0.0.40
codegen_flags: <defaults>
</compile_context>

<pallas_src>
import functools
import math

import jax
import jax.numpy as jnp
from jax.experimental import pallas as pl
from jax.experimental.pallas import tpu as pltpu


# ----------------------------------------------------------------------------
# Pallas kernels: fused (patch-matrix @ weight + bias + activation)
# ----------------------------------------------------------------------------

def _mm_nt_kernel(x_ref, w_ref, b_ref, o_ref, *, act):
    """o[M,N] = act(x[M,K] @ w[K,N] + b[1,N]); single VMEM block."""
    y = jnp.dot(x_ref[...], w_ref[...], preferred_element_type=jnp.float32)
    y = y + b_ref[...]
    if act == "relu":
        y = jnp.maximum(y, 0.0)
    o_ref[...] = y.astype(o_ref.dtype)


def _mm_tn_kernel(x_ref, wt_ref, b_ref, o_ref, *, act):
    """o[N,M] = act(wt[N,K] @ x[M,K]^T + b[N,1]); large M is lane-dense."""
    y = jnp.dot(wt_ref[...], x_ref[...].T, preferred_element_type=jnp.float32)
    y = y + b_ref[...]
    if act == "relu":
        y = jnp.maximum(y, 0.0)
    o_ref[...] = y.astype(o_ref.dtype)


def matmul_bias_act(x, w, b, act):
    """act(x @ w + b); x:[M,K], w:[K,N], b:[N] -> [M,N], float32.

    Runs as a single VMEM-resident Pallas block (all operands in this model
    are tiny).  When N is very small and M large the product is computed in
    the transposed orientation so the store is lane-dense rather than a
    handful of valid lanes out of 128.
    """
    M, K = x.shape
    K2, N = w.shape
    assert K == K2 and b.shape == (N,)
    vmem = pl.BlockSpec(memory_space=pltpu.MemorySpace.VMEM)
    if N < 32 and M >= 128:
        out_t = pl.pallas_call(
            functools.partial(_mm_tn_kernel, act=act),
            out_shape=jax.ShapeDtypeStruct((N, M), jnp.float32),
            in_specs=[vmem, vmem, vmem],
            out_specs=vmem,
        )(x, w.T, b.reshape(N, 1))
        return out_t.T
    return pl.pallas_call(
        functools.partial(_mm_nt_kernel, act=act),
        out_shape=jax.ShapeDtypeStruct((M, N), jnp.float32),
        in_specs=[vmem, vmem, vmem],
        out_specs=vmem,
    )(x, w, b.reshape(1, N))


# ----------------------------------------------------------------------------
# Layer glue (thin XLA ops around the Pallas matmuls; all tensors < 0.5 MiB)
# ----------------------------------------------------------------------------

def conv2d_nhwc(x, w, b, stride, padding, act):
    """PyTorch-semantics Conv2d.  x:[B,H,W,Cin], w:[Cout,Cin,k,k], b:[Cout]."""
    B, H, W, Cin = x.shape
    Cout, _, k, _ = w.shape
    s, p = stride, padding
    if p:
        x = jnp.pad(x, ((0, 0), (p, p), (p, p), (0, 0)))
    Hp, Wp = H + 2 * p, W + 2 * p
    Ho = (Hp - k) // s + 1
    Wo = (Wp - k) // s + 1
    cols = []
    for di in range(k):
        for dj in range(k):
            cols.append(x[:, di:di + s * (Ho - 1) + 1:s,
                             dj:dj + s * (Wo - 1) + 1:s, :])
    patches = jnp.stack(cols, axis=3)                       # [B,Ho,Wo,k*k,Cin]
    patches = patches.reshape(B * Ho * Wo, k * k * Cin)
    wm = w.transpose(2, 3, 1, 0).reshape(k * k * Cin, Cout)  # rows = (di,dj,ci)
    y = matmul_bias_act(patches, wm, b, act)
    return y.reshape(B, Ho, Wo, Cout)


def maxpool2d_nhwc(x, k, stride, padding=0):
    """PyTorch-semantics MaxPool2d (floor mode, -inf padding)."""
    if padding:
        x = jnp.pad(x, ((0, 0), (padding, padding), (padding, padding), (0, 0)),
                    constant_values=-jnp.inf)
    B, H, W, C = x.shape
    Ho = (H - k) // stride + 1
    Wo = (W - k) // stride + 1
    out = None
    for di in range(k):
        for dj in range(k):
            v = x[:, di:di + stride * (Ho - 1) + 1:stride,
                     dj:dj + stride * (Wo - 1) + 1:stride, :]
            out = v if out is None else jnp.maximum(out, v)
    return out


def conv_transpose2d_nhwc(x, w, b, stride, padding, act):
    """PyTorch-semantics ConvTranspose2d via the s^2-phase (subpixel) form.

    x:[B,H,W,Cin], w:[Cin,Cout,k,k] (PyTorch layout), b:[Cout].
    Y[y,x'] = b + sum_{i,j} X[i,j] * W[:, :, y+p-s*i, x'+p-s*j] over valid taps.
    Grouping outputs by parity (y%s, x'%s) turns this into ONE stride-1 conv
    on the un-dilated input that produces s^2*Cout channels, followed by a
    pixel shuffle — no zero-inserted input, no structurally-zero patch columns.
    """
    B, H, W, Cin = x.shape
    _, Cout, k, _ = w.shape
    s, p = stride, padding
    assert s == 2 and p % 2 == 0, "covers every deconv in autoencoder_6"
    Hout = (H - 1) * s - 2 * p + k
    Wout = (W - 1) * s - 2 * p + k
    Mh, Mw = -(-Hout // s), -(-Wout // s)     # rows/cols computed per phase

    # Input-row offsets needed by any phase: off(a, r) = (r + p - a) // s for
    # kernel taps a == (r + p) mod s.  For k in {3,4}, s=2 this is two
    # consecutive integers shared by all four phases, so a single patch
    # matrix serves them all; phases differ only in which weight taps they use.
    offs = sorted({(r + p - a) // s
                   for r in range(s) for a in range((r + p) % s, k, s)})
    n_off = len(offs)

    pad_lo = max(0, -offs[0])
    pad_hi_h = max(0, (Mh - 1 + offs[-1]) - (H - 1))
    pad_hi_w = max(0, (Mw - 1 + offs[-1]) - (W - 1))
    xp = jnp.pad(x, ((0, 0), (pad_lo, pad_hi_h), (pad_lo, pad_hi_w), (0, 0)))

    cols = []
    for oh in offs:
        for ow in offs:
            cols.append(xp[:, oh + pad_lo: oh + pad_lo + Mh,
                              ow + pad_lo: ow + pad_lo + Mw, :])
    patches = jnp.stack(cols, axis=3).reshape(B * Mh * Mw, n_off * n_off * Cin)

    # Phase-concatenated weight: row = (off_h, off_w, cin), col = (rh, rw, cout)
    wcat = jnp.zeros((n_off, n_off, Cin, s, s, Cout), jnp.float32)
    for rh in range(s):
        for rw in range(s):
            for a in range((rh + p) % s, k, s):
                for c in range((rw + p) % s, k, s):
                    oh = offs.index((rh + p - a) // s)
                    ow = offs.index((rw + p - c) // s)
                    wcat = wcat.at[oh, ow, :, rh, rw, :].set(w[:, :, a, c])
    wcat = wcat.reshape(n_off * n_off * Cin, s * s * Cout)
    bcat = jnp.tile(b, s * s)

    y = matmul_bias_act(patches, wcat, bcat, act)           # [B*Mh*Mw, s*s*Cout]
    y = y.reshape(B, Mh, Mw, s, s, Cout).transpose(0, 1, 3, 2, 4, 5)
    y = y.reshape(B, s * Mh, s * Mw, Cout)
    return y[:, :Hout, :Wout, :]                            # drop over-computed rows/cols


# ----------------------------------------------------------------------------
# Model definition (matches the PyTorch autoencoder_6 module)
# ----------------------------------------------------------------------------

# (name, kind, Cin, Cout, k, stride, padding)
_ENCODER = [
    ("e0", "conv", 1, 64, 3, 3, 1),
    ("e1", "conv", 64, 128, 3, 2, 1),
    ("e2", "conv", 128, 256, 3, 1, 1),
    ("e3", "conv", 256, 256, 3, 2, 1),
]
_DECODER = [
    ("d0", "convT", 256, 128, 3, 2, 0),
    ("d1", "convT", 128, 64, 3, 2, 0),
    ("d2", "convT", 64, 32, 3, 2, 2),
    ("d3", "convT", 32, 1, 4, 2, 0),
]
# MaxPool2d layers following each encoder conv: (k, stride, padding) or None
_POOLS = [(2, 2, 0), (2, 1, 0), (2, 1, 1), None]


def init_params(key):
    params = {}
    layers = _ENCODER + _DECODER
    keys = jax.random.split(key, 2 * len(layers))
    for i, (name, kind, cin, cout, k, _s, _p) in enumerate(layers):
        if kind == "conv":
            wshape = (cout, cin, k, k)       # PyTorch Conv2d weight layout
            fan_in = cin * k * k
        else:
            wshape = (cin, cout, k, k)       # PyTorch ConvTranspose2d layout
            fan_in = cout * k * k
        bound = 1.0 / math.sqrt(fan_in)
        params[name + "_w"] = jax.random.uniform(
            keys[2 * i], wshape, jnp.float32, -bound, bound)
        params[name + "_b"] = jax.random.uniform(
            keys[2 * i + 1], (cout,), jnp.float32, -bound, bound)
    return params


def autoencoder_6_forward(params, x):
    """x: [B, 1, H, W] float32 (NCHW) -> [B, 1, H', W'] float32 (NCHW)."""
    x = x.transpose(0, 2, 3, 1)              # NHWC internally (channels on lanes)
    for (name, _kind, _ci, _co, _k, s, p), pool_cfg in zip(_ENCODER, _POOLS):
        x = conv2d_nhwc(x, params[name + "_w"], params[name + "_b"], s, p, "relu")
        if pool_cfg is not None:
            x = maxpool2d_nhwc(x, *pool_cfg)
    for i, (name, _kind, _ci, _co, _k, s, p) in enumerate(_DECODER):
        act = "relu" if i < len(_DECODER) - 1 else "none"   # no activation after last layer
        x = conv_transpose2d_nhwc(x, params[name + "_w"], params[name + "_b"], s, p, act)
    return x.transpose(0, 3, 1, 2)


# ----------------------------------------------------------------------------
# Pure-XLA reference (lax convolutions, HIGHEST precision) for validation only
# ----------------------------------------------------------------------------

def _reference_forward(params, x):
    hp = jax.lax.Precision.HIGHEST

    def conv(x, w, b, s, p):
        y = jax.lax.conv_general_dilated(
            x, w, window_strides=(s, s), padding=((p, p), (p, p)),
            dimension_numbers=("NCHW", "OIHW", "NCHW"), precision=hp)
        return y + b.reshape(1, -1, 1, 1)

    def convT(x, w, b, s, p):
        k = w.shape[2]
        wf = jnp.flip(w, (2, 3)).transpose(1, 0, 2, 3)      # -> [Cout,Cin,k,k]
        y = jax.lax.conv_general_dilated(
            x, wf, window_strides=(1, 1),
            padding=((k - 1 - p, k - 1 - p),) * 2, lhs_dilation=(s, s),
            dimension_numbers=("NCHW", "OIHW", "NCHW"), precision=hp)
        return y + b.reshape(1, -1, 1, 1)

    def pool(x, k, s, p):
        return jax.lax.reduce_window(
            x, -jnp.inf, jax.lax.max, (1, 1, k, k), (1, 1, s, s),
            ((0, 0), (0, 0), (p, p), (p, p)))

    for (name, _kind, _ci, _co, _k, s, p), pool_cfg in zip(_ENCODER, _POOLS):
        x = jnp.maximum(conv(x, params[name + "_w"], params[name + "_b"], s, p), 0.0)
        if pool_cfg is not None:
            x = pool(x, *pool_cfg)
    for i, (name, _kind, _ci, _co, _k, s, p) in enumerate(_DECODER):
        x = convT(x, params[name + "_w"], params[name + "_b"], s, p)
        if i < len(_DECODER) - 1:
            x = jnp.maximum(x, 0.0)
    return x


if __name__ == "__main__":
    key = jax.random.PRNGKey(0)
    pkey, xkey = jax.random.split(key)
    params = init_params(pkey)

    # Single-channel MNIST-like input implied by Conv2d(1, 64, ...).
    x = jax.random.normal(xkey, (2, 1, 28, 28), jnp.float32)

    fwd = jax.jit(autoencoder_6_forward)
    out = jax.block_until_ready(fwd(params, x))
    assert out.shape == (2, 1, 40, 40), out.shape
    assert bool(jnp.all(jnp.isfinite(out)))

    # Cross-check the Pallas path against the XLA reference implementation.
    ref = jax.block_until_ready(jax.jit(_reference_forward)(params, x))
    rel_err = float(jnp.max(jnp.abs(out - ref)) / (jnp.max(jnp.abs(ref)) + 1e-6))
    assert rel_err < 5e-2, f"mismatch vs XLA reference: rel_err={rel_err}"

    print("KERNEL_OK")
</pallas_src>

<mosaic_0001>
module attributes {stable_mosaic.version = 11 : i64} {
  func.func @_mm_nt_kernel(%arg0: memref<200x9xf32, #tpu.memory_space<vmem>>, %arg1: memref<9x64xf32, #tpu.memory_space<vmem>>, %arg2: memref<1x64xf32, #tpu.memory_space<vmem>>, %arg3: memref<200x64xf32, #tpu.memory_space<vmem>>) attributes {dimension_semantics = [], scalar_prefetch = 0 : i64, scratch_operands = 0 : i64, tpu.core_type = #tpu.core_type<tc>} {
    %c0 = arith.constant 0 : index
    %c0_0 = arith.constant 0 : index
    %0 = vector.load %arg0[%c0, %c0_0] : memref<200x9xf32, #tpu.memory_space<vmem>>, vector<200x9xf32>
    %c0_1 = arith.constant 0 : index
    %c0_2 = arith.constant 0 : index
    %1 = vector.load %arg1[%c0_1, %c0_2] : memref<9x64xf32, #tpu.memory_space<vmem>>, vector<9x64xf32>
    %cst = arith.constant dense<0.000000e+00> : vector<200x64xf32>
    %2 = tpu.matmul %0, %1, %cst {dimension_numbers = #tpu.dot_dimension_numbers<[1], [0], [0], [1], [0, 0, 1, 1], [], []>} : vector<200x9xf32>, vector<9x64xf32>, vector<200x64xf32> -> vector<200x64xf32>
    %c0_3 = arith.constant 0 : index
    %c0_4 = arith.constant 0 : index
    %3 = vector.load %arg2[%c0_3, %c0_4] : memref<1x64xf32, #tpu.memory_space<vmem>>, vector<1x64xf32>
    %4 = vector.broadcast %3 : vector<1x64xf32> to vector<200x64xf32>
    %5 = arith.addf %2, %4 : vector<200x64xf32>
    %cst_5 = arith.constant 0.000000e+00 : f32
    %6 = vector.broadcast %cst_5 : f32 to vector<200x64xf32>
    %7 = arith.maximumf %5, %6 : vector<200x64xf32>
    %c0_6 = arith.constant 0 : index
    %c0_7 = arith.constant 0 : index
    %8 = vector.load %arg3[%c0_6, %c0_7] : memref<200x64xf32, #tpu.memory_space<vmem>>, vector<200x64xf32>
    tpu.vector_store %arg3[%c0_6, %c0_7], %7 {strides = array<i32>} : memref<200x64xf32, #tpu.memory_space<vmem>>, vector<200x64xf32>,
    return
  }
}

module attributes {stable_mosaic.version = 11 : i64} {
  func.func @_mm_nt_kernel(%arg0: memref<18x576xf32, #tpu.memory_space<vmem>>, %arg1: memref<576x128xf32, #tpu.memory_space<vmem>>, %arg2: memref<1x128xf32, #tpu.memory_space<vmem>>, %arg3: memref<18x128xf32, #tpu.memory_space<vmem>>) attributes {dimension_semantics = [], scalar_prefetch = 0 : i64, scratch_operands = 0 : i64, tpu.core_type = #tpu.core_type<tc>} {
    %c0 = arith.constant 0 : index
    %c0_0 = arith.constant 0 : index
    %0 = vector.load %arg0[%c0, %c0_0] : memref<18x576xf32, #tpu.memory_space<vmem>>, vector<18x576xf32>
    %c0_1 = arith.constant 0 : index
    %c0_2 = arith.constant 0 : index
    %1 = vector.load %arg1[%c0_1, %c0_2] : memref<576x128xf32, #tpu.memory_space<vmem>>, vector<576x128xf32>
    %cst = arith.constant dense<0.000000e+00> : vector<18x128xf32>
    %2 = tpu.matmul %0, %1, %cst {dimension_numbers = #tpu.dot_dimension_numbers<[1], [0], [0], [1], [0, 0, 1, 1], [], []>} : vector<18x576xf32>, vector<576x128xf32>, vector<18x128xf32> -> vector<18x128xf32>
    %c0_3 = arith.constant 0 : index
    %c0_4 = arith.constant 0 : index
    %3 = vector.load %arg2[%c0_3, %c0_4] : memref<1x128xf32, #tpu.memory_space<vmem>>, vector<1x128xf32>
    %4 = vector.broadcast %3 : vector<1x128xf32> to vector<18x128xf32>
    %5 = arith.addf %2, %4 : vector<18x128xf32>
    %cst_5 = arith.constant 0.000000e+00 : f32
    %6 = vector.broadcast %cst_5 : f32 to vector<18x128xf32>
    %7 = arith.maximumf %5, %6 : vector<18x128xf32>
    %c0_6 = arith.constant 0 : index
    %c0_7 = arith.constant 0 : index
    %8 = vector.load %arg3[%c0_6, %c0_7] : memref<18x128xf32, #tpu.memory_space<vmem>>, vector<18x128xf32>
    tpu.vector_store %arg3[%c0_6, %c0_7], %7 {strides = array<i32>} : memref<18x128xf32, #tpu.memory_space<vmem>>, vector<18x128xf32>,
    return
  }
}

module attributes {stable_mosaic.version = 11 : i64} {
  func.func @_mm_nt_kernel(%arg0: memref<8x1152xf32, #tpu.memory_space<vmem>>, %arg1: memref<1152x256xf32, #tpu.memory_space<vmem>>, %arg2: memref<1x256xf32, #tpu.memory_space<vmem>>, %arg3: memref<8x256xf32, #tpu.memory_space<vmem>>) attributes {dimension_semantics = [], scalar_prefetch = 0 : i64, scratch_operands = 0 : i64, tpu.core_type = #tpu.core_type<tc>} {
    %c0 = arith.constant 0 : index
    %c0_0 = arith.constant 0 : index
    %0 = vector.load %arg0[%c0, %c0_0] : memref<8x1152xf32, #tpu.memory_space<vmem>>, vector<8x1152xf32>
    %c0_1 = arith.constant 0 : index
    %c0_2 = arith.constant 0 : index
    %1 = vector.load %arg1[%c0_1, %c0_2] : memref<1152x256xf32, #tpu.memory_space<vmem>>, vector<1152x256xf32>
    %cst = arith.constant dense<0.000000e+00> : vector<8x256xf32>
    %2 = tpu.matmul %0, %1, %cst {dimension_numbers = #tpu.dot_dimension_numbers<[1], [0], [0], [1], [0, 0, 1, 1], [], []>} : vector<8x1152xf32>, vector<1152x256xf32>, vector<8x256xf32> -> vector<8x256xf32>
    %c0_3 = arith.constant 0 : index
    %c0_4 = arith.constant 0 : index
    %3 = vector.load %arg2[%c0_3, %c0_4] : memref<1x256xf32, #tpu.memory_space<vmem>>, vector<1x256xf32>
    %4 = vector.broadcast %3 : vector<1x256xf32> to vector<8x256xf32>
    %5 = arith.addf %2, %4 : vector<8x256xf32>
    %cst_5 = arith.constant 0.000000e+00 : f32
    %6 = vector.broadcast %cst_5 : f32 to vector<8x256xf32>
    %7 = arith.maximumf %5, %6 : vector<8x256xf32>
    %c0_6 = arith.constant 0 : index
    %c0_7 = arith.constant 0 : index
    %8 = vector.load %arg3[%c0_6, %c0_7] : memref<8x256xf32, #tpu.memory_space<vmem>>, vector<8x256xf32>
    tpu.vector_store %arg3[%c0_6, %c0_7], %7 {strides = array<i32>} : memref<8x256xf32, #tpu.memory_space<vmem>>, vector<8x256xf32>,
    return
  }
}

module attributes {stable_mosaic.version = 11 : i64} {
  func.func @_mm_nt_kernel(%arg0: memref<8x2304xf32, #tpu.memory_space<vmem>>, %arg1: memref<2304x256xf32, #tpu.memory_space<vmem>>, %arg2: memref<1x256xf32, #tpu.memory_space<vmem>>, %arg3: memref<8x256xf32, #tpu.memory_space<vmem>>) attributes {dimension_semantics = [], scalar_prefetch = 0 : i64, scratch_operands = 0 : i64, tpu.core_type = #tpu.core_type<tc>} {
    %c0 = arith.constant 0 : index
    %c0_0 = arith.constant 0 : index
    %0 = vector.load %arg0[%c0, %c0_0] : memref<8x2304xf32, #tpu.memory_space<vmem>>, vector<8x2304xf32>
    %c0_1 = arith.constant 0 : index
    %c0_2 = arith.constant 0 : index
    %1 = vector.load %arg1[%c0_1, %c0_2] : memref<2304x256xf32, #tpu.memory_space<vmem>>, vector<2304x256xf32>
    %cst = arith.constant dense<0.000000e+00> : vector<8x256xf32>
    %2 = tpu.matmul %0, %1, %cst {dimension_numbers = #tpu.dot_dimension_numbers<[1], [0], [0], [1], [0, 0, 1, 1], [], []>} : vector<8x2304xf32>, vector<2304x256xf32>, vector<8x256xf32> -> vector<8x256xf32>
    %c0_3 = arith.constant 0 : index
    %c0_4 = arith.constant 0 : index
    %3 = vector.load %arg2[%c0_3, %c0_4] : memref<1x256xf32, #tpu.memory_space<vmem>>, vector<1x256xf32>
    %4 = vector.broadcast %3 : vector<1x256xf32> to vector<8x256xf32>
    %5 = arith.addf %2, %4 : vector<8x256xf32>
    %cst_5 = arith.constant 0.000000e+00 : f32
    %6 = vector.broadcast %cst_5 : f32 to vector<8x256xf32>
    %7 = arith.maximumf %5, %6 : vector<8x256xf32>
    %c0_6 = arith.constant 0 : index
    %c0_7 = arith.constant 0 : index
    %8 = vector.load %arg3[%c0_6, %c0_7] : memref<8x256xf32, #tpu.memory_space<vmem>>, vector<8x256xf32>
    tpu.vector_store %arg3[%c0_6, %c0_7], %7 {strides = array<i32>} : memref<8x256xf32, #tpu.memory_space<vmem>>, vector<8x256xf32>,
    return
  }
}

module attributes {stable_mosaic.version = 11 : i64} {
  func.func @_mm_nt_kernel(%arg0: memref<18x1024xf32, #tpu.memory_space<vmem>>, %arg1: memref<1024x512xf32, #tpu.memory_space<vmem>>, %arg2: memref<1x512xf32, #tpu.memory_space<vmem>>, %arg3: memref<18x512xf32, #tpu.memory_space<vmem>>) attributes {dimension_semantics = [], scalar_prefetch = 0 : i64, scratch_operands = 0 : i64, tpu.core_type = #tpu.core_type<tc>} {
    %c0 = arith.constant 0 : index
    %c0_0 = arith.constant 0 : index
    %0 = vector.load %arg0[%c0, %c0_0] : memref<18x1024xf32, #tpu.memory_space<vmem>>, vector<18x1024xf32>
    %c0_1 = arith.constant 0 : index
    %c0_2 = arith.constant 0 : index
    %1 = vector.load %arg1[%c0_1, %c0_2] : memref<1024x512xf32, #tpu.memory_space<vmem>>, vector<1024x512xf32>
    %cst = arith.constant dense<0.000000e+00> : vector<18x512xf32>
    %2 = tpu.matmul %0, %1, %cst {dimension_numbers = #tpu.dot_dimension_numbers<[1], [0], [0], [1], [0, 0, 1, 1], [], []>} : vector<18x1024xf32>, vector<1024x512xf32>, vector<18x512xf32> -> vector<18x512xf32>
    %c0_3 = arith.constant 0 : index
    %c0_4 = arith.constant 0 : index
    %3 = vector.load %arg2[%c0_3, %c0_4] : memref<1x512xf32, #tpu.memory_space<vmem>>, vector<1x512xf32>
    %4 = vector.broadcast %3 : vector<1x512xf32> to vector<18x512xf32>
    %5 = arith.addf %2, %4 : vector<18x512xf32>
    %cst_5 = arith.constant 0.000000e+00 : f32
    %6 = vector.broadcast %cst_5 : f32 to vector<18x512xf32>
    %7 = arith.maximumf %5, %6 : vector<18x512xf32>
    %c0_6 = arith.constant 0 : index
    %c0_7 = arith.constant 0 : index
    %8 = vector.load %arg3[%c0_6, %c0_7] : memref<18x512xf32, #tpu.memory_space<vmem>>, vector<18x512xf32>
    tpu.vector_store %arg3[%c0_6, %c0_7], %7 {strides = array<i32>} : memref<18x512xf32, #tpu.memory_space<vmem>>, vector<18x512xf32>,
    return
  }
}

module attributes {stable_mosaic.version = 11 : i64} {
  func.func @_mm_nt_kernel(%arg0: memref<72x512xf32, #tpu.memory_space<vmem>>, %arg1: memref<512x256xf32, #tpu.memory_space<vmem>>, %arg2: memref<1x256xf32, #tpu.memory_space<vmem>>, %arg3: memref<72x256xf32, #tpu.memory_space<vmem>>) attributes {dimension_semantics = [], scalar_prefetch = 0 : i64, scratch_operands = 0 : i64, tpu.core_type = #tpu.core_type<tc>} {
    %c0 = arith.constant 0 : index
    %c0_0 = arith.constant 0 : index
    %0 = vector.load %arg0[%c0, %c0_0] : memref<72x512xf32, #tpu.memory_space<vmem>>, vector<72x512xf32>
    %c0_1 = arith.constant 0 : index
    %c0_2 = arith.constant 0 : index
    %1 = vector.load %arg1[%c0_1, %c0_2] : memref<512x256xf32, #tpu.memory_space<vmem>>, vector<512x256xf32>
    %cst = arith.constant dense<0.000000e+00> : vector<72x256xf32>
    %2 = tpu.matmul %0, %1, %cst {dimension_numbers = #tpu.dot_dimension_numbers<[1], [0], [0], [1], [0, 0, 1, 1], [], []>} : vector<72x512xf32>, vector<512x256xf32>, vector<72x256xf32> -> vector<72x256xf32>
    %c0_3 = arith.constant 0 : index
    %c0_4 = arith.constant 0 : index
    %3 = vector.load %arg2[%c0_3, %c0_4] : memref<1x256xf32, #tpu.memory_space<vmem>>, vector<1x256xf32>
    %4 = vector.broadcast %3 : vector<1x256xf32> to vector<72x256xf32>
    %5 = arith.addf %2, %4 : vector<72x256xf32>
    %cst_5 = arith.constant 0.000000e+00 : f32
    %6 = vector.broadcast %cst_5 : f32 to vector<72x256xf32>
    %7 = arith.maximumf %5, %6 : vector<72x256xf32>
    %c0_6 = arith.constant 0 : index
    %c0_7 = arith.constant 0 : index
    %8 = vector.load %arg3[%c0_6, %c0_7] : memref<72x256xf32, #tpu.memory_space<vmem>>, vector<72x256xf32>
    tpu.vector_store %arg3[%c0_6, %c0_7], %7 {strides = array<i32>} : memref<72x256xf32, #tpu.memory_space<vmem>>, vector<72x256xf32>,
    return
  }
}

module attributes {stable_mosaic.version = 11 : i64} {
  func.func @_mm_nt_kernel(%arg0: memref<200x256xf32, #tpu.memory_space<vmem>>, %arg1: memref<256x128xf32, #tpu.memory_space<vmem>>, %arg2: memref<1x128xf32, #tpu.memory_space<vmem>>, %arg3: memref<200x128xf32, #tpu.memory_space<vmem>>) attributes {dimension_semantics = [], scalar_prefetch = 0 : i64, scratch_operands = 0 : i64, tpu.core_type = #tpu.core_type<tc>} {
    %c0 = arith.constant 0 : index
    %c0_0 = arith.constant 0 : index
    %0 = vector.load %arg0[%c0, %c0_0] : memref<200x256xf32, #tpu.memory_space<vmem>>, vector<200x256xf32>
    %c0_1 = arith.constant 0 : index
    %c0_2 = arith.constant 0 : index
    %1 = vector.load %arg1[%c0_1, %c0_2] : memref<256x128xf32, #tpu.memory_space<vmem>>, vector<256x128xf32>
    %cst = arith.constant dense<0.000000e+00> : vector<200x128xf32>
    %2 = tpu.matmul %0, %1, %cst {dimension_numbers = #tpu.dot_dimension_numbers<[1], [0], [0], [1], [0, 0, 1, 1], [], []>} : vector<200x256xf32>, vector<256x128xf32>, vector<200x128xf32> -> vector<200x128xf32>
    %c0_3 = arith.constant 0 : index
    %c0_4 = arith.constant 0 : index
    %3 = vector.load %arg2[%c0_3, %c0_4] : memref<1x128xf32, #tpu.memory_space<vmem>>, vector<1x128xf32>
    %4 = vector.broadcast %3 : vector<1x128xf32> to vector<200x128xf32>
    %5 = arith.addf %2, %4 : vector<200x128xf32>
    %cst_5 = arith.constant 0.000000e+00 : f32
    %6 = vector.broadcast %cst_5 : f32 to vector<200x128xf32>
    %7 = arith.maximumf %5, %6 : vector<200x128xf32>
    %c0_6 = arith.constant 0 : index
    %c0_7 = arith.constant 0 : index
    %8 = vector.load %arg3[%c0_6, %c0_7] : memref<200x128xf32, #tpu.memory_space<vmem>>, vector<200x128xf32>
    tpu.vector_store %arg3[%c0_6, %c0_7], %7 {strides = array<i32>} : memref<200x128xf32, #tpu.memory_space<vmem>>, vector<200x128xf32>,
    return
  }
}

module attributes {stable_mosaic.version = 11 : i64} {
  func.func @_mm_tn_kernel(%arg0: memref<800x128xf32, #tpu.memory_space<vmem>>, %arg1: memref<4x128xf32, #tpu.memory_space<vmem>>, %arg2: memref<4x1xf32, #tpu.memory_space<vmem>>, %arg3: memref<4x800xf32, #tpu.memory_space<vmem>>) attributes {dimension_semantics = [], scalar_prefetch = 0 : i64, scratch_operands = 0 : i64, tpu.core_type = #tpu.core_type<tc>} {
    %c0 = arith.constant 0 : index
    %c0_0 = arith.constant 0 : index
    %0 = vector.load %arg1[%c0, %c0_0] : memref<4x128xf32, #tpu.memory_space<vmem>>, vector<4x128xf32>
    %c0_1 = arith.constant 0 : index
    %c0_2 = arith.constant 0 : index
    %1 = vector.load %arg0[%c0_1, %c0_2] : memref<800x128xf32, #tpu.memory_space<vmem>>, vector<800x128xf32>
    %2 = tpu.transpose %1, [1, 0] : vector<800x128xf32> -> vector<128x800xf32>
    %cst = arith.constant dense<0.000000e+00> : vector<4x800xf32>
    %3 = tpu.matmul %0, %2, %cst {dimension_numbers = #tpu.dot_dimension_numbers<[1], [0], [0], [1], [0, 0, 1, 1], [], []>} : vector<4x128xf32>, vector<128x800xf32>, vector<4x800xf32> -> vector<4x800xf32>
    %c0_3 = arith.constant 0 : index
    %c0_4 = arith.constant 0 : index
    %4 = vector.load %arg2[%c0_3, %c0_4] : memref<4x1xf32, #tpu.memory_space<vmem>>, vector<4x1xf32>
    %5 = vector.broadcast %4 : vector<4x1xf32> to vector<4x800xf32>
    %6 = arith.addf %3, %5 : vector<4x800xf32>
    %c0_5 = arith.constant 0 : index
    %c0_6 = arith.constant 0 : index
    %7 = vector.load %arg3[%c0_5, %c0_6] : memref<4x800xf32, #tpu.memory_space<vmem>>, vector<4x800xf32>
    tpu.vector_store %arg3[%c0_5, %c0_6], %6 {strides = array<i32>} : memref<4x800xf32, #tpu.memory_space<vmem>>, vector<4x800xf32>,
    return
  }
}

</mosaic_0001>

<llo_original>
// kernel: autoencoder_6_forward.8
$region0: #{autoencoder_6_forward.8}
  #allocation0 [shape = 'u32[]', space=smem, size = 0x4, offset = 0x4, fixed_abs, tag = 'smem constant byte address 0x4 - core index']
  #allocation1 [shape = 'u32[144,128]{1,0:T(1,128)}', space=vmem, size = 0x12000, scoped, tag = 'internal scratch']
  %s0 = inlined_call_operand.vmem [shape: f32[200,9], index: 0, kind: input, shape index: {}]
  %s1 = inlined_call_operand.vmem [shape: f32[9,64], index: 1, kind: input, shape index: {}]
  %s2 = inlined_call_operand.hbm [shape: f32[1,64], index: 2, kind: input, shape index: {}]
  %s3 = inlined_call_operand.vmem [shape: f32[200,64], index: 3, kind: output, shape index: {}]
  %s4 = sld [smem:[#allocation0]]
  $region26: #{autoencoder_6_forward.8} parent=0
    _
  %s6 = ssub.s32 1, %s4
  %s7 = scalar_select 0, %s6, %s4
  $region1: #{autoencoder_6_forward.8} parent=0
    #allocation2 [shape = 'u8[512]{0}', space=vmem, size = 0x400, scoped, tag = 'input window, operand 2, single buffered']
    #allocation3 [shape = 's32[1]{0}', space=sflag, size = 0x4, scoped, tag = 'scoped memory for autoencoder_6_forward.8']
    %8 = vsyncpa [#allocation3], 0
    // Predicated region
    $region2: #{autoencoder_6_forward.8} parent=1 // pred_check
      _
    $region3: #{autoencoder_6_forward.8} parent=1 // pred_check_branch
      %10 = sbr.rel (0) target = $region5
    $region4: #{autoencoder_6_forward.8} parent=1 // pred_region
      _
    $region5: #{autoencoder_6_forward.8} parent=1 // pred_fallthru
      _
    // Predicated region
    $region6: #{autoencoder_6_forward.8} parent=1 // pred_check
      _
    $region7: #{autoencoder_6_forward.8} parent=1 // pred_check_branch
      %12 = sbr.rel (0) target = $region9
    $region8: #{autoencoder_6_forward.8} parent=1 // pred_region
      _
    $region9: #{autoencoder_6_forward.8} parent=1 // pred_fallthru
      _
    // Predicated region
    $region10: #{autoencoder_6_forward.8} parent=1 // pred_check
      _
    $region11: #{autoencoder_6_forward.8} parent=1 // pred_check_branch
      %14 = sbr.rel (0) target = $region13
    $region12: #{autoencoder_6_forward.8} parent=1 // pred_region
      %s16 = ssub.s32 16, 16
      %17 = vsyncadd [#allocation3], %s16
      %s19 = sshll.u32 [#allocation2], 4
      %s20 = int_to_ptr.vmem [resolvable:$true] %s19
      %22 = dma.hbm_to_vmem [thread:$0]  %s2, 16, %s20, [#allocation3]
    $region13: #{autoencoder_6_forward.8} parent=1 // pred_fallthru
      _
    // Predicated region
    $region14: #{autoencoder_6_forward.8} parent=1 // pred_check
      _
    $region15: #{autoencoder_6_forward.8} parent=1 // pred_check_branch
      %24 = sbr.rel (0) target = $region17
    $region16: #{autoencoder_6_forward.8} parent=1 // pred_region
      %25 = dma.done [#allocation3], 16
    $region17: #{autoencoder_6_forward.8} parent=1 // pred_fallthru
      _
    %v26 = vld [vmem:[%s0] sm:$0xff]
    %v27 = vld [vmem:[%s0 + $0x8] sm:$0xff]
    %v28 = vld [vmem:[%s0 + $0x10] sm:$0xff]
    %v29 = vld [vmem:[%s0 + $0x18] sm:$0xff]
    %v30 = vld [vmem:[%s0 + $0x20] sm:$0xff]
    %v31 = vld [vmem:[%s0 + $0x28] sm:$0xff]
    %v32 = vld [vmem:[%s0 + $0x30] sm:$0xff]
    %v33 = vld [vmem:[%s0 + $0x38] sm:$0xff]
    %v34 = vld [vmem:[%s0 + $0x40] sm:$0xff]
    %v35 = vld [vmem:[%s0 + $0x48] sm:$0xff]
    %v36 = vld [vmem:[%s0 + $0x50] sm:$0xff]
    %v37 = vld [vmem:[%s0 + $0x58] sm:$0xff]
    %v38 = vld [vmem:[%s0 + $0x60] sm:$0xff]
    %v39 = vld [vmem:[%s0 + $0x68] sm:$0xff]
    %v40 = vld [vmem:[%s0 + $0x70] sm:$0xff]
    %v41 = vld [vmem:[%s0 + $0x78] sm:$0xff]
    %v42 = vld [vmem:[%s0 + $0x80] sm:$0xff]
    %v43 = vld [vmem:[%s0 + $0x88] sm:$0xff]
    %v44 = vld [vmem:[%s0 + $0x90] sm:$0xff]
    %v45 = vld [vmem:[%s0 + $0x98] sm:$0xff]
    %v46 = vld [vmem:[%s0 + $0xa0] sm:$0xff]
    %v47 = vld [vmem:[%s0 + $0xa8] sm:$0xff]
    %v48 = vld [vmem:[%s0 + $0xb0] sm:$0xff]
    %v49 = vld [vmem:[%s0 + $0xb8] sm:$0xff]
    %v50 = vld [vmem:[%s0 + $0xc0] sm:$0xff]
    %v51 = vld [vmem:[%s1] sm:$0xff]
    %v52 = vld [vmem:[%s1 + $0x8] sm:$0x1]
    %v53 = vld [vmem:[#allocation2] sm:$0x1]
    %v55 = vlaneseq
    %v56 = vshrl.u32 %v55, 7
    %v57 = vsub.s32 0, %v56
    %v58 = vrot.slane %v53, %v57
    %vm60 = vcmask 72704
    %v62 = vsel %vm60, %v26, 0
    %v65 = vsel %vm60, %v27, 0
    %v68 = vsel %vm60, %v28, 0
    %v71 = vsel %vm60, %v29, 0
    %v74 = vsel %vm60, %v30, 0
    %v77 = vsel %vm60, %v31, 0
    %v80 = vsel %vm60, %v32, 0
    %v83 = vsel %vm60, %v33, 0
    %v86 = vsel %vm60, %v34, 0
    %v89 = vsel %vm60, %v35, 0
    %v92 = vsel %vm60, %v36, 0
    %v95 = vsel %vm60, %v37, 0
    %v98 = vsel %vm60, %v38, 0
    %v101 = vsel %vm60, %v39, 0
    %v104 = vsel %vm60, %v40, 0
    %v107 = vsel %vm60, %v41, 0
    %v110 = vsel %vm60, %v42, 0
    %v113 = vsel %vm60, %v43, 0
    %v116 = vsel %vm60, %v44, 0
    %v119 = vsel %vm60, %v45, 0
    %v122 = vsel %vm60, %v46, 0
    %v125 = vsel %vm60, %v47, 0
    %v128 = vsel %vm60, %v48, 0
    %v131 = vsel %vm60, %v49, 0
    %v134 = vsel %vm60, %v50, 0
    %vm136 = vcmask 1040384
    %v138 = vsel %vm136, %v52, 0
    %140 = vmatprep.subr.mxu0 0.0
    %141 = vmatpush1.msra.mxu0 %v51
    %142 = vmatprep.subr.mxu0 0.0
    %143 = vmatpush1.msra.mxu0 %v138
    %144 = vmatprep.subr.mxu0 0.0
    %145 = vmatpush1.msra.mxu0 0.0
    %146 = vmatprep.subr.mxu0 0.0
    %147 = vmatpush1.msra.mxu0 0.0
    %148 = vmatprep.subr.mxu0 0.0
    %149 = vmatpush1.msra.mxu0 0.0
    %150 = vmatprep.subr.mxu0 0.0
    %151 = vmatpush1.msra.mxu0 0.0
    %152 = vmatprep.subr.mxu0 0.0
    %153 = vmatpush1.msra.mxu0 0.0
    %154 = vmatprep.subr.mxu0 0.0
    %155 = vmatpush1.msra.mxu0 0.0
    %156 = vmatprep.subr.mxu0 0.0
    %157 = vmatpush1.msra.mxu0 0.0
    %158 = vmatprep.subr.mxu0 0.0
    %159 = vmatpush1.msra.mxu0 0.0
    %160 = vmatprep.subr.mxu0 0.0
    %161 = vmatpush1.msra.mxu0 0.0
    %162 = vmatprep.subr.mxu0 0.0
    %163 = vmatpush1.msra.mxu0 0.0
    %164 = vmatprep.subr.mxu0 0.0
    %165 = vmatpush1.msra.mxu0 0.0
    %166 = vmatprep.subr.mxu0 0.0
    %167 = vmatpush1.msra.mxu0 0.0
    %168 = vmatprep.subr.mxu0 0.0
    %169 = vmatpush1.msra.mxu0 0.0
    %170 = vmatprep.subr.mxu0 0.0
    %171 = vmatpush1.msra.mxu0 0.0
    %172 = vmatprep.subr.mxu0 0.0
    %173 = vmatpush1.msra.mxu0 0.0
    %174 = vmatprep.subr.mxu0 0.0
    %175 = vmatpush1.msra.mxu0 0.0
    %176 = vmatprep.subr.mxu0 0.0
    %177 = vmatpush1.msra.mxu0 0.0
    %178 = vmatprep.subr.mxu0 0.0
    %179 = vmatpush1.msra.mxu0 0.0
    %180 = vmatprep.subr.mxu0 0.0
    %181 = vmatpush1.msra.mxu0 0.0
    %182 = vmatprep.subr.mxu0 0.0
    %183 = vmatpush1.msra.mxu0 0.0
    %184 = vmatprep.subr.mxu0 0.0
    %185 = vmatpush1.msra.mxu0 0.0
    %186 = vmatprep.subr.mxu0 0.0
    %187 = vmatpush1.msra.mxu0 0.0
    %188 = vmatprep.subr.mxu0 0.0
    %189 = vmatpush1.msra.mxu0 0.0
    %190 = vmatprep.subr.mxu0 0.0
    %191 = vmatpush1.msra.mxu0 0.0
    %192 = vmatprep.subr.mxu0 0.0
    %193 = vmatpush1.msra.mxu0 0.0
    %194 = vmatprep.subr.mxu0 0.0
    %195 = vmatpush1.msra.mxu0 0.0
    %196 = vmatprep.subr.mxu0 0.0
    %197 = vmatpush1.msra.mxu0 0.0
    %198 = vmatprep.subr.mxu0 0.0
    %199 = vmatpush1.msra.mxu0 0.0
    %200 = vmatprep.subr.mxu0 0.0
    %201 = vmatpush1.msra.mxu0 0.0
    %202 = vmatprep.subr.mxu0 0.0
    %203 = vmatpush1.msra.mxu0 0.0
    %204 = vmatprep.mubr.f32.mxu0 0.0
    %205 = vmatmul.mubr.f32.gmra.mrb[0].mxu0 %v62
    %v206 = vpop.f32.mrb[0].mxu0
    %v207 = vadd.f32 %v58, %v206
    %v208 = vpop.f32.mrb[0].mxu0
    %209 = vmatprep.mubr.f32.mxu0 0.0
    %210 = vmatmul.mubr.f32.gmra.mrb[0].mxu0 %v65
    %v211 = vpop.f32.mrb[0].mxu0
    %v212 = vadd.f32 %v58, %v211
    %v213 = vpop.f32.mrb[0].mxu0
    %214 = vmatprep.mubr.f32.mxu0 0.0
    %215 = vmatmul.mubr.f32.gmra.mrb[0].mxu0 %v68
    %v216 = vpop.f32.mrb[0].mxu0
    %v217 = vadd.f32 %v58, %v216
    %v218 = vpop.f32.mrb[0].mxu0
    %219 = vmatprep.mubr.f32.mxu0 0.0
    %220 = vmatmul.mubr.f32.gmra.mrb[0].mxu0 %v71
    %v221 = vpop.f32.mrb[0].mxu0
    %v222 = vadd.f32 %v58, %v221
    %v223 = vpop.f32.mrb[0].mxu0
    %224 = vmatprep.mubr.f32.mxu0 0.0
    %225 = vmatmul.mubr.f32.gmra.mrb[0].mxu0 %v74
    %v226 = vpop.f32.mrb[0].mxu0
    %v227 = vadd.f32 %v58, %v226
    %v228 = vpop.f32.mrb[0].mxu0
    %229 = vmatprep.mubr.f32.mxu0 0.0
    %230 = vmatmul.mubr.f32.gmra.mrb[0].mxu0 %v77
    %v231 = vpop.f32.mrb[0].mxu0
    %v232 = vadd.f32 %v58, %v231
    %v233 = vpop.f32.mrb[0].mxu0
    %234 = vmatprep.mubr.f32.mxu0 0.0
    %235 = vmatmul.mubr.f32.gmra.mrb[0].mxu0 %v80
    %v236 = vpop.f32.mrb[0].mxu0
    %v237 = vadd.f32 %v58, %v236
    %v238 = vpop.f32.mrb[0].mxu0
    %239 = vmatprep.mubr.f32.mxu0 0.0
    %240 = vmatmul.mubr.f32.gmra.mrb[0].mxu0 %v83
    %v241 = vpop.f32.mrb[0].mxu0
    %v242 = vadd.f32 %v58, %v241
    %v243 = vpop.f32.mrb[0].mxu0
    %244 = vmatprep.mubr.f32.mxu0 0.0
    %245 = vmatmul.mubr.f32.gmra.mrb[0].mxu0 %v86
    %v246 = vpop.f32.mrb[0].mxu0
    %v247 = vadd.f32 %v58, %v246
    %v248 = vpop.f32.mrb[0].mxu0
    %249 = vmatprep.mubr.f32.mxu0 0.0
    %250 = vmatmul.mubr.f32.gmra.mrb[0].mxu0 %v89
    %v251 = vpop.f32.mrb[0].mxu0
    %v252 = vadd.f32 %v58, %v251
    %v253 = vpop.f32.mrb[0].mxu0
    %254 = vmatprep.mubr.f32.mxu0 0.0
    %255 = vmatmul.mubr.f32.gmra.mrb[0].mxu0 %v92
    %v256 = vpop.f32.mrb[0].mxu0
    %v257 = vadd.f32 %v58, %v256
    %v258 = vpop.f32.mrb[0].mxu0
    %259 = vmatprep.mubr.f32.mxu0 0.0
    %260 = vmatmul.mubr.f32.gmra.mrb[0].mxu0 %v95
    %v261 = vpop.f32.mrb[0].mxu0
    %v262 = vadd.f32 %v58, %v261
    %v263 = vpop.f32.mrb[0].mxu0
    %264 = vmatprep.mubr.f32.mxu0 0.0
    %265 = vmatmul.mubr.f32.gmra.mrb[0].mxu0 %v98
    %v266 = vpop.f32.mrb[0].mxu0
    %v267 = vadd.f32 %v58, %v266
    %v268 = vpop.f32.mrb[0].mxu0
    %269 = vmatprep.mubr.f32.mxu0 0.0
    %270 = vmatmul.mubr.f32.gmra.mrb[0].mxu0 %v101
    %v271 = vpop.f32.mrb[0].mxu0
    %v272 = vadd.f32 %v58, %v271
    %v273 = vpop.f32.mrb[0].mxu0
    %274 = vmatprep.mubr.f32.mxu0 0.0
    %275 = vmatmul.mubr.f32.gmra.mrb[0].mxu0 %v104
    %v276 = vpop.f32.mrb[0].mxu0
    %v277 = vadd.f32 %v58, %v276
    %v278 = vpop.f32.mrb[0].mxu0
    %279 = vmatprep.mubr.f32.mxu0 0.0
    %280 = vmatmul.mubr.f32.gmra.mrb[0].mxu0 %v107
    %v281 = vpop.f32.mrb[0].mxu0
    %v282 = vadd.f32 %v58, %v281
    %v283 = vpop.f32.mrb[0].mxu0
    %284 = vmatprep.mubr.f32.mxu0 0.0
    %285 = vmatmul.mubr.f32.gmra.mrb[0].mxu0 %v110
    %v286 = vpop.f32.mrb[0].mxu0
    %v287 = vadd.f32 %v58, %v286
    %v288 = vpop.f32.mrb[0].mxu0
    %289 = vmatprep.mubr.f32.mxu0 0.0
    %290 = vmatmul.mubr.f32.gmra.mrb[0].mxu0 %v113
    %v291 = vpop.f32.mrb[0].mxu0
    %v292 = vadd.f32 %v58, %v291
    %v293 = vpop.f32.mrb[0].mxu0
    %294 = vmatprep.mubr.f32.mxu0 0.0
    %295 = vmatmul.mubr.f32.gmra.mrb[0].mxu0 %v116
    %v296 = vpop.f32.mrb[0].mxu0
    %v297 = vadd.f32 %v58, %v296
    %v298 = vpop.f32.mrb[0].mxu0
    %299 = vmatprep.mubr.f32.mxu0 0.0
    %300 = vmatmul.mubr.f32.gmra.mrb[0].mxu0 %v119
    %v301 = vpop.f32.mrb[0].mxu0
    %v302 = vadd.f32 %v58, %v301
    %v303 = vpop.f32.mrb[0].mxu0
    %304 = vmatprep.mubr.f32.mxu0 0.0
    %305 = vmatmul.mubr.f32.gmra.mrb[0].mxu0 %v122
    %v306 = vpop.f32.mrb[0].mxu0
    %v307 = vadd.f32 %v58, %v306
    %v308 = vpop.f32.mrb[0].mxu0
    %309 = vmatprep.mubr.f32.mxu0 0.0
    %310 = vmatmul.mubr.f32.gmra.mrb[0].mxu0 %v125
    %v311 = vpop.f32.mrb[0].mxu0
    %v312 = vadd.f32 %v58, %v311
    %v313 = vpop.f32.mrb[0].mxu0
    %314 = vmatprep.mubr.f32.mxu0 0.0
    %315 = vmatmul.mubr.f32.gmra.mrb[0].mxu0 %v128
    %v316 = vpop.f32.mrb[0].mxu0
    %v317 = vadd.f32 %v58, %v316
    %v318 = vpop.f32.mrb[0].mxu0
    %319 = vmatprep.mubr.f32.mxu0 0.0
    %320 = vmatmul.mubr.f32.gmra.mrb[0].mxu0 %v131
    %v321 = vpop.f32.mrb[0].mxu0
    %v322 = vadd.f32 %v58, %v321
    %v323 = vpop.f32.mrb[0].mxu0
    %324 = vmatprep.mubr.f32.mxu0 0.0
    %325 = vmatmul.mubr.f32.gmra.mrb[0].mxu0 %v134
    %v326 = vpop.f32.mrb[0].mxu0
    %v327 = vadd.f32 %v58, %v326
    %v328 = vpop.f32.mrb[0].mxu0
    %329 = vdwg.mxu0
    %v330 = vmax.f32 %v207, 0.0
    %v331 = vmax.f32 %v212, 0.0
    %v332 = vmax.f32 %v217, 0.0
    %v333 = vmax.f32 %v222, 0.0
    %v334 = vmax.f32 %v227, 0.0
    %v335 = vmax.f32 %v232, 0.0
    %v336 = vmax.f32 %v237, 0.0
    %v337 = vmax.f32 %v242, 0.0
    %v338 = vmax.f32 %v247, 0.0
    %v339 = vmax.f32 %v252, 0.0
    %v340 = vmax.f32 %v257, 0.0
    %v341 = vmax.f32 %v262, 0.0
    %v342 = vmax.f32 %v267, 0.0
    %v343 = vmax.f32 %v272, 0.0
    %v344 = vmax.f32 %v277, 0.0
    %v345 = vmax.f32 %v282, 0.0
    %v346 = vmax.f32 %v287, 0.0
    %v347 = vmax.f32 %v292, 0.0
    %v348 = vmax.f32 %v297, 0.0
    %v349 = vmax.f32 %v302, 0.0
    %v350 = vmax.f32 %v307, 0.0
    %v351 = vmax.f32 %v312, 0.0
    %v352 = vmax.f32 %v317, 0.0
    %v353 = vmax.f32 %v322, 0.0
    %v354 = vmax.f32 %v327, 0.0
    %vm355 = vcmask 523264
    %356 = vst.msk [vmem:[%s3] sm:$0xff] %vm355, %v330
    %357 = vst.msk [vmem:[%s3 + $0x8] sm:$0xff] %vm355, %v331
    %358 = vst.msk [vmem:[%s3 + $0x10] sm:$0xff] %vm355, %v332
    %359 = vst.msk [vmem:[%s3 + $0x18] sm:$0xff] %vm355, %v333
    %360 = vst.msk [vmem:[%s3 + $0x20] sm:$0xff] %vm355, %v334
    %361 = vst.msk [vmem:[%s3 + $0x28] sm:$0xff] %vm355, %v335
    %362 = vst.msk [vmem:[%s3 + $0x30] sm:$0xff] %vm355, %v336
    %363 = vst.msk [vmem:[%s3 + $0x38] sm:$0xff] %vm355, %v337
    %364 = vst.msk [vmem:[%s3 + $0x40] sm:$0xff] %vm355, %v338
    %365 = vst.msk [vmem:[%s3 + $0x48] sm:$0xff] %vm355, %v339
    %366 = vst.msk [vmem:[%s3 + $0x50] sm:$0xff] %vm355, %v340
    %367 = vst.msk [vmem:[%s3 + $0x58] sm:$0xff] %vm355, %v341
    %368 = vst.msk [vmem:[%s3 + $0x60] sm:$0xff] %vm355, %v342
    %369 = vst.msk [vmem:[%s3 + $0x68] sm:$0xff] %vm355, %v343
    %370 = vst.msk [vmem:[%s3 + $0x70] sm:$0xff] %vm355, %v344
    %371 = vst.msk [vmem:[%s3 + $0x78] sm:$0xff] %vm355, %v345
    %372 = vst.msk [vmem:[%s3 + $0x80] sm:$0xff] %vm355, %v346
    %373 = vst.msk [vmem:[%s3 + $0x88] sm:$0xff] %vm355, %v347
    %374 = vst.msk [vmem:[%s3 + $0x90] sm:$0xff] %vm355, %v348
    %375 = vst.msk [vmem:[%s3 + $0x98] sm:$0xff] %vm355, %v349
    %376 = vst.msk [vmem:[%s3 + $0xa0] sm:$0xff] %vm355, %v350
    %377 = vst.msk [vmem:[%s3 + $0xa8] sm:$0xff] %vm355, %v351
    %378 = vst.msk [vmem:[%s3 + $0xb0] sm:$0xff] %vm355, %v352
    %379 = vst.msk [vmem:[%s3 + $0xb8] sm:$0xff] %vm355, %v353
    %380 = vst.msk [vmem:[%s3 + $0xc0] sm:$0xff] %vm355, %v354
    // Predicated region
    $region18: #{autoencoder_6_forward.8} parent=1 // pred_check
      _
    $region19: #{autoencoder_6_forward.8} parent=1 // pred_check_branch
      %382 = sbr.rel (0) target = $region21
    $region20: #{autoencoder_6_forward.8} parent=1 // pred_region
      _
    $region21: #{autoencoder_6_forward.8} parent=1 // pred_fallthru
      _
    // Predicated region
    $region22: #{autoencoder_6_forward.8} parent=1 // pred_check
      _
    $region23: #{autoencoder_6_forward.8} parent=1 // pred_check_branch
      %384 = sbr.rel (0) target = $region25
    $region24: #{autoencoder_6_forward.8} parent=1 // pred_region
      _
    $region25: #{autoencoder_6_forward.8} parent=1 // pred_fallthru
      _
    %385 = vsyncpa [#allocation3], 1

// kernel: autoencoder_6_forward.9
$region0: #{autoencoder_6_forward.9}
  #allocation0 [shape = 'u32[]', space=smem, size = 0x4, offset = 0x4, fixed_abs, tag = 'smem constant byte address 0x4 - core index']
  #allocation1 [shape = 'u32[144,128]{1,0:T(1,128)}', space=vmem, size = 0x12000, scoped, tag = 'internal scratch']
  %s0 = inlined_call_operand.vmem [shape: f32[18,576], index: 0, kind: input, shape index: {}]
  %s1 = inlined_call_operand.vmem [shape: f32[576,128], index: 1, kind: input, shape index: {}]
  %s2 = inlined_call_operand.vmem [shape: f32[1,128], index: 2, kind: input, shape index: {}]
  %s3 = inlined_call_operand.vmem [shape: f32[18,128], index: 3, kind: output, shape index: {}]
  %s4 = sld [smem:[#allocation0]]
  $region22: #{autoencoder_6_forward.9} parent=0
    _
  %s6 = ssub.s32 1, %s4
  %s7 = scalar_select 0, %s6, %s4
  // Predicated region
  $region2: #{autoencoder_6_forward.9} parent=0 // pred_check
    _
  $region3: #{autoencoder_6_forward.9} parent=0 // pred_check_branch
    %9 = sbr.rel (0) target = $region5
  $region4: #{autoencoder_6_forward.9} parent=0 // pred_region
    _
  $region5: #{autoencoder_6_forward.9} parent=0 // pred_fallthru
    _
  // Predicated region
  $region6: #{autoencoder_6_forward.9} parent=0 // pred_check
    _
  $region7: #{autoencoder_6_forward.9} parent=0 // pred_check_branch
    %11 = sbr.rel (0) target = $region9
  $region8: #{autoencoder_6_forward.9} parent=0 // pred_region
    _
  $region9: #{autoencoder_6_forward.9} parent=0 // pred_fallthru
    _
  // Predicated region
  $region10: #{autoencoder_6_forward.9} parent=0 // pred_check
    _
  $region11: #{autoencoder_6_forward.9} parent=0 // pred_check_branch
    %13 = sbr.rel (0) target = $region13
  $region12: #{autoencoder_6_forward.9} parent=0 // pred_region
    _
  $region13: #{autoencoder_6_forward.9} parent=0 // pred_fallthru
    _
  %v14 = vld [vmem:[%s0] sm:$0xff]
  %v15 = vld [vmem:[%s0 + $0x8] sm:$0xff]
  %v16 = vld [vmem:[%s0 + $0x10] sm:$0xff]
  %v17 = vld [vmem:[%s0 + $0x18] sm:$0xff]
  %v18 = vld [vmem:[%s0 + $0x20] sm:$0xff]
  %v19 = vld [vmem:[%s0 + $0x28] sm:$0xff]
  %v20 = vld [vmem:[%s0 + $0x30] sm:$0xff]
  %v21 = vld [vmem:[%s0 + $0x38] sm:$0xff]
  %v22 = vld [vmem:[%s0 + $0x40] sm:$0xff]
  %v23 = vld [vmem:[%s0 + $0x48] sm:$0xff]
  %v24 = vld [vmem:[%s0 + $0x50] sm:$0x3]
  %v25 = vld [vmem:[%s0 + $0x58] sm:$0x3]
  %v26 = vld [vmem:[%s0 + $0x60] sm:$0x3]
  %v27 = vld [vmem:[%s0 + $0x68] sm:$0x3]
  %v28 = vld [vmem:[%s0 + $0x70] sm:$0x3]
  %v29 = vld [vmem:[%s1] sm:$0xff]
  %v30 = vld [vmem:[%s1 + $0x8] sm:$0xff]
  %v31 = vld [vmem:[%s1 + $0x10] sm:$0xff]
  %v32 = vld [vmem:[%s1 + $0x18] sm:$0xff]
  %v33 = vld [vmem:[%s1 + $0x20] sm:$0xff]
  %v34 = vld [vmem:[%s1 + $0x28] sm:$0xff]
  %v35 = vld [vmem:[%s1 + $0x30] sm:$0xff]
  %v36 = vld [vmem:[%s1 + $0x38] sm:$0xff]
  %v37 = vld [vmem:[%s1 + $0x40] sm:$0xff]
  %v38 = vld [vmem:[%s1 + $0x48] sm:$0xff]
  %v39 = vld [vmem:[%s1 + $0x50] sm:$0xff]
  %v40 = vld [vmem:[%s1 + $0x58] sm:$0xff]
  %v41 = vld [vmem:[%s1 + $0x60] sm:$0xff]
  %v42 = vld [vmem:[%s1 + $0x68] sm:$0xff]
  %v43 = vld [vmem:[%s1 + $0x70] sm:$0xff]
  %v44 = vld [vmem:[%s1 + $0x78] sm:$0xff]
  %v45 = vld [vmem:[%s1 + $0x80] sm:$0xff]
  %v46 = vld [vmem:[%s1 + $0x88] sm:$0xff]
  %v47 = vld [vmem:[%s1 + $0x90] sm:$0xff]
  %v48 = vld [vmem:[%s1 + $0x98] sm:$0xff]
  %v49 = vld [vmem:[%s1 + $0xa0] sm:$0xff]
  %v50 = vld [vmem:[%s1 + $0xa8] sm:$0xff]
  %v51 = vld [vmem:[%s1 + $0xb0] sm:$0xff]
  %v52 = vld [vmem:[%s1 + $0xb8] sm:$0xff]
  %v53 = vld [vmem:[%s1 + $0xc0] sm:$0xff]
  %v54 = vld [vmem:[%s1 + $0xc8] sm:$0xff]
  %v55 = vld [vmem:[%s1 + $0xd0] sm:$0xff]
  %v56 = vld [vmem:[%s1 + $0xd8] sm:$0xff]
  %v57 = vld [vmem:[%s1 + $0xe0] sm:$0xff]
  %v58 = vld [vmem:[%s1 + $0xe8] sm:$0xff]
  %v59 = vld [vmem:[%s1 + $0xf0] sm:$0xff]
  %v60 = vld [vmem:[%s1 + $0xf8] sm:$0xff]
  %v61 = vld [vmem:[%s1 + $0x100] sm:$0xff]
  %v62 = vld [vmem:[%s1 + $0x108] sm:$0xff]
  %v63 = vld [vmem:[%s1 + $0x110] sm:$0xff]
  %v64 = vld [vmem:[%s1 + $0x118] sm:$0xff]
  %v65 = vld [vmem:[%s1 + $0x120] sm:$0xff]
  %v66 = vld [vmem:[%s1 + $0x128] sm:$0xff]
  %v67 = vld [vmem:[%s1 + $0x130] sm:$0xff]
  %v68 = vld [vmem:[%s1 + $0x138] sm:$0xff]
  %v69 = vld [vmem:[%s1 + $0x140] sm:$0xff]
  %v70 = vld [vmem:[%s1 + $0x148] sm:$0xff]
  %v71 = vld [vmem:[%s1 + $0x150] sm:$0xff]
  %v72 = vld [vmem:[%s1 + $0x158] sm:$0xff]
  %v73 = vld [vmem:[%s1 + $0x160] sm:$0xff]
  %v74 = vld [vmem:[%s1 + $0x168] sm:$0xff]
  %v75 = vld [vmem:[%s1 + $0x170] sm:$0xff]
  %v76 = vld [vmem:[%s1 + $0x178] sm:$0xff]
  %v77 = vld [vmem:[%s1 + $0x180] sm:$0xff]
  %v78 = vld [vmem:[%s1 + $0x188] sm:$0xff]
  %v79 = vld [vmem:[%s1 + $0x190] sm:$0xff]
  %v80 = vld [vmem:[%s1 + $0x198] sm:$0xff]
  %v81 = vld [vmem:[%s1 + $0x1a0] sm:$0xff]
  %v82 = vld [vmem:[%s1 + $0x1a8] sm:$0xff]
  %v83 = vld [vmem:[%s1 + $0x1b0] sm:$0xff]
  %v84 = vld [vmem:[%s1 + $0x1b8] sm:$0xff]
  %v85 = vld [vmem:[%s1 + $0x1c0] sm:$0xff]
  %v86 = vld [vmem:[%s1 + $0x1c8] sm:$0xff]
  %v87 = vld [vmem:[%s1 + $0x1d0] sm:$0xff]
  %v88 = vld [vmem:[%s1 + $0x1d8] sm:$0xff]
  %v89 = vld [vmem:[%s1 + $0x1e0] sm:$0xff]
  %v90 = vld [vmem:[%s1 + $0x1e8] sm:$0xff]
  %v91 = vld [vmem:[%s1 + $0x1f0] sm:$0xff]
  %v92 = vld [vmem:[%s1 + $0x1f8] sm:$0xff]
  %v93 = vld [vmem:[%s1 + $0x200] sm:$0xff]
  %v94 = vld [vmem:[%s1 + $0x208] sm:$0xff]
  %v95 = vld [vmem:[%s1 + $0x210] sm:$0xff]
  %v96 = vld [vmem:[%s1 + $0x218] sm:$0xff]
  %v97 = vld [vmem:[%s1 + $0x220] sm:$0xff]
  %v98 = vld [vmem:[%s1 + $0x228] sm:$0xff]
  %v99 = vld [vmem:[%s1 + $0x230] sm:$0xff]
  %v100 = vld [vmem:[%s1 + $0x238] sm:$0xff]
  %v101 = vld [vmem:[%s2] sm:$0x1]
  %v103 = vlaneseq
  %v104 = vshrl.u32 %v103, 7
  %v105 = vsub.s32 0, %v104
  %v106 = vrot.slane %v101, %v105
  %vm108 = vcmask 523264
  %v110 = vsel %vm108, %v18, 0
  %v113 = vsel %vm108, %v23, 0
  %v116 = vsel %vm108, %v28, 0
  %118 = vmatprep.subr.mxu0 0.0
  %119 = vmatpush1.msra.mxu0 %v29
  %120 = vmatprep.subr.mxu0 0.0
  %121 = vmatpush1.msra.mxu0 %v30
  %122 = vmatprep.subr.mxu0 0.0
  %123 = vmatpush1.msra.mxu0 %v31
  %124 = vmatprep.subr.mxu0 0.0
  %125 = vmatpush1.msra.mxu0 %v32
  %126 = vmatprep.subr.mxu0 0.0
  %127 = vmatpush1.msra.mxu0 %v33
  %128 = vmatprep.subr.mxu0 0.0
  %129 = vmatpush1.msra.mxu0 %v34
  %130 = vmatprep.subr.mxu0 0.0
  %131 = vmatpush1.msra.mxu0 %v35
  %132 = vmatprep.subr.mxu0 0.0
  %133 = vmatpush1.msra.mxu0 %v36
  %134 = vmatprep.subr.mxu0 0.0
  %135 = vmatpush1.msra.mxu0 %v37
  %136 = vmatprep.subr.mxu0 0.0
  %137 = vmatpush1.msra.mxu0 %v38
  %138 = vmatprep.subr.mxu0 0.0
  %139 = vmatpush1.msra.mxu0 %v39
  %140 = vmatprep.subr.mxu0 0.0
  %141 = vmatpush1.msra.mxu0 %v40
  %142 = vmatprep.subr.mxu0 0.0
  %143 = vmatpush1.msra.mxu0 %v41
  %144 = vmatprep.subr.mxu0 0.0
  %145 = vmatpush1.msra.mxu0 %v42
  %146 = vmatprep.subr.mxu0 0.0
  %147 = vmatpush1.msra.mxu0 %v43
  %148 = vmatprep.subr.mxu0 0.0
  %149 = vmatpush1.msra.mxu0 %v44
  %150 = vmatprep.subr.mxu0 0.0
  %151 = vmatpush1.msra.mxu0 %v45
  %152 = vmatprep.subr.mxu0 0.0
  %153 = vmatpush1.msra.mxu0 %v46
  %154 = vmatprep.subr.mxu0 0.0
  %155 = vmatpush1.msra.mxu0 %v47
  %156 = vmatprep.subr.mxu0 0.0
  %157 = vmatpush1.msra.mxu0 %v48
  %158 = vmatprep.subr.mxu0 0.0
  %159 = vmatpush1.msra.mxu0 %v49
  %160 = vmatprep.subr.mxu0 0.0
  %161 = vmatpush1.msra.mxu0 %v50
  %162 = vmatprep.subr.mxu0 0.0
  %163 = vmatpush1.msra.mxu0 %v51
  %164 = vmatprep.subr.mxu0 0.0
  %165 = vmatpush1.msra.mxu0 %v52
  %166 = vmatprep.subr.mxu0 0.0
  %167 = vmatpush1.msra.mxu0 %v53
  %168 = vmatprep.subr.mxu0 0.0
  %169 = vmatpush1.msra.mxu0 %v54
  %170 = vmatprep.subr.mxu0 0.0
  %171 = vmatpush1.msra.mxu0 %v55
  %172 = vmatprep.subr.mxu0 0.0
  %173 = vmatpush1.msra.mxu0 %v56
  %174 = vmatprep.subr.mxu0 0.0
  %175 = vmatpush1.msra.mxu0 %v57
  %176 = vmatprep.subr.mxu0 0.0
  %177 = vmatpush1.msra.mxu0 %v58
  %178 = vmatprep.subr.mxu0 0.0
  %179 = vmatpush1.msra.mxu0 %v59
  %180 = vmatprep.subr.mxu0 0.0
  %181 = vmatpush1.msra.mxu0 %v60
  %182 = vmatprep.mubr.f32.mxu0 %v15
  %183 = vmatmul.mubr.f32.gmra.mrb[0].mxu0 %v14
  %v184 = vpop.f32.mrb[0].mxu0
  %v185 = vadd.f32 %v106, %v184
  %v186 = vpop.f32.mrb[0].mxu0
  %187 = vmatprep.mubr.f32.mxu0 %v20
  %188 = vmatmul.mubr.f32.gmra.mrb[0].mxu0 %v19
  %v189 = vpop.f32.mrb[0].mxu0
  %v190 = vadd.f32 %v106, %v189
  %v191 = vpop.f32.mrb[0].mxu0
  %192 = vmatprep.mubr.f32.mxu0 %v25
  %193 = vmatmul.mubr.f32.gmra.mrb[0].mxu0 %v24
  %v194 = vpop.f32.mrb[0].mxu0
  %v195 = vadd.f32 %v106, %v194
  %v196 = vpop.f32.mrb[0].mxu0
  %197 = vdwg.mxu0
  %198 = vmatprep.subr.mxu0 0.0
  %199 = vmatpush1.msra.mxu0 %v61
  %200 = vmatprep.subr.mxu0 0.0
  %201 = vmatpush1.msra.mxu0 %v62
  %202 = vmatprep.subr.mxu0 0.0
  %203 = vmatpush1.msra.mxu0 %v63
  %204 = vmatprep.subr.mxu0 0.0
  %205 = vmatpush1.msra.mxu0 %v64
  %206 = vmatprep.subr.mxu0 0.0
  %207 = vmatpush1.msra.mxu0 %v65
  %208 = vmatprep.subr.mxu0 0.0
  %209 = vmatpush1.msra.mxu0 %v66
  %210 = vmatprep.subr.mxu0 0.0
  %211 = vmatpush1.msra.mxu0 %v67
  %212 = vmatprep.subr.mxu0 0.0
  %213 = vmatpush1.msra.mxu0 %v68
  %214 = vmatprep.subr.mxu0 0.0
  %215 = vmatpush1.msra.mxu0 %v69
  %216 = vmatprep.subr.mxu0 0.0
  %217 = vmatpush1.msra.mxu0 %v70
  %218 = vmatprep.subr.mxu0 0.0
  %219 = vmatpush1.msra.mxu0 %v71
  %220 = vmatprep.subr.mxu0 0.0
  %221 = vmatpush1.msra.mxu0 %v72
  %222 = vmatprep.subr.mxu0 0.0
  %223 = vmatpush1.msra.mxu0 %v73
  %224 = vmatprep.subr.mxu0 0.0
  %225 = vmatpush1.msra.mxu0 %v74
  %226 = vmatprep.subr.mxu0 0.0
  %227 = vmatpush1.msra.mxu0 %v75
  %228 = vmatprep.subr.mxu0 0.0
  %229 = vmatpush1.msra.mxu0 %v76
  %230 = vmatprep.subr.mxu0 0.0
  %231 = vmatpush1.msra.mxu0 %v77
  %232 = vmatprep.subr.mxu0 0.0
  %233 = vmatpush1.msra.mxu0 %v78
  %234 = vmatprep.subr.mxu0 0.0
  %235 = vmatpush1.msra.mxu0 %v79
  %236 = vmatprep.subr.mxu0 0.0
  %237 = vmatpush1.msra.mxu0 %v80
  %238 = vmatprep.subr.mxu0 0.0
  %239 = vmatpush1.msra.mxu0 %v81
  %240 = vmatprep.subr.mxu0 0.0
  %241 = vmatpush1.msra.mxu0 %v82
  %242 = vmatprep.subr.mxu0 0.0
  %243 = vmatpush1.msra.mxu0 %v83
  %244 = vmatprep.subr.mxu0 0.0
  %245 = vmatpush1.msra.mxu0 %v84
  %246 = vmatprep.subr.mxu0 0.0
  %247 = vmatpush1.msra.mxu0 %v85
  %248 = vmatprep.subr.mxu0 0.0
  %249 = vmatpush1.msra.mxu0 %v86
  %250 = vmatprep.subr.mxu0 0.0
  %251 = vmatpush1.msra.mxu0 %v87
  %252 = vmatprep.subr.mxu0 0.0
  %253 = vmatpush1.msra.mxu0 %v88
  %254 = vmatprep.subr.mxu0 0.0
  %255 = vmatpush1.msra.mxu0 %v89
  %256 = vmatprep.subr.mxu0 0.0
  %257 = vmatpush1.msra.mxu0 %v90
  %258 = vmatprep.subr.mxu0 0.0
  %259 = vmatpush1.msra.mxu0 %v91
  %260 = vmatprep.subr.mxu0 0.0
  %261 = vmatpush1.msra.mxu0 %v92
  %262 = vmatprep.mubr.f32.mxu0 %v17
  %263 = vmatmul.mubr.f32.gmra.mrb[0].mxu0 %v16
  %v264 = vpop.f32.mrb[0].mxu0
  %v265 = vadd.f32 %v185, %v264
  %v266 = vpop.f32.mrb[0].mxu0
  %267 = vmatprep.mubr.f32.mxu0 %v22
  %268 = vmatmul.mubr.f32.gmra.mrb[0].mxu0 %v21
  %v269 = vpop.f32.mrb[0].mxu0
  %v270 = vadd.f32 %v190, %v269
  %v271 = vpop.f32.mrb[0].mxu0
  %272 = vmatprep.mubr.f32.mxu0 %v27
  %273 = vmatmul.mubr.f32.gmra.mrb[0].mxu0 %v26
  %v274 = vpop.f32.mrb[0].mxu0
  %v275 = vadd.f32 %v195, %v274
  %v276 = vpop.f32.mrb[0].mxu0
  %277 = vdwg.mxu0
  %278 = vmatprep.subr.mxu0 0.0
  %279 = vmatpush1.msra.mxu0 %v93
  %280 = vmatprep.subr.mxu0 0.0
  %281 = vmatpush1.msra.mxu0 %v94
  %282 = vmatprep.subr.mxu0 0.0
  %283 = vmatpush1.msra.mxu0 %v95
  %284 = vmatprep.subr.mxu0 0.0
  %285 = vmatpush1.msra.mxu0 %v96
  %286 = vmatprep.subr.mxu0 0.0
  %287 = vmatpush1.msra.mxu0 %v97
  %288 = vmatprep.subr.mxu0 0.0
  %289 = vmatpush1.msra.mxu0 %v98
  %290 = vmatprep.subr.mxu0 0.0
  %291 = vmatpush1.msra.mxu0 %v99
  %292 = vmatprep.subr.mxu0 0.0
  %293 = vmatpush1.msra.mxu0 %v100
  %294 = vmatprep.subr.mxu0 0.0
  %295 = vmatpush1.msra.mxu0 0.0
  %296 = vmatprep.subr.mxu0 0.0
  %297 = vmatpush1.msra.mxu0 0.0
  %298 = vmatprep.subr.mxu0 0.0
  %299 = vmatpush1.msra.mxu0 0.0
  %300 = vmatprep.subr.mxu0 0.0
  %301 = vmatpush1.msra.mxu0 0.0
  %302 = vmatprep.subr.mxu0 0.0
  %303 = vmatpush1.msra.mxu0 0.0
  %304 = vmatprep.subr.mxu0 0.0
  %305 = vmatpush1.msra.mxu0 0.0
  %306 = vmatprep.subr.mxu0 0.0
  %307 = vmatpush1.msra.mxu0 0.0
  %308 = vmatprep.subr.mxu0 0.0
  %309 = vmatpush1.msra.mxu0 0.0
  %310 = vmatprep.subr.mxu0 0.0
  %311 = vmatpush1.msra.mxu0 0.0
  %312 = vmatprep.subr.mxu0 0.0
  %313 = vmatpush1.msra.mxu0 0.0
  %314 = vmatprep.subr.mxu0 0.0
  %315 = vmatpush1.msra.mxu0 0.0
  %316 = vmatprep.subr.mxu0 0.0
  %317 = vmatpush1.msra.mxu0 0.0
  %318 = vmatprep.subr.mxu0 0.0
  %319 = vmatpush1.msra.mxu0 0.0
  %320 = vmatprep.subr.mxu0 0.0
  %321 = vmatpush1.msra.mxu0 0.0
  %322 = vmatprep.subr.mxu0 0.0
  %323 = vmatpush1.msra.mxu0 0.0
  %324 = vmatprep.subr.mxu0 0.0
  %325 = vmatpush1.msra.mxu0 0.0
  %326 = vmatprep.subr.mxu0 0.0
  %327 = vmatpush1.msra.mxu0 0.0
  %328 = vmatprep.subr.mxu0 0.0
  %329 = vmatpush1.msra.mxu0 0.0
  %330 = vmatprep.subr.mxu0 0.0
  %331 = vmatpush1.msra.mxu0 0.0
  %332 = vmatprep.subr.mxu0 0.0
  %333 = vmatpush1.msra.mxu0 0.0
  %334 = vmatprep.subr.mxu0 0.0
  %335 = vmatpush1.msra.mxu0 0.0
  %336 = vmatprep.subr.mxu0 0.0
  %337 = vmatpush1.msra.mxu0 0.0
  %338 = vmatprep.subr.mxu0 0.0
  %339 = vmatpush1.msra.mxu0 0.0
  %340 = vmatprep.subr.mxu0 0.0
  %341 = vmatpush1.msra.mxu0 0.0
  %342 = vmatprep.mubr.f32.mxu0 0.0
  %343 = vmatmul.mubr.f32.gmra.mrb[0].mxu0 %v110
  %v344 = vpop.f32.mrb[0].mxu0
  %v345 = vadd.f32 %v265, %v344
  %v346 = vpop.f32.mrb[0].mxu0
  %347 = vmatprep.mubr.f32.mxu0 0.0
  %348 = vmatmul.mubr.f32.gmra.mrb[0].mxu0 %v113
  %v349 = vpop.f32.mrb[0].mxu0
  %v350 = vadd.f32 %v270, %v349
  %v351 = vpop.f32.mrb[0].mxu0
  %352 = vmatprep.mubr.f32.mxu0 0.0
  %353 = vmatmul.mubr.f32.gmra.mrb[0].mxu0 %v116
  %v354 = vpop.f32.mrb[0].mxu0
  %v355 = vadd.f32 %v275, %v354
  %v356 = vpop.f32.mrb[0].mxu0
  %357 = vdwg.mxu0
  %v358 = vmax.f32 %v345, 0.0
  %v359 = vmax.f32 %v350, 0.0
  %v360 = vmax.f32 %v355, 0.0
  %361 = vst [vmem:[%s3] sm:$0xff] %v358
  %362 = vst [vmem:[%s3 + $0x8] sm:$0xff] %v359
  %363 = vst [vmem:[%s3 + $0x10] sm:$0x3] %v360
  // Predicated region
  $region14: #{autoencoder_6_forward.9} parent=0 // pred_check
    _
  $region15: #{autoencoder_6_forward.9} parent=0 // pred_check_branch
    %365 = sbr.rel (0) target = $region17
  $region16: #{autoencoder_6_forward.9} parent=0 // pred_region
    _
  $region17: #{autoencoder_6_forward.9} parent=0 // pred_fallthru
    _
  // Predicated region
  $region18: #{autoencoder_6_forward.9} parent=0 // pred_check
    _
  $region19: #{autoencoder_6_forward.9} parent=0 // pred_check_branch
    %367 = sbr.rel (0) target = $region21
  $region20: #{autoencoder_6_forward.9} parent=0 // pred_region
    _
  $region21: #{autoencoder_6_forward.9} parent=0 // pred_fallthru
    _

// kernel: autoencoder_6_forward.10
$region0: #{autoencoder_6_forward.10}
  #allocation0 [shape = 'u32[]', space=smem, size = 0x4, offset = 0x4, fixed_abs, tag = 'smem constant byte address 0x4 - core index']
  #allocation1 [shape = 'u32[144,128]{1,0:T(1,128)}', space=vmem, size = 0x12000, scoped, tag = 'internal scratch']
  %s0 = inlined_call_operand.vmem [shape: f32[8,1152], index: 0, kind: input, shape index: {}]
  %s1 = inlined_call_operand.vmem [shape: f32[1152,256], index: 1, kind: input, shape index: {}]
  %s2 = inlined_call_operand.vmem [shape: f32[1,256], index: 2, kind: input, shape index: {}]
  %s3 = inlined_call_operand.vmem [shape: f32[8,256], index: 3, kind: output, shape index: {}]
  %s4 = sld [smem:[#allocation0]]
  $region22: #{autoencoder_6_forward.10} parent=0
    _
  %s6 = ssub.s32 1, %s4
  %s7 = scalar_select 0, %s6, %s4
  // Predicated region
  $region2: #{autoencoder_6_forward.10} parent=0 // pred_check
    _
  $region3: #{autoencoder_6_forward.10} parent=0 // pred_check_branch
    %9 = sbr.rel (0) target = $region5
  $region4: #{autoencoder_6_forward.10} parent=0 // pred_region
    _
  $region5: #{autoencoder_6_forward.10} parent=0 // pred_fallthru
    _
  // Predicated region
  $region6: #{autoencoder_6_forward.10} parent=0 // pred_check
    _
  $region7: #{autoencoder_6_forward.10} parent=0 // pred_check_branch
    %11 = sbr.rel (0) target = $region9
  $region8: #{autoencoder_6_forward.10} parent=0 // pred_region
    _
  $region9: #{autoencoder_6_forward.10} parent=0 // pred_fallthru
    _
  // Predicated region
  $region10: #{autoencoder_6_forward.10} parent=0 // pred_check
    _
  $region11: #{autoencoder_6_forward.10} parent=0 // pred_check_branch
    %13 = sbr.rel (0) target = $region13
  $region12: #{autoencoder_6_forward.10} parent=0 // pred_region
    _
  $region13: #{autoencoder_6_forward.10} parent=0 // pred_fallthru
    _
  %v14 = vld [vmem:[%s0] sm:$0xff]
  %v15 = vld [vmem:[%s0 + $0x8] sm:$0xff]
  %v16 = vld [vmem:[%s0 + $0x10] sm:$0xff]
  %v17 = vld [vmem:[%s0 + $0x18] sm:$0xff]
  %v18 = vld [vmem:[%s0 + $0x20] sm:$0xff]
  %v19 = vld [vmem:[%s0 + $0x28] sm:$0xff]
  %v20 = vld [vmem:[%s0 + $0x30] sm:$0xff]
  %v21 = vld [vmem:[%s0 + $0x38] sm:$0xff]
  %v22 = vld [vmem:[%s0 + $0x40] sm:$0xff]
  %v23 = vld [vmem:[%s1] sm:$0xff]
  %v24 = vld [vmem:[%s1 + $0x8] sm:$0xff]
  %v25 = vld [vmem:[%s1 + $0x10] sm:$0xff]
  %v26 = vld [vmem:[%s1 + $0x18] sm:$0xff]
  %v27 = vld [vmem:[%s1 + $0x20] sm:$0xff]
  %v28 = vld [vmem:[%s1 + $0x28] sm:$0xff]
  %v29 = vld [vmem:[%s1 + $0x30] sm:$0xff]
  %v30 = vld [vmem:[%s1 + $0x38] sm:$0xff]
  %v31 = vld [vmem:[%s1 + $0x40] sm:$0xff]
  %v32 = vld [vmem:[%s1 + $0x48] sm:$0xff]
  %v33 = vld [vmem:[%s1 + $0x50] sm:$0xff]
  %v34 = vld [vmem:[%s1 + $0x58] sm:$0xff]
  %v35 = vld [vmem:[%s1 + $0x60] sm:$0xff]
  %v36 = vld [vmem:[%s1 + $0x68] sm:$0xff]
  %v37 = vld [vmem:[%s1 + $0x70] sm:$0xff]
  %v38 = vld [vmem:[%s1 + $0x78] sm:$0xff]
  %v39 = vld [vmem:[%s1 + $0x80] sm:$0xff]
  %v40 = vld [vmem:[%s1 + $0x88] sm:$0xff]
  %v41 = vld [vmem:[%s1 + $0x90] sm:$0xff]
  %v42 = vld [vmem:[%s1 + $0x98] sm:$0xff]
  %v43 = vld [vmem:[%s1 + $0xa0] sm:$0xff]
  %v44 = vld [vmem:[%s1 + $0xa8] sm:$0xff]
  %v45 = vld [vmem:[%s1 + $0xb0] sm:$0xff]
  %v46 = vld [vmem:[%s1 + $0xb8] sm:$0xff]
  %v47 = vld [vmem:[%s1 + $0xc0] sm:$0xff]
  %v48 = vld [vmem:[%s1 + $0xc8] sm:$0xff]
  %v49 = vld [vmem:[%s1 + $0xd0] sm:$0xff]
  %v50 = vld [vmem:[%s1 + $0xd8] sm:$0xff]
  %v51 = vld [vmem:[%s1 + $0xe0] sm:$0xff]
  %v52 = vld [vmem:[%s1 + $0xe8] sm:$0xff]
  %v53 = vld [vmem:[%s1 + $0xf0] sm:$0xff]
  %v54 = vld [vmem:[%s1 + $0xf8] sm:$0xff]
  %v55 = vld [vmem:[%s1 + $0x100] sm:$0xff]
  %v56 = vld [vmem:[%s1 + $0x108] sm:$0xff]
  %v57 = vld [vmem:[%s1 + $0x110] sm:$0xff]
  %v58 = vld [vmem:[%s1 + $0x118] sm:$0xff]
  %v59 = vld [vmem:[%s1 + $0x120] sm:$0xff]
  %v60 = vld [vmem:[%s1 + $0x128] sm:$0xff]
  %v61 = vld [vmem:[%s1 + $0x130] sm:$0xff]
  %v62 = vld [vmem:[%s1 + $0x138] sm:$0xff]
  %v63 = vld [vmem:[%s1 + $0x140] sm:$0xff]
  %v64 = vld [vmem:[%s1 + $0x148] sm:$0xff]
  %v65 = vld [vmem:[%s1 + $0x150] sm:$0xff]
  %v66 = vld [vmem:[%s1 + $0x158] sm:$0xff]
  %v67 = vld [vmem:[%s1 + $0x160] sm:$0xff]
  %v68 = vld [vmem:[%s1 + $0x168] sm:$0xff]
  %v69 = vld [vmem:[%s1 + $0x170] sm:$0xff]
  %v70 = vld [vmem:[%s1 + $0x178] sm:$0xff]
  %v71 = vld [vmem:[%s1 + $0x180] sm:$0xff]
  %v72 = vld [vmem:[%s1 + $0x188] sm:$0xff]
  %v73 = vld [vmem:[%s1 + $0x190] sm:$0xff]
  %v74 = vld [vmem:[%s1 + $0x198] sm:$0xff]
  %v75 = vld [vmem:[%s1 + $0x1a0] sm:$0xff]
  %v76 = vld [vmem:[%s1 + $0x1a8] sm:$0xff]
  %v77 = vld [vmem:[%s1 + $0x1b0] sm:$0xff]
  %v78 = vld [vmem:[%s1 + $0x1b8] sm:$0xff]
  %v79 = vld [vmem:[%s1 + $0x1c0] sm:$0xff]
  %v80 = vld [vmem:[%s1 + $0x1c8] sm:$0xff]
  %v81 = vld [vmem:[%s1 + $0x1d0] sm:$0xff]
  %v82 = vld [vmem:[%s1 + $0x1d8] sm:$0xff]
  %v83 = vld [vmem:[%s1 + $0x1e0] sm:$0xff]
  %v84 = vld [vmem:[%s1 + $0x1e8] sm:$0xff]
  %v85 = vld [vmem:[%s1 + $0x1f0] sm:$0xff]
  %v86 = vld [vmem:[%s1 + $0x1f8] sm:$0xff]
  %v87 = vld [vmem:[%s1 + $0x200] sm:$0xff]
  %v88 = vld [vmem:[%s1 + $0x208] sm:$0xff]
  %v89 = vld [vmem:[%s1 + $0x210] sm:$0xff]
  %v90 = vld [vmem:[%s1 + $0x218] sm:$0xff]
  %v91 = vld [vmem:[%s1 + $0x220] sm:$0xff]
  %v92 = vld [vmem:[%s1 + $0x228] sm:$0xff]
  %v93 = vld [vmem:[%s1 + $0x230] sm:$0xff]
  %v94 = vld [vmem:[%s1 + $0x238] sm:$0xff]
  %v95 = vld [vmem:[%s1 + $0x240] sm:$0xff]
  %v96 = vld [vmem:[%s1 + $0x248] sm:$0xff]
  %v97 = vld [vmem:[%s1 + $0x250] sm:$0xff]
  %v98 = vld [vmem:[%s1 + $0x258] sm:$0xff]
  %v99 = vld [vmem:[%s1 + $0x260] sm:$0xff]
  %v100 = vld [vmem:[%s1 + $0x268] sm:$0xff]
  %v101 = vld [vmem:[%s1 + $0x270] sm:$0xff]
  %v102 = vld [vmem:[%s1 + $0x278] sm:$0xff]
  %v103 = vld [vmem:[%s1 + $0x280] sm:$0xff]
  %v104 = vld [vmem:[%s1 + $0x288] sm:$0xff]
  %v105 = vld [vmem:[%s1 + $0x290] sm:$0xff]
  %v106 = vld [vmem:[%s1 + $0x298] sm:$0xff]
  %v107 = vld [vmem:[%s1 + $0x2a0] sm:$0xff]
  %v108 = vld [vmem:[%s1 + $0x2a8] sm:$0xff]
  %v109 = vld [vmem:[%s1 + $0x2b0] sm:$0xff]
  %v110 = vld [vmem:[%s1 + $0x2b8] sm:$0xff]
  %v111 = vld [vmem:[%s1 + $0x2c0] sm:$0xff]
  %v112 = vld [vmem:[%s1 + $0x2c8] sm:$0xff]
  %v113 = vld [vmem:[%s1 + $0x2d0] sm:$0xff]
  %v114 = vld [vmem:[%s1 + $0x2d8] sm:$0xff]
  %v115 = vld [vmem:[%s1 + $0x2e0] sm:$0xff]
  %v116 = vld [vmem:[%s1 + $0x2e8] sm:$0xff]
  %v117 = vld [vmem:[%s1 + $0x2f0] sm:$0xff]
  %v118 = vld [vmem:[%s1 + $0x2f8] sm:$0xff]
  %v119 = vld [vmem:[%s1 + $0x300] sm:$0xff]
  %v120 = vld [vmem:[%s1 + $0x308] sm:$0xff]
  %v121 = vld [vmem:[%s1 + $0x310] sm:$0xff]
  %v122 = vld [vmem:[%s1 + $0x318] sm:$0xff]
  %v123 = vld [vmem:[%s1 + $0x320] sm:$0xff]
  %v124 = vld [vmem:[%s1 + $0x328] sm:$0xff]
  %v125 = vld [vmem:[%s1 + $0x330] sm:$0xff]
  %v126 = vld [vmem:[%s1 + $0x338] sm:$0xff]
  %v127 = vld [vmem:[%s1 + $0x340] sm:$0xff]
  %v128 = vld [vmem:[%s1 + $0x348] sm:$0xff]
  %v129 = vld [vmem:[%s1 + $0x350] sm:$0xff]
  %v130 = vld [vmem:[%s1 + $0x358] sm:$0xff]
  %v131 = vld [vmem:[%s1 + $0x360] sm:$0xff]
  %v132 = vld [vmem:[%s1 + $0x368] sm:$0xff]
  %v133 = vld [vmem:[%s1 + $0x370] sm:$0xff]
  %v134 = vld [vmem:[%s1 + $0x378] sm:$0xff]
  %v135 = vld [vmem:[%s1 + $0x380] sm:$0xff]
  %v136 = vld [vmem:[%s1 + $0x388] sm:$0xff]
  %v137 = vld [vmem:[%s1 + $0x390] sm:$0xff]
  %v138 = vld [vmem:[%s1 + $0x398] sm:$0xff]
  %v139 = vld [vmem:[%s1 + $0x3a0] sm:$0xff]
  %v140 = vld [vmem:[%s1 + $0x3a8] sm:$0xff]
  %v141 = vld [vmem:[%s1 + $0x3b0] sm:$0xff]
  %v142 = vld [vmem:[%s1 + $0x3b8] sm:$0xff]
  %v143 = vld [vmem:[%s1 + $0x3c0] sm:$0xff]
  %v144 = vld [vmem:[%s1 + $0x3c8] sm:$0xff]
  %v145 = vld [vmem:[%s1 + $0x3d0] sm:$0xff]
  %v146 = vld [vmem:[%s1 + $0x3d8] sm:$0xff]
  %v147 = vld [vmem:[%s1 + $0x3e0] sm:$0xff]
  %v148 = vld [vmem:[%s1 + $0x3e8] sm:$0xff]
  %v149 = vld [vmem:[%s1 + $0x3f0] sm:$0xff]
  %v150 = vld [vmem:[%s1 + $0x3f8] sm:$0xff]
  %v151 = vld [vmem:[%s1 + $0x400] sm:$0xff]
  %v152 = vld [vmem:[%s1 + $0x408] sm:$0xff]
  %v153 = vld [vmem:[%s1 + $0x410] sm:$0xff]
  %v154 = vld [vmem:[%s1 + $0x418] sm:$0xff]
  %v155 = vld [vmem:[%s1 + $0x420] sm:$0xff]
  %v156 = vld [vmem:[%s1 + $0x428] sm:$0xff]
  %v157 = vld [vmem:[%s1 + $0x430] sm:$0xff]
  %v158 = vld [vmem:[%s1 + $0x438] sm:$0xff]
  %v159 = vld [vmem:[%s1 + $0x440] sm:$0xff]
  %v160 = vld [vmem:[%s1 + $0x448] sm:$0xff]
  %v161 = vld [vmem:[%s1 + $0x450] sm:$0xff]
  %v162 = vld [vmem:[%s1 + $0x458] sm:$0xff]
  %v163 = vld [vmem:[%s1 + $0x460] sm:$0xff]
  %v164 = vld [vmem:[%s1 + $0x468] sm:$0xff]
  %v165 = vld [vmem:[%s1 + $0x470] sm:$0xff]
  %v166 = vld [vmem:[%s1 + $0x478] sm:$0xff]
  %v167 = vld [vmem:[%s1 + $0x480] sm:$0xff]
  %v168 = vld [vmem:[%s1 + $0x488] sm:$0xff]
  %v169 = vld [vmem:[%s1 + $0x490] sm:$0xff]
  %v170 = vld [vmem:[%s1 + $0x498] sm:$0xff]
  %v171 = vld [vmem:[%s1 + $0x4a0] sm:$0xff]
  %v172 = vld [vmem:[%s1 + $0x4a8] sm:$0xff]
  %v173 = vld [vmem:[%s1 + $0x4b0] sm:$0xff]
  %v174 = vld [vmem:[%s1 + $0x4b8] sm:$0xff]
  %v175 = vld [vmem:[%s1 + $0x4c0] sm:$0xff]
  %v176 = vld [vmem:[%s1 + $0x4c8] sm:$0xff]
  %v177 = vld [vmem:[%s1 + $0x4d0] sm:$0xff]
  %v178 = vld [vmem:[%s1 + $0x4d8] sm:$0xff]
  %v179 = vld [vmem:[%s1 + $0x4e0] sm:$0xff]
  %v180 = vld [vmem:[%s1 + $0x4e8] sm:$0xff]
  %v181 = vld [vmem:[%s1 + $0x4f0] sm:$0xff]
  %v182 = vld [vmem:[%s1 + $0x4f8] sm:$0xff]
  %v183 = vld [vmem:[%s1 + $0x500] sm:$0xff]
  %v184 = vld [vmem:[%s1 + $0x508] sm:$0xff]
  %v185 = vld [vmem:[%s1 + $0x510] sm:$0xff]
  %v186 = vld [vmem:[%s1 + $0x518] sm:$0xff]
  %v187 = vld [vmem:[%s1 + $0x520] sm:$0xff]
  %v188 = vld [vmem:[%s1 + $0x528] sm:$0xff]
  %v189 = vld [vmem:[%s1 + $0x530] sm:$0xff]
  %v190 = vld [vmem:[%s1 + $0x538] sm:$0xff]
  %v191 = vld [vmem:[%s1 + $0x540] sm:$0xff]
  %v192 = vld [vmem:[%s1 + $0x548] sm:$0xff]
  %v193 = vld [vmem:[%s1 + $0x550] sm:$0xff]
  %v194 = vld [vmem:[%s1 + $0x558] sm:$0xff]
  %v195 = vld [vmem:[%s1 + $0x560] sm:$0xff]
  %v196 = vld [vmem:[%s1 + $0x568] sm:$0xff]
  %v197 = vld [vmem:[%s1 + $0x570] sm:$0xff]
  %v198 = vld [vmem:[%s1 + $0x578] sm:$0xff]
  %v199 = vld [vmem:[%s1 + $0x580] sm:$0xff]
  %v200 = vld [vmem:[%s1 + $0x588] sm:$0xff]
  %v201 = vld [vmem:[%s1 + $0x590] sm:$0xff]
  %v202 = vld [vmem:[%s1 + $0x598] sm:$0xff]
  %v203 = vld [vmem:[%s1 + $0x5a0] sm:$0xff]
  %v204 = vld [vmem:[%s1 + $0x5a8] sm:$0xff]
  %v205 = vld [vmem:[%s1 + $0x5b0] sm:$0xff]
  %v206 = vld [vmem:[%s1 + $0x5b8] sm:$0xff]
  %v207 = vld [vmem:[%s1 + $0x5c0] sm:$0xff]
  %v208 = vld [vmem:[%s1 + $0x5c8] sm:$0xff]
  %v209 = vld [vmem:[%s1 + $0x5d0] sm:$0xff]
  %v210 = vld [vmem:[%s1 + $0x5d8] sm:$0xff]
  %v211 = vld [vmem:[%s1 + $0x5e0] sm:$0xff]
  %v212 = vld [vmem:[%s1 + $0x5e8] sm:$0xff]
  %v213 = vld [vmem:[%s1 + $0x5f0] sm:$0xff]
  %v214 = vld [vmem:[%s1 + $0x5f8] sm:$0xff]
  %v215 = vld [vmem:[%s1 + $0x600] sm:$0xff]
  %v216 = vld [vmem:[%s1 + $0x608] sm:$0xff]
  %v217 = vld [vmem:[%s1 + $0x610] sm:$0xff]
  %v218 = vld [vmem:[%s1 + $0x618] sm:$0xff]
  %v219 = vld [vmem:[%s1 + $0x620] sm:$0xff]
  %v220 = vld [vmem:[%s1 + $0x628] sm:$0xff]
  %v221 = vld [vmem:[%s1 + $0x630] sm:$0xff]
  %v222 = vld [vmem:[%s1 + $0x638] sm:$0xff]
  %v223 = vld [vmem:[%s1 + $0x640] sm:$0xff]
  %v224 = vld [vmem:[%s1 + $0x648] sm:$0xff]
  %v225 = vld [vmem:[%s1 + $0x650] sm:$0xff]
  %v226 = vld [vmem:[%s1 + $0x658] sm:$0xff]
  %v227 = vld [vmem:[%s1 + $0x660] sm:$0xff]
  %v228 = vld [vmem:[%s1 + $0x668] sm:$0xff]
  %v229 = vld [vmem:[%s1 + $0x670] sm:$0xff]
  %v230 = vld [vmem:[%s1 + $0x678] sm:$0xff]
  %v231 = vld [vmem:[%s1 + $0x680] sm:$0xff]
  %v232 = vld [vmem:[%s1 + $0x688] sm:$0xff]
  %v233 = vld [vmem:[%s1 + $0x690] sm:$0xff]
  %v234 = vld [vmem:[%s1 + $0x698] sm:$0xff]
  %v235 = vld [vmem:[%s1 + $0x6a0] sm:$0xff]
  %v236 = vld [vmem:[%s1 + $0x6a8] sm:$0xff]
  %v237 = vld [vmem:[%s1 + $0x6b0] sm:$0xff]
  %v238 = vld [vmem:[%s1 + $0x6b8] sm:$0xff]
  %v239 = vld [vmem:[%s1 + $0x6c0] sm:$0xff]
  %v240 = vld [vmem:[%s1 + $0x6c8] sm:$0xff]
  %v241 = vld [vmem:[%s1 + $0x6d0] sm:$0xff]
  %v242 = vld [vmem:[%s1 + $0x6d8] sm:$0xff]
  %v243 = vld [vmem:[%s1 + $0x6e0] sm:$0xff]
  %v244 = vld [vmem:[%s1 + $0x6e8] sm:$0xff]
  %v245 = vld [vmem:[%s1 + $0x6f0] sm:$0xff]
  %v246 = vld [vmem:[%s1 + $0x6f8] sm:$0xff]
  %v247 = vld [vmem:[%s1 + $0x700] sm:$0xff]
  %v248 = vld [vmem:[%s1 + $0x708] sm:$0xff]
  %v249 = vld [vmem:[%s1 + $0x710] sm:$0xff]
  %v250 = vld [vmem:[%s1 + $0x718] sm:$0xff]
  %v251 = vld [vmem:[%s1 + $0x720] sm:$0xff]
  %v252 = vld [vmem:[%s1 + $0x728] sm:$0xff]
  %v253 = vld [vmem:[%s1 + $0x730] sm:$0xff]
  %v254 = vld [vmem:[%s1 + $0x738] sm:$0xff]
  %v255 = vld [vmem:[%s1 + $0x740] sm:$0xff]
  %v256 = vld [vmem:[%s1 + $0x748] sm:$0xff]
  %v257 = vld [vmem:[%s1 + $0x750] sm:$0xff]
  %v258 = vld [vmem:[%s1 + $0x758] sm:$0xff]
  %v259 = vld [vmem:[%s1 + $0x760] sm:$0xff]
  %v260 = vld [vmem:[%s1 + $0x768] sm:$0xff]
  %v261 = vld [vmem:[%s1 + $0x770] sm:$0xff]
  %v262 = vld [vmem:[%s1 + $0x778] sm:$0xff]
  %v263 = vld [vmem:[%s1 + $0x780] sm:$0xff]
  %v264 = vld [vmem:[%s1 + $0x788] sm:$0xff]
  %v265 = vld [vmem:[%s1 + $0x790] sm:$0xff]
  %v266 = vld [vmem:[%s1 + $0x798] sm:$0xff]
  %v267 = vld [vmem:[%s1 + $0x7a0] sm:$0xff]
  %v268 = vld [vmem:[%s1 + $0x7a8] sm:$0xff]
  %v269 = vld [vmem:[%s1 + $0x7b0] sm:$0xff]
  %v270 = vld [vmem:[%s1 + $0x7b8] sm:$0xff]
  %v271 = vld [vmem:[%s1 + $0x7c0] sm:$0xff]
  %v272 = vld [vmem:[%s1 + $0x7c8] sm:$0xff]
  %v273 = vld [vmem:[%s1 + $0x7d0] sm:$0xff]
  %v274 = vld [vmem:[%s1 + $0x7d8] sm:$0xff]
  %v275 = vld [vmem:[%s1 + $0x7e0] sm:$0xff]
  %v276 = vld [vmem:[%s1 + $0x7e8] sm:$0xff]
  %v277 = vld [vmem:[%s1 + $0x7f0] sm:$0xff]
  %v278 = vld [vmem:[%s1 + $0x7f8] sm:$0xff]
  %v279 = vld [vmem:[%s1 + $0x800] sm:$0xff]
  %v280 = vld [vmem:[%s1 + $0x808] sm:$0xff]
  %v281 = vld [vmem:[%s1 + $0x810] sm:$0xff]
  %v282 = vld [vmem:[%s1 + $0x818] sm:$0xff]
  %v283 = vld [vmem:[%s1 + $0x820] sm:$0xff]
  %v284 = vld [vmem:[%s1 + $0x828] sm:$0xff]
  %v285 = vld [vmem:[%s1 + $0x830] sm:$0xff]
  %v286 = vld [vmem:[%s1 + $0x838] sm:$0xff]
  %v287 = vld [vmem:[%s1 + $0x840] sm:$0xff]
  %v288 = vld [vmem:[%s1 + $0x848] sm:$0xff]
  %v289 = vld [vmem:[%s1 + $0x850] sm:$0xff]
  %v290 = vld [vmem:[%s1 + $0x858] sm:$0xff]
  %v291 = vld [vmem:[%s1 + $0x860] sm:$0xff]
  %v292 = vld [vmem:[%s1 + $0x868] sm:$0xff]
  %v293 = vld [vmem:[%s1 + $0x870] sm:$0xff]
  %v294 = vld [vmem:[%s1 + $0x878] sm:$0xff]
  %v295 = vld [vmem:[%s1 + $0x880] sm:$0xff]
  %v296 = vld [vmem:[%s1 + $0x888] sm:$0xff]
  %v297 = vld [vmem:[%s1 + $0x890] sm:$0xff]
  %v298 = vld [vmem:[%s1 + $0x898] sm:$0xff]
  %v299 = vld [vmem:[%s1 + $0x8a0] sm:$0xff]
  %v300 = vld [vmem:[%s1 + $0x8a8] sm:$0xff]
  %v301 = vld [vmem:[%s1 + $0x8b0] sm:$0xff]
  %v302 = vld [vmem:[%s1 + $0x8b8] sm:$0xff]
  %v303 = vld [vmem:[%s1 + $0x8c0] sm:$0xff]
  %v304 = vld [vmem:[%s1 + $0x8c8] sm:$0xff]
  %v305 = vld [vmem:[%s1 + $0x8d0] sm:$0xff]
  %v306 = vld [vmem:[%s1 + $0x8d8] sm:$0xff]
  %v307 = vld [vmem:[%s1 + $0x8e0] sm:$0xff]
  %v308 = vld [vmem:[%s1 + $0x8e8] sm:$0xff]
  %v309 = vld [vmem:[%s1 + $0x8f0] sm:$0xff]
  %v310 = vld [vmem:[%s1 + $0x8f8] sm:$0xff]
  %v311 = vld [vmem:[%s2] sm:$0x3]
  %v313 = vlaneseq
  %v314 = vshrl.u32 %v313, 7
  %v315 = vsub.s32 0, %v314
  %v316 = vrot.slane %v311, %v315
  %v317 = vlaneseq
  %v318 = vshrl.u32 %v317, 7
  %v319 = vsub.s32 1, %v318
  %v320 = vrot.slane %v311, %v319
  %323 = vmatprep.subr.mxu0 %v24
  %324 = vmatpush1.msra.mxu0 %v23
  %325 = vmatprep.subr.mxu0 %v26
  %326 = vmatpush1.msra.mxu0 %v25
  %327 = vmatprep.subr.mxu0 %v28
  %328 = vmatpush1.msra.mxu0 %v27
  %329 = vmatprep.subr.mxu0 %v30
  %330 = vmatpush1.msra.mxu0 %v29
  %331 = vmatprep.subr.mxu0 %v32
  %332 = vmatpush1.msra.mxu0 %v31
  %333 = vmatprep.subr.mxu0 %v34
  %334 = vmatpush1.msra.mxu0 %v33
  %335 = vmatprep.subr.mxu0 %v36
  %336 = vmatpush1.msra.mxu0 %v35
  %337 = vmatprep.subr.mxu0 %v38
  %338 = vmatpush1.msra.mxu0 %v37
  %339 = vmatprep.subr.mxu0 %v40
  %340 = vmatpush1.msra.mxu0 %v39
  %341 = vmatprep.subr.mxu0 %v42
  %342 = vmatpush1.msra.mxu0 %v41
  %343 = vmatprep.subr.mxu0 %v44
  %344 = vmatpush1.msra.mxu0 %v43
  %345 = vmatprep.subr.mxu0 %v46
  %346 = vmatpush1.msra.mxu0 %v45
  %347 = vmatprep.subr.mxu0 %v48
  %348 = vmatpush1.msra.mxu0 %v47
  %349 = vmatprep.subr.mxu0 %v50
  %350 = vmatpush1.msra.mxu0 %v49
  %351 = vmatprep.subr.mxu0 %v52
  %352 = vmatpush1.msra.mxu0 %v51
  %353 = vmatprep.subr.mxu0 %v54
  %354 = vmatpush1.msra.mxu0 %v53
  %355 = vmatprep.subr.mxu0 %v56
  %356 = vmatpush1.msra.mxu0 %v55
  %357 = vmatprep.subr.mxu0 %v58
  %358 = vmatpush1.msra.mxu0 %v57
  %359 = vmatprep.subr.mxu0 %v60
  %360 = vmatpush1.msra.mxu0 %v59
  %361 = vmatprep.subr.mxu0 %v62
  %362 = vmatpush1.msra.mxu0 %v61
  %363 = vmatprep.subr.mxu0 %v64
  %364 = vmatpush1.msra.mxu0 %v63
  %365 = vmatprep.subr.mxu0 %v66
  %366 = vmatpush1.msra.mxu0 %v65
  %367 = vmatprep.subr.mxu0 %v68
  %368 = vmatpush1.msra.mxu0 %v67
  %369 = vmatprep.subr.mxu0 %v70
  %370 = vmatpush1.msra.mxu0 %v69
  %371 = vmatprep.subr.mxu0 %v72
  %372 = vmatpush1.msra.mxu0 %v71
  %373 = vmatprep.subr.mxu0 %v74
  %374 = vmatpush1.msra.mxu0 %v73
  %375 = vmatprep.subr.mxu0 %v76
  %376 = vmatpush1.msra.mxu0 %v75
  %377 = vmatprep.subr.mxu0 %v78
  %378 = vmatpush1.msra.mxu0 %v77
  %379 = vmatprep.subr.mxu0 %v80
  %380 = vmatpush1.msra.mxu0 %v79
  %381 = vmatprep.subr.mxu0 %v82
  %382 = vmatpush1.msra.mxu0 %v81
  %383 = vmatprep.subr.mxu0 %v84
  %384 = vmatpush1.msra.mxu0 %v83
  %385 = vmatprep.subr.mxu0 %v86
  %386 = vmatpush1.msra.mxu0 %v85
  %387 = vmatprep.mubr.f32.mxu0 %v15
  %388 = vmatmul.mubr.f32.gmra.mrb[0].mxu0 %v14
  %v389 = vpop.f32.mrb[0].mxu0
  %v390 = vadd.f32 %v316, %v389
  %v391 = vpop.f32.mrb[0].mxu0
  %v392 = vadd.f32 %v320, %v391
  %393 = vdwg.mxu0
  %394 = vmatprep.subr.mxu0 %v88
  %395 = vmatpush1.msra.mxu0 %v87
  %396 = vmatprep.subr.mxu0 %v90
  %397 = vmatpush1.msra.mxu0 %v89
  %398 = vmatprep.subr.mxu0 %v92
  %399 = vmatpush1.msra.mxu0 %v91
  %400 = vmatprep.subr.mxu0 %v94
  %401 = vmatpush1.msra.mxu0 %v93
  %402 = vmatprep.subr.mxu0 %v96
  %403 = vmatpush1.msra.mxu0 %v95
  %404 = vmatprep.subr.mxu0 %v98
  %405 = vmatpush1.msra.mxu0 %v97
  %406 = vmatprep.subr.mxu0 %v100
  %407 = vmatpush1.msra.mxu0 %v99
  %408 = vmatprep.subr.mxu0 %v102
  %409 = vmatpush1.msra.mxu0 %v101
  %410 = vmatprep.subr.mxu0 %v104
  %411 = vmatpush1.msra.mxu0 %v103
  %412 = vmatprep.subr.mxu0 %v106
  %413 = vmatpush1.msra.mxu0 %v105
  %414 = vmatprep.subr.mxu0 %v108
  %415 = vmatpush1.msra.mxu0 %v107
  %416 = vmatprep.subr.mxu0 %v110
  %417 = vmatpush1.msra.mxu0 %v109
  %418 = vmatprep.subr.mxu0 %v112
  %419 = vmatpush1.msra.mxu0 %v111
  %420 = vmatprep.subr.mxu0 %v114
  %421 = vmatpush1.msra.mxu0 %v113
  %422 = vmatprep.subr.mxu0 %v116
  %423 = vmatpush1.msra.mxu0 %v115
  %424 = vmatprep.subr.mxu0 %v118
  %425 = vmatpush1.msra.mxu0 %v117
  %426 = vmatprep.subr.mxu0 %v120
  %427 = vmatpush1.msra.mxu0 %v119
  %428 = vmatprep.subr.mxu0 %v122
  %429 = vmatpush1.msra.mxu0 %v121
  %430 = vmatprep.subr.mxu0 %v124
  %431 = vmatpush1.msra.mxu0 %v123
  %432 = vmatprep.subr.mxu0 %v126
  %433 = vmatpush1.msra.mxu0 %v125
  %434 = vmatprep.subr.mxu0 %v128
  %435 = vmatpush1.msra.mxu0 %v127
  %436 = vmatprep.subr.mxu0 %v130
  %437 = vmatpush1.msra.mxu0 %v129
  %438 = vmatprep.subr.mxu0 %v132
  %439 = vmatpush1.msra.mxu0 %v131
  %440 = vmatprep.subr.mxu0 %v134
  %441 = vmatpush1.msra.mxu0 %v133
  %442 = vmatprep.subr.mxu0 %v136
  %443 = vmatpush1.msra.mxu0 %v135
  %444 = vmatprep.subr.mxu0 %v138
  %445 = vmatpush1.msra.mxu0 %v137
  %446 = vmatprep.subr.mxu0 %v140
  %447 = vmatpush1.msra.mxu0 %v139
  %448 = vmatprep.subr.mxu0 %v142
  %449 = vmatpush1.msra.mxu0 %v141
  %450 = vmatprep.subr.mxu0 %v144
  %451 = vmatpush1.msra.mxu0 %v143
  %452 = vmatprep.subr.mxu0 %v146
  %453 = vmatpush1.msra.mxu0 %v145
  %454 = vmatprep.subr.mxu0 %v148
  %455 = vmatpush1.msra.mxu0 %v147
  %456 = vmatprep.subr.mxu0 %v150
  %457 = vmatpush1.msra.mxu0 %v149
  %458 = vmatprep.mubr.f32.mxu0 %v17
  %459 = vmatmul.mubr.f32.gmra.mrb[0].mxu0 %v16
  %v460 = vpop.f32.mrb[0].mxu0
  %v461 = vadd.f32 %v390, %v460
  %v462 = vpop.f32.mrb[0].mxu0
  %v463 = vadd.f32 %v392, %v462
  %464 = vdwg.mxu0
  %465 = vmatprep.subr.mxu0 %v152
  %466 = vmatpush1.msra.mxu0 %v151
  %467 = vmatprep.subr.mxu0 %v154
  %468 = vmatpush1.msra.mxu0 %v153
  %469 = vmatprep.subr.mxu0 %v156
  %470 = vmatpush1.msra.mxu0 %v155
  %471 = vmatprep.subr.mxu0 %v158
  %472 = vmatpush1.msra.mxu0 %v157
  %473 = vmatprep.subr.mxu0 %v160
  %474 = vmatpush1.msra.mxu0 %v159
  %475 = vmatprep.subr.mxu0 %v162
  %476 = vmatpush1.msra.mxu0 %v161
  %477 = vmatprep.subr.mxu0 %v164
  %478 = vmatpush1.msra.mxu0 %v163
  %479 = vmatprep.subr.mxu0 %v166
  %480 = vmatpush1.msra.mxu0 %v165
  %481 = vmatprep.subr.mxu0 %v168
  %482 = vmatpush1.msra.mxu0 %v167
  %483 = vmatprep.subr.mxu0 %v170
  %484 = vmatpush1.msra.mxu0 %v169
  %485 = vmatprep.subr.mxu0 %v172
  %486 = vmatpush1.msra.mxu0 %v171
  %487 = vmatprep.subr.mxu0 %v174
  %488 = vmatpush1.msra.mxu0 %v173
  %489 = vmatprep.subr.mxu0 %v176
  %490 = vmatpush1.msra.mxu0 %v175
  %491 = vmatprep.subr.mxu0 %v178
  %492 = vmatpush1.msra.mxu0 %v177
  %493 = vmatprep.subr.mxu0 %v180
  %494 = vmatpush1.msra.mxu0 %v179
  %495 = vmatprep.subr.mxu0 %v182
  %496 = vmatpush1.msra.mxu0 %v181
  %497 = vmatprep.subr.mxu0 %v184
  %498 = vmatpush1.msra.mxu0 %v183
  %499 = vmatprep.subr.mxu0 %v186
  %500 = vmatpush1.msra.mxu0 %v185
  %501 = vmatprep.subr.mxu0 %v188
  %502 = vmatpush1.msra.mxu0 %v187
  %503 = vmatprep.subr.mxu0 %v190
  %504 = vmatpush1.msra.mxu0 %v189
  %505 = vmatprep.subr.mxu0 %v192
  %506 = vmatpush1.msra.mxu0 %v191
  %507 = vmatprep.subr.mxu0 %v194
  %508 = vmatpush1.msra.mxu0 %v193
  %509 = vmatprep.subr.mxu0 %v196
  %510 = vmatpush1.msra.mxu0 %v195
  %511 = vmatprep.subr.mxu0 %v198
  %512 = vmatpush1.msra.mxu0 %v197
  %513 = vmatprep.subr.mxu0 %v200
  %514 = vmatpush1.msra.mxu0 %v199
  %515 = vmatprep.subr.mxu0 %v202
  %516 = vmatpush1.msra.mxu0 %v201
  %517 = vmatprep.subr.mxu0 %v204
  %518 = vmatpush1.msra.mxu0 %v203
  %519 = vmatprep.subr.mxu0 %v206
  %520 = vmatpush1.msra.mxu0 %v205
  %521 = vmatprep.subr.mxu0 %v208
  %522 = vmatpush1.msra.mxu0 %v207
  %523 = vmatprep.subr.mxu0 %v210
  %524 = vmatpush1.msra.mxu0 %v209
  %525 = vmatprep.subr.mxu0 %v212
  %526 = vmatpush1.msra.mxu0 %v211
  %527 = vmatprep.subr.mxu0 %v214
  %528 = vmatpush1.msra.mxu0 %v213
  %529 = vmatprep.mubr.f32.mxu0 %v19
  %530 = vmatmul.mubr.f32.gmra.mrb[0].mxu0 %v18
  %v531 = vpop.f32.mrb[0].mxu0
  %v532 = vadd.f32 %v461, %v531
  %v533 = vpop.f32.mrb[0].mxu0
  %v534 = vadd.f32 %v463, %v533
  %535 = vdwg.mxu0
  %536 = vmatprep.subr.mxu0 %v216
  %537 = vmatpush1.msra.mxu0 %v215
  %538 = vmatprep.subr.mxu0 %v218
  %539 = vmatpush1.msra.mxu0 %v217
  %540 = vmatprep.subr.mxu0 %v220
  %541 = vmatpush1.msra.mxu0 %v219
  %542 = vmatprep.subr.mxu0 %v222
  %543 = vmatpush1.msra.mxu0 %v221
  %544 = vmatprep.subr.mxu0 %v224
  %545 = vmatpush1.msra.mxu0 %v223
  %546 = vmatprep.subr.mxu0 %v226
  %547 = vmatpush1.msra.mxu0 %v225
  %548 = vmatprep.subr.mxu0 %v228
  %549 = vmatpush1.msra.mxu0 %v227
  %550 = vmatprep.subr.mxu0 %v230
  %551 = vmatpush1.msra.mxu0 %v229
  %552 = vmatprep.subr.mxu0 %v232
  %553 = vmatpush1.msra.mxu0 %v231
  %554 = vmatprep.subr.mxu0 %v234
  %555 = vmatpush1.msra.mxu0 %v233
  %556 = vmatprep.subr.mxu0 %v236
  %557 = vmatpush1.msra.mxu0 %v235
  %558 = vmatprep.subr.mxu0 %v238
  %559 = vmatpush1.msra.mxu0 %v237
  %560 = vmatprep.subr.mxu0 %v240
  %561 = vmatpush1.msra.mxu0 %v239
  %562 = vmatprep.subr.mxu0 %v242
  %563 = vmatpush1.msra.mxu0 %v241
  %564 = vmatprep.subr.mxu0 %v244
  %565 = vmatpush1.msra.mxu0 %v243
  %566 = vmatprep.subr.mxu0 %v246
  %567 = vmatpush1.msra.mxu0 %v245
  %568 = vmatprep.subr.mxu0 %v248
  %569 = vmatpush1.msra.mxu0 %v247
  %570 = vmatprep.subr.mxu0 %v250
  %571 = vmatpush1.msra.mxu0 %v249
  %572 = vmatprep.subr.mxu0 %v252
  %573 = vmatpush1.msra.mxu0 %v251
  %574 = vmatprep.subr.mxu0 %v254
  %575 = vmatpush1.msra.mxu0 %v253
  %576 = vmatprep.subr.mxu0 %v256
  %577 = vmatpush1.msra.mxu0 %v255
  %578 = vmatprep.subr.mxu0 %v258
  %579 = vmatpush1.msra.mxu0 %v257
  %580 = vmatprep.subr.mxu0 %v260
  %581 = vmatpush1.msra.mxu0 %v259
  %582 = vmatprep.subr.mxu0 %v262
  %583 = vmatpush1.msra.mxu0 %v261
  %584 = vmatprep.subr.mxu0 %v264
  %585 = vmatpush1.msra.mxu0 %v263
  %586 = vmatprep.subr.mxu0 %v266
  %587 = vmatpush1.msra.mxu0 %v265
  %588 = vmatprep.subr.mxu0 %v268
  %589 = vmatpush1.msra.mxu0 %v267
  %590 = vmatprep.subr.mxu0 %v270
  %591 = vmatpush1.msra.mxu0 %v269
  %592 = vmatprep.subr.mxu0 %v272
  %593 = vmatpush1.msra.mxu0 %v271
  %594 = vmatprep.subr.mxu0 %v274
  %595 = vmatpush1.msra.mxu0 %v273
  %596 = vmatprep.subr.mxu0 %v276
  %597 = vmatpush1.msra.mxu0 %v275
  %598 = vmatprep.subr.mxu0 %v278
  %599 = vmatpush1.msra.mxu0 %v277
  %600 = vmatprep.mubr.f32.mxu0 %v21
  %601 = vmatmul.mubr.f32.gmra.mrb[0].mxu0 %v20
  %v602 = vpop.f32.mrb[0].mxu0
  %v603 = vadd.f32 %v532, %v602
  %v604 = vpop.f32.mrb[0].mxu0
  %v605 = vadd.f32 %v534, %v604
  %606 = vdwg.mxu0
  %607 = vmatprep.subr.mxu0 %v280
  %608 = vmatpush1.msra.mxu0 %v279
  %609 = vmatprep.subr.mxu0 %v282
  %610 = vmatpush1.msra.mxu0 %v281
  %611 = vmatprep.subr.mxu0 %v284
  %612 = vmatpush1.msra.mxu0 %v283
  %613 = vmatprep.subr.mxu0 %v286
  %614 = vmatpush1.msra.mxu0 %v285
  %615 = vmatprep.subr.mxu0 %v288
  %616 = vmatpush1.msra.mxu0 %v287
  %617 = vmatprep.subr.mxu0 %v290
  %618 = vmatpush1.msra.mxu0 %v289
  %619 = vmatprep.subr.mxu0 %v292
  %620 = vmatpush1.msra.mxu0 %v291
  %621 = vmatprep.subr.mxu0 %v294
  %622 = vmatpush1.msra.mxu0 %v293
  %623 = vmatprep.subr.mxu0 %v296
  %624 = vmatpush1.msra.mxu0 %v295
  %625 = vmatprep.subr.mxu0 %v298
  %626 = vmatpush1.msra.mxu0 %v297
  %627 = vmatprep.subr.mxu0 %v300
  %628 = vmatpush1.msra.mxu0 %v299
  %629 = vmatprep.subr.mxu0 %v302
  %630 = vmatpush1.msra.mxu0 %v301
  %631 = vmatprep.subr.mxu0 %v304
  %632 = vmatpush1.msra.mxu0 %v303
  %633 = vmatprep.subr.mxu0 %v306
  %634 = vmatpush1.msra.mxu0 %v305
  %635 = vmatprep.subr.mxu0 %v308
  %636 = vmatpush1.msra.mxu0 %v307
  %637 = vmatprep.subr.mxu0 %v310
  %638 = vmatpush1.msra.mxu0 %v309
  %639 = vmatprep.subr.mxu0 0.0
  %640 = vmatpush1.msra.mxu0 0.0
  %641 = vmatprep.subr.mxu0 0.0
  %642 = vmatpush1.msra.mxu0 0.0
  %643 = vmatprep.subr.mxu0 0.0
  %644 = vmatpush1.msra.mxu0 0.0
  %645 = vmatprep.subr.mxu0 0.0
  %646 = vmatpush1.msra.mxu0 0.0
  %647 = vmatprep.subr.mxu0 0.0
  %648 = vmatpush1.msra.mxu0 0.0
  %649 = vmatprep.subr.mxu0 0.0
  %650 = vmatpush1.msra.mxu0 0.0
  %651 = vmatprep.subr.mxu0 0.0
  %652 = vmatpush1.msra.mxu0 0.0
  %653 = vmatprep.subr.mxu0 0.0
  %654 = vmatpush1.msra.mxu0 0.0
  %655 = vmatprep.subr.mxu0 0.0
  %656 = vmatpush1.msra.mxu0 0.0
  %657 = vmatprep.subr.mxu0 0.0
  %658 = vmatpush1.msra.mxu0 0.0
  %659 = vmatprep.subr.mxu0 0.0
  %660 = vmatpush1.msra.mxu0 0.0
  %661 = vmatprep.subr.mxu0 0.0
  %662 = vmatpush1.msra.mxu0 0.0
  %663 = vmatprep.subr.mxu0 0.0
  %664 = vmatpush1.msra.mxu0 0.0
  %665 = vmatprep.subr.mxu0 0.0
  %666 = vmatpush1.msra.mxu0 0.0
  %667 = vmatprep.subr.mxu0 0.0
  %668 = vmatpush1.msra.mxu0 0.0
  %669 = vmatprep.subr.mxu0 0.0
  %670 = vmatpush1.msra.mxu0 0.0
  %671 = vmatprep.mubr.f32.mxu0 0.0
  %672 = vmatmul.mubr.f32.gmra.mrb[0].mxu0 %v22
  %v673 = vpop.f32.mrb[0].mxu0
  %v674 = vadd.f32 %v603, %v673
  %v675 = vpop.f32.mrb[0].mxu0
  %v676 = vadd.f32 %v605, %v675
  %677 = vdwg.mxu0
  %v678 = vmax.f32 %v674, 0.0
  %v679 = vmax.f32 %v676, 0.0
  %680 = vst [vmem:[%s3] sm:$0xff] %v678
  %681 = vst [vmem:[%s3 + $0x8] sm:$0xff] %v679
  // Predicated region
  $region14: #{autoencoder_6_forward.10} parent=0 // pred_check
    _
  $region15: #{autoencoder_6_forward.10} parent=0 // pred_check_branch
    %683 = sbr.rel (0) target = $region17
  $region16: #{autoencoder_6_forward.10} parent=0 // pred_region
    _
  $region17: #{autoencoder_6_forward.10} parent=0 // pred_fallthru
    _
  // Predicated region
  $region18: #{autoencoder_6_forward.10} parent=0 // pred_check
    _
  $region19: #{autoencoder_6_forward.10} parent=0 // pred_check_branch
    %685 = sbr.rel (0) target = $region21
  $region20: #{autoencoder_6_forward.10} parent=0 // pred_region
    _
  $region21: #{autoencoder_6_forward.10} parent=0 // pred_fallthru
    _

// kernel: autoencoder_6_forward.11
$region0: #{autoencoder_6_forward.11}
  #allocation0 [shape = 'u32[]', space=smem, size = 0x4, offset = 0x4, fixed_abs, tag = 'smem constant byte address 0x4 - core index']
  #allocation1 [shape = 'u32[144,128]{1,0:T(1,128)}', space=vmem, size = 0x12000, scoped, tag = 'internal scratch']
  %s0 = inlined_call_operand.vmem [shape: f32[8,2304], index: 0, kind: input, shape index: {}]
  %s1 = inlined_call_operand.vmem [shape: f32[2304,256], index: 1, kind: input, shape index: {}]
  %s2 = inlined_call_operand.vmem [shape: f32[1,256], index: 2, kind: input, shape index: {}]
  %s3 = inlined_call_operand.vmem [shape: f32[8,256], index: 3, kind: output, shape index: {}]
  %s4 = sld [smem:[#allocation0]]
  $region22: #{autoencoder_6_forward.11} parent=0
    _
  %s6 = ssub.s32 1, %s4
  %s7 = scalar_select 0, %s6, %s4
  // Predicated region
  $region2: #{autoencoder_6_forward.11} parent=0 // pred_check
    _
  $region3: #{autoencoder_6_forward.11} parent=0 // pred_check_branch
    %9 = sbr.rel (0) target = $region5
  $region4: #{autoencoder_6_forward.11} parent=0 // pred_region
    _
  $region5: #{autoencoder_6_forward.11} parent=0 // pred_fallthru
    _
  // Predicated region
  $region6: #{autoencoder_6_forward.11} parent=0 // pred_check
    _
  $region7: #{autoencoder_6_forward.11} parent=0 // pred_check_branch
    %11 = sbr.rel (0) target = $region9
  $region8: #{autoencoder_6_forward.11} parent=0 // pred_region
    _
  $region9: #{autoencoder_6_forward.11} parent=0 // pred_fallthru
    _
  // Predicated region
  $region10: #{autoencoder_6_forward.11} parent=0 // pred_check
    _
  $region11: #{autoencoder_6_forward.11} parent=0 // pred_check_branch
    %13 = sbr.rel (0) target = $region13
  $region12: #{autoencoder_6_forward.11} parent=0 // pred_region
    _
  $region13: #{autoencoder_6_forward.11} parent=0 // pred_fallthru
    _
  %v14 = vld [vmem:[%s0] sm:$0xff]
  %v15 = vld [vmem:[%s0 + $0x8] sm:$0xff]
  %v16 = vld [vmem:[%s0 + $0x10] sm:$0xff]
  %v17 = vld [vmem:[%s0 + $0x18] sm:$0xff]
  %v18 = vld [vmem:[%s0 + $0x20] sm:$0xff]
  %v19 = vld [vmem:[%s0 + $0x28] sm:$0xff]
  %v20 = vld [vmem:[%s0 + $0x30] sm:$0xff]
  %v21 = vld [vmem:[%s0 + $0x38] sm:$0xff]
  %v22 = vld [vmem:[%s0 + $0x40] sm:$0xff]
  %v23 = vld [vmem:[%s0 + $0x48] sm:$0xff]
  %v24 = vld [vmem:[%s0 + $0x50] sm:$0xff]
  %v25 = vld [vmem:[%s0 + $0x58] sm:$0xff]
  %v26 = vld [vmem:[%s0 + $0x60] sm:$0xff]
  %v27 = vld [vmem:[%s0 + $0x68] sm:$0xff]
  %v28 = vld [vmem:[%s0 + $0x70] sm:$0xff]
  %v29 = vld [vmem:[%s0 + $0x78] sm:$0xff]
  %v30 = vld [vmem:[%s0 + $0x80] sm:$0xff]
  %v31 = vld [vmem:[%s0 + $0x88] sm:$0xff]
  %v32 = vld [vmem:[%s1] sm:$0xff]
  %v33 = vld [vmem:[%s1 + $0x8] sm:$0xff]
  %v34 = vld [vmem:[%s1 + $0x10] sm:$0xff]
  %v35 = vld [vmem:[%s1 + $0x18] sm:$0xff]
  %v36 = vld [vmem:[%s1 + $0x20] sm:$0xff]
  %v37 = vld [vmem:[%s1 + $0x28] sm:$0xff]
  %v38 = vld [vmem:[%s1 + $0x30] sm:$0xff]
  %v39 = vld [vmem:[%s1 + $0x38] sm:$0xff]
  %v40 = vld [vmem:[%s1 + $0x40] sm:$0xff]
  %v41 = vld [vmem:[%s1 + $0x48] sm:$0xff]
  %v42 = vld [vmem:[%s1 + $0x50] sm:$0xff]
  %v43 = vld [vmem:[%s1 + $0x58] sm:$0xff]
  %v44 = vld [vmem:[%s1 + $0x60] sm:$0xff]
  %v45 = vld [vmem:[%s1 + $0x68] sm:$0xff]
  %v46 = vld [vmem:[%s1 + $0x70] sm:$0xff]
  %v47 = vld [vmem:[%s1 + $0x78] sm:$0xff]
  %v48 = vld [vmem:[%s1 + $0x80] sm:$0xff]
  %v49 = vld [vmem:[%s1 + $0x88] sm:$0xff]
  %v50 = vld [vmem:[%s1 + $0x90] sm:$0xff]
  %v51 = vld [vmem:[%s1 + $0x98] sm:$0xff]
  %v52 = vld [vmem:[%s1 + $0xa0] sm:$0xff]
  %v53 = vld [vmem:[%s1 + $0xa8] sm:$0xff]
  %v54 = vld [vmem:[%s1 + $0xb0] sm:$0xff]
  %v55 = vld [vmem:[%s1 + $0xb8] sm:$0xff]
  %v56 = vld [vmem:[%s1 + $0xc0] sm:$0xff]
  %v57 = vld [vmem:[%s1 + $0xc8] sm:$0xff]
  %v58 = vld [vmem:[%s1 + $0xd0] sm:$0xff]
  %v59 = vld [vmem:[%s1 + $0xd8] sm:$0xff]
  %v60 = vld [vmem:[%s1 + $0xe0] sm:$0xff]
  %v61 = vld [vmem:[%s1 + $0xe8] sm:$0xff]
  %v62 = vld [vmem:[%s1 + $0xf0] sm:$0xff]
  %v63 = vld [vmem:[%s1 + $0xf8] sm:$0xff]
  %v64 = vld [vmem:[%s1 + $0x100] sm:$0xff]
  %v65 = vld [vmem:[%s1 + $0x108] sm:$0xff]
  %v66 = vld [vmem:[%s1 + $0x110] sm:$0xff]
  %v67 = vld [vmem:[%s1 + $0x118] sm:$0xff]
  %v68 = vld [vmem:[%s1 + $0x120] sm:$0xff]
  %v69 = vld [vmem:[%s1 + $0x128] sm:$0xff]
  %v70 = vld [vmem:[%s1 + $0x130] sm:$0xff]
  %v71 = vld [vmem:[%s1 + $0x138] sm:$0xff]
  %v72 = vld [vmem:[%s1 + $0x140] sm:$0xff]
  %v73 = vld [vmem:[%s1 + $0x148] sm:$0xff]
  %v74 = vld [vmem:[%s1 + $0x150] sm:$0xff]
  %v75 = vld [vmem:[%s1 + $0x158] sm:$0xff]
  %v76 = vld [vmem:[%s1 + $0x160] sm:$0xff]
  %v77 = vld [vmem:[%s1 + $0x168] sm:$0xff]
  %v78 = vld [vmem:[%s1 + $0x170] sm:$0xff]
  %v79 = vld [vmem:[%s1 + $0x178] sm:$0xff]
  %v80 = vld [vmem:[%s1 + $0x180] sm:$0xff]
  %v81 = vld [vmem:[%s1 + $0x188] sm:$0xff]
  %v82 = vld [vmem:[%s1 + $0x190] sm:$0xff]
  %v83 = vld [vmem:[%s1 + $0x198] sm:$0xff]
  %v84 = vld [vmem:[%s1 + $0x1a0] sm:$0xff]
  %v85 = vld [vmem:[%s1 + $0x1a8] sm:$0xff]
  %v86 = vld [vmem:[%s1 + $0x1b0] sm:$0xff]
  %v87 = vld [vmem:[%s1 + $0x1b8] sm:$0xff]
  %v88 = vld [vmem:[%s1 + $0x1c0] sm:$0xff]
  %v89 = vld [vmem:[%s1 + $0x1c8] sm:$0xff]
  %v90 = vld [vmem:[%s1 + $0x1d0] sm:$0xff]
  %v91 = vld [vmem:[%s1 + $0x1d8] sm:$0xff]
  %v92 = vld [vmem:[%s1 + $0x1e0] sm:$0xff]
  %v93 = vld [vmem:[%s1 + $0x1e8] sm:$0xff]
  %v94 = vld [vmem:[%s1 + $0x1f0] sm:$0xff]
  %v95 = vld [vmem:[%s1 + $0x1f8] sm:$0xff]
  %v96 = vld [vmem:[%s1 + $0x200] sm:$0xff]
  %v97 = vld [vmem:[%s1 + $0x208] sm:$0xff]
  %v98 = vld [vmem:[%s1 + $0x210] sm:$0xff]
  %v99 = vld [vmem:[%s1 + $0x218] sm:$0xff]
  %v100 = vld [vmem:[%s1 + $0x220] sm:$0xff]
  %v101 = vld [vmem:[%s1 + $0x228] sm:$0xff]
  %v102 = vld [vmem:[%s1 + $0x230] sm:$0xff]
  %v103 = vld [vmem:[%s1 + $0x238] sm:$0xff]
  %v104 = vld [vmem:[%s1 + $0x240] sm:$0xff]
  %v105 = vld [vmem:[%s1 + $0x248] sm:$0xff]
  %v106 = vld [vmem:[%s1 + $0x250] sm:$0xff]
  %v107 = vld [vmem:[%s1 + $0x258] sm:$0xff]
  %v108 = vld [vmem:[%s1 + $0x260] sm:$0xff]
  %v109 = vld [vmem:[%s1 + $0x268] sm:$0xff]
  %v110 = vld [vmem:[%s1 + $0x270] sm:$0xff]
  %v111 = vld [vmem:[%s1 + $0x278] sm:$0xff]
  %v112 = vld [vmem:[%s1 + $0x280] sm:$0xff]
  %v113 = vld [vmem:[%s1 + $0x288] sm:$0xff]
  %v114 = vld [vmem:[%s1 + $0x290] sm:$0xff]
  %v115 = vld [vmem:[%s1 + $0x298] sm:$0xff]
  %v116 = vld [vmem:[%s1 + $0x2a0] sm:$0xff]
  %v117 = vld [vmem:[%s1 + $0x2a8] sm:$0xff]
  %v118 = vld [vmem:[%s1 + $0x2b0] sm:$0xff]
  %v119 = vld [vmem:[%s1 + $0x2b8] sm:$0xff]
  %v120 = vld [vmem:[%s1 + $0x2c0] sm:$0xff]
  %v121 = vld [vmem:[%s1 + $0x2c8] sm:$0xff]
  %v122 = vld [vmem:[%s1 + $0x2d0] sm:$0xff]
  %v123 = vld [vmem:[%s1 + $0x2d8] sm:$0xff]
  %v124 = vld [vmem:[%s1 + $0x2e0] sm:$0xff]
  %v125 = vld [vmem:[%s1 + $0x2e8] sm:$0xff]
  %v126 = vld [vmem:[%s1 + $0x2f0] sm:$0xff]
  %v127 = vld [vmem:[%s1 + $0x2f8] sm:$0xff]
  %v128 = vld [vmem:[%s1 + $0x300] sm:$0xff]
  %v129 = vld [vmem:[%s1 + $0x308] sm:$0xff]
  %v130 = vld [vmem:[%s1 + $0x310] sm:$0xff]
  %v131 = vld [vmem:[%s1 + $0x318] sm:$0xff]
  %v132 = vld [vmem:[%s1 + $0x320] sm:$0xff]
  %v133 = vld [vmem:[%s1 + $0x328] sm:$0xff]
  %v134 = vld [vmem:[%s1 + $0x330] sm:$0xff]
  %v135 = vld [vmem:[%s1 + $0x338] sm:$0xff]
  %v136 = vld [vmem:[%s1 + $0x340] sm:$0xff]
  %v137 = vld [vmem:[%s1 + $0x348] sm:$0xff]
  %v138 = vld [vmem:[%s1 + $0x350] sm:$0xff]
  %v139 = vld [vmem:[%s1 + $0x358] sm:$0xff]
  %v140 = vld [vmem:[%s1 + $0x360] sm:$0xff]
  %v141 = vld [vmem:[%s1 + $0x368] sm:$0xff]
  %v142 = vld [vmem:[%s1 + $0x370] sm:$0xff]
  %v143 = vld [vmem:[%s1 + $0x378] sm:$0xff]
  %v144 = vld [vmem:[%s1 + $0x380] sm:$0xff]
  %v145 = vld [vmem:[%s1 + $0x388] sm:$0xff]
  %v146 = vld [vmem:[%s1 + $0x390] sm:$0xff]
  %v147 = vld [vmem:[%s1 + $0x398] sm:$0xff]
  %v148 = vld [vmem:[%s1 + $0x3a0] sm:$0xff]
  %v149 = vld [vmem:[%s1 + $0x3a8] sm:$0xff]
  %v150 = vld [vmem:[%s1 + $0x3b0] sm:$0xff]
  %v151 = vld [vmem:[%s1 + $0x3b8] sm:$0xff]
  %v152 = vld [vmem:[%s1 + $0x3c0] sm:$0xff]
  %v153 = vld [vmem:[%s1 + $0x3c8] sm:$0xff]
  %v154 = vld [vmem:[%s1 + $0x3d0] sm:$0xff]
  %v155 = vld [vmem:[%s1 + $0x3d8] sm:$0xff]
  %v156 = vld [vmem:[%s1 + $0x3e0] sm:$0xff]
  %v157 = vld [vmem:[%s1 + $0x3e8] sm:$0xff]
  %v158 = vld [vmem:[%s1 + $0x3f0] sm:$0xff]
  %v159 = vld [vmem:[%s1 + $0x3f8] sm:$0xff]
  %v160 = vld [vmem:[%s1 + $0x400] sm:$0xff]
  %v161 = vld [vmem:[%s1 + $0x408] sm:$0xff]
  %v162 = vld [vmem:[%s1 + $0x410] sm:$0xff]
  %v163 = vld [vmem:[%s1 + $0x418] sm:$0xff]
  %v164 = vld [vmem:[%s1 + $0x420] sm:$0xff]
  %v165 = vld [vmem:[%s1 + $0x428] sm:$0xff]
  %v166 = vld [vmem:[%s1 + $0x430] sm:$0xff]
  %v167 = vld [vmem:[%s1 + $0x438] sm:$0xff]
  %v168 = vld [vmem:[%s1 + $0x440] sm:$0xff]
  %v169 = vld [vmem:[%s1 + $0x448] sm:$0xff]
  %v170 = vld [vmem:[%s1 + $0x450] sm:$0xff]
  %v171 = vld [vmem:[%s1 + $0x458] sm:$0xff]
  %v172 = vld [vmem:[%s1 + $0x460] sm:$0xff]
  %v173 = vld [vmem:[%s1 + $0x468] sm:$0xff]
  %v174 = vld [vmem:[%s1 + $0x470] sm:$0xff]
  %v175 = vld [vmem:[%s1 + $0x478] sm:$0xff]
  %v176 = vld [vmem:[%s1 + $0x480] sm:$0xff]
  %v177 = vld [vmem:[%s1 + $0x488] sm:$0xff]
  %v178 = vld [vmem:[%s1 + $0x490] sm:$0xff]
  %v179 = vld [vmem:[%s1 + $0x498] sm:$0xff]
  %v180 = vld [vmem:[%s1 + $0x4a0] sm:$0xff]
  %v181 = vld [vmem:[%s1 + $0x4a8] sm:$0xff]
  %v182 = vld [vmem:[%s1 + $0x4b0] sm:$0xff]
  %v183 = vld [vmem:[%s1 + $0x4b8] sm:$0xff]
  %v184 = vld [vmem:[%s1 + $0x4c0] sm:$0xff]
  %v185 = vld [vmem:[%s1 + $0x4c8] sm:$0xff]
  %v186 = vld [vmem:[%s1 + $0x4d0] sm:$0xff]
  %v187 = vld [vmem:[%s1 + $0x4d8] sm:$0xff]
  %v188 = vld [vmem:[%s1 + $0x4e0] sm:$0xff]
  %v189 = vld [vmem:[%s1 + $0x4e8] sm:$0xff]
  %v190 = vld [vmem:[%s1 + $0x4f0] sm:$0xff]
  %v191 = vld [vmem:[%s1 + $0x4f8] sm:$0xff]
  %v192 = vld [vmem:[%s1 + $0x500] sm:$0xff]
  %v193 = vld [vmem:[%s1 + $0x508] sm:$0xff]
  %v194 = vld [vmem:[%s1 + $0x510] sm:$0xff]
  %v195 = vld [vmem:[%s1 + $0x518] sm:$0xff]
  %v196 = vld [vmem:[%s1 + $0x520] sm:$0xff]
  %v197 = vld [vmem:[%s1 + $0x528] sm:$0xff]
  %v198 = vld [vmem:[%s1 + $0x530] sm:$0xff]
  %v199 = vld [vmem:[%s1 + $0x538] sm:$0xff]
  %v200 = vld [vmem:[%s1 + $0x540] sm:$0xff]
  %v201 = vld [vmem:[%s1 + $0x548] sm:$0xff]
  %v202 = vld [vmem:[%s1 + $0x550] sm:$0xff]
  %v203 = vld [vmem:[%s1 + $0x558] sm:$0xff]
  %v204 = vld [vmem:[%s1 + $0x560] sm:$0xff]
  %v205 = vld [vmem:[%s1 + $0x568] sm:$0xff]
  %v206 = vld [vmem:[%s1 + $0x570] sm:$0xff]
  %v207 = vld [vmem:[%s1 + $0x578] sm:$0xff]
  %v208 = vld [vmem:[%s1 + $0x580] sm:$0xff]
  %v209 = vld [vmem:[%s1 + $0x588] sm:$0xff]
  %v210 = vld [vmem:[%s1 + $0x590] sm:$0xff]
  %v211 = vld [vmem:[%s1 + $0x598] sm:$0xff]
  %v212 = vld [vmem:[%s1 + $0x5a0] sm:$0xff]
  %v213 = vld [vmem:[%s1 + $0x5a8] sm:$0xff]
  %v214 = vld [vmem:[%s1 + $0x5b0] sm:$0xff]
  %v215 = vld [vmem:[%s1 + $0x5b8] sm:$0xff]
  %v216 = vld [vmem:[%s1 + $0x5c0] sm:$0xff]
  %v217 = vld [vmem:[%s1 + $0x5c8] sm:$0xff]
  %v218 = vld [vmem:[%s1 + $0x5d0] sm:$0xff]
  %v219 = vld [vmem:[%s1 + $0x5d8] sm:$0xff]
  %v220 = vld [vmem:[%s1 + $0x5e0] sm:$0xff]
  %v221 = vld [vmem:[%s1 + $0x5e8] sm:$0xff]
  %v222 = vld [vmem:[%s1 + $0x5f0] sm:$0xff]
  %v223 = vld [vmem:[%s1 + $0x5f8] sm:$0xff]
  %v224 = vld [vmem:[%s1 + $0x600] sm:$0xff]
  %v225 = vld [vmem:[%s1 + $0x608] sm:$0xff]
  %v226 = vld [vmem:[%s1 + $0x610] sm:$0xff]
  %v227 = vld [vmem:[%s1 + $0x618] sm:$0xff]
  %v228 = vld [vmem:[%s1 + $0x620] sm:$0xff]
  %v229 = vld [vmem:[%s1 + $0x628] sm:$0xff]
  %v230 = vld [vmem:[%s1 + $0x630] sm:$0xff]
  %v231 = vld [vmem:[%s1 + $0x638] sm:$0xff]
  %v232 = vld [vmem:[%s1 + $0x640] sm:$0xff]
  %v233 = vld [vmem:[%s1 + $0x648] sm:$0xff]
  %v234 = vld [vmem:[%s1 + $0x650] sm:$0xff]
  %v235 = vld [vmem:[%s1 + $0x658] sm:$0xff]
  %v236 = vld [vmem:[%s1 + $0x660] sm:$0xff]
  %v237 = vld [vmem:[%s1 + $0x668] sm:$0xff]
  %v238 = vld [vmem:[%s1 + $0x670] sm:$0xff]
  %v239 = vld [vmem:[%s1 + $0x678] sm:$0xff]
  %v240 = vld [vmem:[%s1 + $0x680] sm:$0xff]
  %v241 = vld [vmem:[%s1 + $0x688] sm:$0xff]
  %v242 = vld [vmem:[%s1 + $0x690] sm:$0xff]
  %v243 = vld [vmem:[%s1 + $0x698] sm:$0xff]
  %v244 = vld [vmem:[%s1 + $0x6a0] sm:$0xff]
  %v245 = vld [vmem:[%s1 + $0x6a8] sm:$0xff]
  %v246 = vld [vmem:[%s1 + $0x6b0] sm:$0xff]
  %v247 = vld [vmem:[%s1 + $0x6b8] sm:$0xff]
  %v248 = vld [vmem:[%s1 + $0x6c0] sm:$0xff]
  %v249 = vld [vmem:[%s1 + $0x6c8] sm:$0xff]
  %v250 = vld [vmem:[%s1 + $0x6d0] sm:$0xff]
  %v251 = vld [vmem:[%s1 + $0x6d8] sm:$0xff]
  %v252 = vld [vmem:[%s1 + $0x6e0] sm:$0xff]
  %v253 = vld [vmem:[%s1 + $0x6e8] sm:$0xff]
  %v254 = vld [vmem:[%s1 + $0x6f0] sm:$0xff]
  %v255 = vld [vmem:[%s1 + $0x6f8] sm:$0xff]
  %v256 = vld [vmem:[%s1 + $0x700] sm:$0xff]
  %v257 = vld [vmem:[%s1 + $0x708] sm:$0xff]
  %v258 = vld [vmem:[%s1 + $0x710] sm:$0xff]
  %v259 = vld [vmem:[%s1 + $0x718] sm:$0xff]
  %v260 = vld [vmem:[%s1 + $0x720] sm:$0xff]
  %v261 = vld [vmem:[%s1 + $0x728] sm:$0xff]
  %v262 = vld [vmem:[%s1 + $0x730] sm:$0xff]
  %v263 = vld [vmem:[%s1 + $0x738] sm:$0xff]
  %v264 = vld [vmem:[%s1 + $0x740] sm:$0xff]
  %v265 = vld [vmem:[%s1 + $0x748] sm:$0xff]
  %v266 = vld [vmem:[%s1 + $0x750] sm:$0xff]
  %v267 = vld [vmem:[%s1 + $0x758] sm:$0xff]
  %v268 = vld [vmem:[%s1 + $0x760] sm:$0xff]
  %v269 = vld [vmem:[%s1 + $0x768] sm:$0xff]
  %v270 = vld [vmem:[%s1 + $0x770] sm:$0xff]
  %v271 = vld [vmem:[%s1 + $0x778] sm:$0xff]
  %v272 = vld [vmem:[%s1 + $0x780] sm:$0xff]
  %v273 = vld [vmem:[%s1 + $0x788] sm:$0xff]
  %v274 = vld [vmem:[%s1 + $0x790] sm:$0xff]
  %v275 = vld [vmem:[%s1 + $0x798] sm:$0xff]
  %v276 = vld [vmem:[%s1 + $0x7a0] sm:$0xff]
  %v277 = vld [vmem:[%s1 + $0x7a8] sm:$0xff]
  %v278 = vld [vmem:[%s1 + $0x7b0] sm:$0xff]
  %v279 = vld [vmem:[%s1 + $0x7b8] sm:$0xff]
  %v280 = vld [vmem:[%s1 + $0x7c0] sm:$0xff]
  %v281 = vld [vmem:[%s1 + $0x7c8] sm:$0xff]
  %v282 = vld [vmem:[%s1 + $0x7d0] sm:$0xff]
  %v283 = vld [vmem:[%s1 + $0x7d8] sm:$0xff]
  %v284 = vld [vmem:[%s1 + $0x7e0] sm:$0xff]
  %v285 = vld [vmem:[%s1 + $0x7e8] sm:$0xff]
  %v286 = vld [vmem:[%s1 + $0x7f0] sm:$0xff]
  %v287 = vld [vmem:[%s1 + $0x7f8] sm:$0xff]
  %v288 = vld [vmem:[%s1 + $0x800] sm:$0xff]
  %v289 = vld [vmem:[%s1 + $0x808] sm:$0xff]
  %v290 = vld [vmem:[%s1 + $0x810] sm:$0xff]
  %v291 = vld [vmem:[%s1 + $0x818] sm:$0xff]
  %v292 = vld [vmem:[%s1 + $0x820] sm:$0xff]
  %v293 = vld [vmem:[%s1 + $0x828] sm:$0xff]
  %v294 = vld [vmem:[%s1 + $0x830] sm:$0xff]
  %v295 = vld [vmem:[%s1 + $0x838] sm:$0xff]
  %v296 = vld [vmem:[%s1 + $0x840] sm:$0xff]
  %v297 = vld [vmem:[%s1 + $0x848] sm:$0xff]
  %v298 = vld [vmem:[%s1 + $0x850] sm:$0xff]
  %v299 = vld [vmem:[%s1 + $0x858] sm:$0xff]
  %v300 = vld [vmem:[%s1 + $0x860] sm:$0xff]
  %v301 = vld [vmem:[%s1 + $0x868] sm:$0xff]
  %v302 = vld [vmem:[%s1 + $0x870] sm:$0xff]
  %v303 = vld [vmem:[%s1 + $0x878] sm:$0xff]
  %v304 = vld [vmem:[%s1 + $0x880] sm:$0xff]
  %v305 = vld [vmem:[%s1 + $0x888] sm:$0xff]
  %v306 = vld [vmem:[%s1 + $0x890] sm:$0xff]
  %v307 = vld [vmem:[%s1 + $0x898] sm:$0xff]
  %v308 = vld [vmem:[%s1 + $0x8a0] sm:$0xff]
  %v309 = vld [vmem:[%s1 + $0x8a8] sm:$0xff]
  %v310 = vld [vmem:[%s1 + $0x8b0] sm:$0xff]
  %v311 = vld [vmem:[%s1 + $0x8b8] sm:$0xff]
  %v312 = vld [vmem:[%s1 + $0x8c0] sm:$0xff]
  %v313 = vld [vmem:[%s1 + $0x8c8] sm:$0xff]
  %v314 = vld [vmem:[%s1 + $0x8d0] sm:$0xff]
  %v315 = vld [vmem:[%s1 + $0x8d8] sm:$0xff]
  %v316 = vld [vmem:[%s1 + $0x8e0] sm:$0xff]
  %v317 = vld [vmem:[%s1 + $0x8e8] sm:$0xff]
  %v318 = vld [vmem:[%s1 + $0x8f0] sm:$0xff]
  %v319 = vld [vmem:[%s1 + $0x8f8] sm:$0xff]
  %v320 = vld [vmem:[%s1 + $0x900] sm:$0xff]
  %v321 = vld [vmem:[%s1 + $0x908] sm:$0xff]
  %v322 = vld [vmem:[%s1 + $0x910] sm:$0xff]
  %v323 = vld [vmem:[%s1 + $0x918] sm:$0xff]
  %v324 = vld [vmem:[%s1 + $0x920] sm:$0xff]
  %v325 = vld [vmem:[%s1 + $0x928] sm:$0xff]
  %v326 = vld [vmem:[%s1 + $0x930] sm:$0xff]
  %v327 = vld [vmem:[%s1 + $0x938] sm:$0xff]
  %v328 = vld [vmem:[%s1 + $0x940] sm:$0xff]
  %v329 = vld [vmem:[%s1 + $0x948] sm:$0xff]
  %v330 = vld [vmem:[%s1 + $0x950] sm:$0xff]
  %v331 = vld [vmem:[%s1 + $0x958] sm:$0xff]
  %v332 = vld [vmem:[%s1 + $0x960] sm:$0xff]
  %v333 = vld [vmem:[%s1 + $0x968] sm:$0xff]
  %v334 = vld [vmem:[%s1 + $0x970] sm:$0xff]
  %v335 = vld [vmem:[%s1 + $0x978] sm:$0xff]
  %v336 = vld [vmem:[%s1 + $0x980] sm:$0xff]
  %v337 = vld [vmem:[%s1 + $0x988] sm:$0xff]
  %v338 = vld [vmem:[%s1 + $0x990] sm:$0xff]
  %v339 = vld [vmem:[%s1 + $0x998] sm:$0xff]
  %v340 = vld [vmem:[%s1 + $0x9a0] sm:$0xff]
  %v341 = vld [vmem:[%s1 + $0x9a8] sm:$0xff]
  %v342 = vld [vmem:[%s1 + $0x9b0] sm:$0xff]
  %v343 = vld [vmem:[%s1 + $0x9b8] sm:$0xff]
  %v344 = vld [vmem:[%s1 + $0x9c0] sm:$0xff]
  %v345 = vld [vmem:[%s1 + $0x9c8] sm:$0xff]
  %v346 = vld [vmem:[%s1 + $0x9d0] sm:$0xff]
  %v347 = vld [vmem:[%s1 + $0x9d8] sm:$0xff]
  %v348 = vld [vmem:[%s1 + $0x9e0] sm:$0xff]
  %v349 = vld [vmem:[%s1 + $0x9e8] sm:$0xff]
  %v350 = vld [vmem:[%s1 + $0x9f0] sm:$0xff]
  %v351 = vld [vmem:[%s1 + $0x9f8] sm:$0xff]
  %v352 = vld [vmem:[%s1 + $0xa00] sm:$0xff]
  %v353 = vld [vmem:[%s1 + $0xa08] sm:$0xff]
  %v354 = vld [vmem:[%s1 + $0xa10] sm:$0xff]
  %v355 = vld [vmem:[%s1 + $0xa18] sm:$0xff]
  %v356 = vld [vmem:[%s1 + $0xa20] sm:$0xff]
  %v357 = vld [vmem:[%s1 + $0xa28] sm:$0xff]
  %v358 = vld [vmem:[%s1 + $0xa30] sm:$0xff]
  %v359 = vld [vmem:[%s1 + $0xa38] sm:$0xff]
  %v360 = vld [vmem:[%s1 + $0xa40] sm:$0xff]
  %v361 = vld [vmem:[%s1 + $0xa48] sm:$0xff]
  %v362 = vld [vmem:[%s1 + $0xa50] sm:$0xff]
  %v363 = vld [vmem:[%s1 + $0xa58] sm:$0xff]
  %v364 = vld [vmem:[%s1 + $0xa60] sm:$0xff]
  %v365 = vld [vmem:[%s1 + $0xa68] sm:$0xff]
  %v366 = vld [vmem:[%s1 + $0xa70] sm:$0xff]
  %v367 = vld [vmem:[%s1 + $0xa78] sm:$0xff]
  %v368 = vld [vmem:[%s1 + $0xa80] sm:$0xff]
  %v369 = vld [vmem:[%s1 + $0xa88] sm:$0xff]
  %v370 = vld [vmem:[%s1 + $0xa90] sm:$0xff]
  %v371 = vld [vmem:[%s1 + $0xa98] sm:$0xff]
  %v372 = vld [vmem:[%s1 + $0xaa0] sm:$0xff]
  %v373 = vld [vmem:[%s1 + $0xaa8] sm:$0xff]
  %v374 = vld [vmem:[%s1 + $0xab0] sm:$0xff]
  %v375 = vld [vmem:[%s1 + $0xab8] sm:$0xff]
  %v376 = vld [vmem:[%s1 + $0xac0] sm:$0xff]
  %v377 = vld [vmem:[%s1 + $0xac8] sm:$0xff]
  %v378 = vld [vmem:[%s1 + $0xad0] sm:$0xff]
  %v379 = vld [vmem:[%s1 + $0xad8] sm:$0xff]
  %v380 = vld [vmem:[%s1 + $0xae0] sm:$0xff]
  %v381 = vld [vmem:[%s1 + $0xae8] sm:$0xff]
  %v382 = vld [vmem:[%s1 + $0xaf0] sm:$0xff]
  %v383 = vld [vmem:[%s1 + $0xaf8] sm:$0xff]
  %v384 = vld [vmem:[%s1 + $0xb00] sm:$0xff]
  %v385 = vld [vmem:[%s1 + $0xb08] sm:$0xff]
  %v386 = vld [vmem:[%s1 + $0xb10] sm:$0xff]
  %v387 = vld [vmem:[%s1 + $0xb18] sm:$0xff]
  %v388 = vld [vmem:[%s1 + $0xb20] sm:$0xff]
  %v389 = vld [vmem:[%s1 + $0xb28] sm:$0xff]
  %v390 = vld [vmem:[%s1 + $0xb30] sm:$0xff]
  %v391 = vld [vmem:[%s1 + $0xb38] sm:$0xff]
  %v392 = vld [vmem:[%s1 + $0xb40] sm:$0xff]
  %v393 = vld [vmem:[%s1 + $0xb48] sm:$0xff]
  %v394 = vld [vmem:[%s1 + $0xb50] sm:$0xff]
  %v395 = vld [vmem:[%s1 + $0xb58] sm:$0xff]
  %v396 = vld [vmem:[%s1 + $0xb60] sm:$0xff]
  %v397 = vld [vmem:[%s1 + $0xb68] sm:$0xff]
  %v398 = vld [vmem:[%s1 + $0xb70] sm:$0xff]
  %v399 = vld [vmem:[%s1 + $0xb78] sm:$0xff]
  %v400 = vld [vmem:[%s1 + $0xb80] sm:$0xff]
  %v401 = vld [vmem:[%s1 + $0xb88] sm:$0xff]
  %v402 = vld [vmem:[%s1 + $0xb90] sm:$0xff]
  %v403 = vld [vmem:[%s1 + $0xb98] sm:$0xff]
  %v404 = vld [vmem:[%s1 + $0xba0] sm:$0xff]
  %v405 = vld [vmem:[%s1 + $0xba8] sm:$0xff]
  %v406 = vld [vmem:[%s1 + $0xbb0] sm:$0xff]
  %v407 = vld [vmem:[%s1 + $0xbb8] sm:$0xff]
  %v408 = vld [vmem:[%s1 + $0xbc0] sm:$0xff]
  %v409 = vld [vmem:[%s1 + $0xbc8] sm:$0xff]
  %v410 = vld [vmem:[%s1 + $0xbd0] sm:$0xff]
  %v411 = vld [vmem:[%s1 + $0xbd8] sm:$0xff]
  %v412 = vld [vmem:[%s1 + $0xbe0] sm:$0xff]
  %v413 = vld [vmem:[%s1 + $0xbe8] sm:$0xff]
  %v414 = vld [vmem:[%s1 + $0xbf0] sm:$0xff]
  %v415 = vld [vmem:[%s1 + $0xbf8] sm:$0xff]
  %v416 = vld [vmem:[%s1 + $0xc00] sm:$0xff]
  %v417 = vld [vmem:[%s1 + $0xc08] sm:$0xff]
  %v418 = vld [vmem:[%s1 + $0xc10] sm:$0xff]
  %v419 = vld [vmem:[%s1 + $0xc18] sm:$0xff]
  %v420 = vld [vmem:[%s1 + $0xc20] sm:$0xff]
  %v421 = vld [vmem:[%s1 + $0xc28] sm:$0xff]
  %v422 = vld [vmem:[%s1 + $0xc30] sm:$0xff]
  %v423 = vld [vmem:[%s1 + $0xc38] sm:$0xff]
  %v424 = vld [vmem:[%s1 + $0xc40] sm:$0xff]
  %v425 = vld [vmem:[%s1 + $0xc48] sm:$0xff]
  %v426 = vld [vmem:[%s1 + $0xc50] sm:$0xff]
  %v427 = vld [vmem:[%s1 + $0xc58] sm:$0xff]
  %v428 = vld [vmem:[%s1 + $0xc60] sm:$0xff]
  %v429 = vld [vmem:[%s1 + $0xc68] sm:$0xff]
  %v430 = vld [vmem:[%s1 + $0xc70] sm:$0xff]
  %v431 = vld [vmem:[%s1 + $0xc78] sm:$0xff]
  %v432 = vld [vmem:[%s1 + $0xc80] sm:$0xff]
  %v433 = vld [vmem:[%s1 + $0xc88] sm:$0xff]
  %v434 = vld [vmem:[%s1 + $0xc90] sm:$0xff]
  %v435 = vld [vmem:[%s1 + $0xc98] sm:$0xff]
  %v436 = vld [vmem:[%s1 + $0xca0] sm:$0xff]
  %v437 = vld [vmem:[%s1 + $0xca8] sm:$0xff]
  %v438 = vld [vmem:[%s1 + $0xcb0] sm:$0xff]
  %v439 = vld [vmem:[%s1 + $0xcb8] sm:$0xff]
  %v440 = vld [vmem:[%s1 + $0xcc0] sm:$0xff]
  %v441 = vld [vmem:[%s1 + $0xcc8] sm:$0xff]
  %v442 = vld [vmem:[%s1 + $0xcd0] sm:$0xff]
  %v443 = vld [vmem:[%s1 + $0xcd8] sm:$0xff]
  %v444 = vld [vmem:[%s1 + $0xce0] sm:$0xff]
  %v445 = vld [vmem:[%s1 + $0xce8] sm:$0xff]
  %v446 = vld [vmem:[%s1 + $0xcf0] sm:$0xff]
  %v447 = vld [vmem:[%s1 + $0xcf8] sm:$0xff]
  %v448 = vld [vmem:[%s1 + $0xd00] sm:$0xff]
  %v449 = vld [vmem:[%s1 + $0xd08] sm:$0xff]
  %v450 = vld [vmem:[%s1 + $0xd10] sm:$0xff]
  %v451 = vld [vmem:[%s1 + $0xd18] sm:$0xff]
  %v452 = vld [vmem:[%s1 + $0xd20] sm:$0xff]
  %v453 = vld [vmem:[%s1 + $0xd28] sm:$0xff]
  %v454 = vld [vmem:[%s1 + $0xd30] sm:$0xff]
  %v455 = vld [vmem:[%s1 + $0xd38] sm:$0xff]
  %v456 = vld [vmem:[%s1 + $0xd40] sm:$0xff]
  %v457 = vld [vmem:[%s1 + $0xd48] sm:$0xff]
  %v458 = vld [vmem:[%s1 + $0xd50] sm:$0xff]
  %v459 = vld [vmem:[%s1 + $0xd58] sm:$0xff]
  %v460 = vld [vmem:[%s1 + $0xd60] sm:$0xff]
  %v461 = vld [vmem:[%s1 + $0xd68] sm:$0xff]
  %v462 = vld [vmem:[%s1 + $0xd70] sm:$0xff]
  %v463 = vld [vmem:[%s1 + $0xd78] sm:$0xff]
  %v464 = vld [vmem:[%s1 + $0xd80] sm:$0xff]
  %v465 = vld [vmem:[%s1 + $0xd88] sm:$0xff]
  %v466 = vld [vmem:[%s1 + $0xd90] sm:$0xff]
  %v467 = vld [vmem:[%s1 + $0xd98] sm:$0xff]
  %v468 = vld [vmem:[%s1 + $0xda0] sm:$0xff]
  %v469 = vld [vmem:[%s1 + $0xda8] sm:$0xff]
  %v470 = vld [vmem:[%s1 + $0xdb0] sm:$0xff]
  %v471 = vld [vmem:[%s1 + $0xdb8] sm:$0xff]
  %v472 = vld [vmem:[%s1 + $0xdc0] sm:$0xff]
  %v473 = vld [vmem:[%s1 + $0xdc8] sm:$0xff]
  %v474 = vld [vmem:[%s1 + $0xdd0] sm:$0xff]
  %v475 = vld [vmem:[%s1 + $0xdd8] sm:$0xff]
  %v476 = vld [vmem:[%s1 + $0xde0] sm:$0xff]
  %v477 = vld [vmem:[%s1 + $0xde8] sm:$0xff]
  %v478 = vld [vmem:[%s1 + $0xdf0] sm:$0xff]
  %v479 = vld [vmem:[%s1 + $0xdf8] sm:$0xff]
  %v480 = vld [vmem:[%s1 + $0xe00] sm:$0xff]
  %v481 = vld [vmem:[%s1 + $0xe08] sm:$0xff]
  %v482 = vld [vmem:[%s1 + $0xe10] sm:$0xff]
  %v483 = vld [vmem:[%s1 + $0xe18] sm:$0xff]
  %v484 = vld [vmem:[%s1 + $0xe20] sm:$0xff]
  %v485 = vld [vmem:[%s1 + $0xe28] sm:$0xff]
  %v486 = vld [vmem:[%s1 + $0xe30] sm:$0xff]
  %v487 = vld [vmem:[%s1 + $0xe38] sm:$0xff]
  %v488 = vld [vmem:[%s1 + $0xe40] sm:$0xff]
  %v489 = vld [vmem:[%s1 + $0xe48] sm:$0xff]
  %v490 = vld [vmem:[%s1 + $0xe50] sm:$0xff]
  %v491 = vld [vmem:[%s1 + $0xe58] sm:$0xff]
  %v492 = vld [vmem:[%s1 + $0xe60] sm:$0xff]
  %v493 = vld [vmem:[%s1 + $0xe68] sm:$0xff]
  %v494 = vld [vmem:[%s1 + $0xe70] sm:$0xff]
  %v495 = vld [vmem:[%s1 + $0xe78] sm:$0xff]
  %v496 = vld [vmem:[%s1 + $0xe80] sm:$0xff]
  %v497 = vld [vmem:[%s1 + $0xe88] sm:$0xff]
  %v498 = vld [vmem:[%s1 + $0xe90] sm:$0xff]
  %v499 = vld [vmem:[%s1 + $0xe98] sm:$0xff]
  %v500 = vld [vmem:[%s1 + $0xea0] sm:$0xff]
  %v501 = vld [vmem:[%s1 + $0xea8] sm:$0xff]
  %v502 = vld [vmem:[%s1 + $0xeb0] sm:$0xff]
  %v503 = vld [vmem:[%s1 + $0xeb8] sm:$0xff]
  %v504 = vld [vmem:[%s1 + $0xec0] sm:$0xff]
  %v505 = vld [vmem:[%s1 + $0xec8] sm:$0xff]
  %v506 = vld [vmem:[%s1 + $0xed0] sm:$0xff]
  %v507 = vld [vmem:[%s1 + $0xed8] sm:$0xff]
  %v508 = vld [vmem:[%s1 + $0xee0] sm:$0xff]
  %v509 = vld [vmem:[%s1 + $0xee8] sm:$0xff]
  %v510 = vld [vmem:[%s1 + $0xef0] sm:$0xff]
  %v511 = vld [vmem:[%s1 + $0xef8] sm:$0xff]
  %v512 = vld [vmem:[%s1 + $0xf00] sm:$0xff]
  %v513 = vld [vmem:[%s1 + $0xf08] sm:$0xff]
  %v514 = vld [vmem:[%s1 + $0xf10] sm:$0xff]
  %v515 = vld [vmem:[%s1 + $0xf18] sm:$0xff]
  %v516 = vld [vmem:[%s1 + $0xf20] sm:$0xff]
  %v517 = vld [vmem:[%s1 + $0xf28] sm:$0xff]
  %v518 = vld [vmem:[%s1 + $0xf30] sm:$0xff]
  %v519 = vld [vmem:[%s1 + $0xf38] sm:$0xff]
  %v520 = vld [vmem:[%s1 + $0xf40] sm:$0xff]
  %v521 = vld [vmem:[%s1 + $0xf48] sm:$0xff]
  %v522 = vld [vmem:[%s1 + $0xf50] sm:$0xff]
  %v523 = vld [vmem:[%s1 + $0xf58] sm:$0xff]
  %v524 = vld [vmem:[%s1 + $0xf60] sm:$0xff]
  %v525 = vld [vmem:[%s1 + $0xf68] sm:$0xff]
  %v526 = vld [vmem:[%s1 + $0xf70] sm:$0xff]
  %v527 = vld [vmem:[%s1 + $0xf78] sm:$0xff]
  %v528 = vld [vmem:[%s1 + $0xf80] sm:$0xff]
  %v529 = vld [vmem:[%s1 + $0xf88] sm:$0xff]
  %v530 = vld [vmem:[%s1 + $0xf90] sm:$0xff]
  %v531 = vld [vmem:[%s1 + $0xf98] sm:$0xff]
  %v532 = vld [vmem:[%s1 + $0xfa0] sm:$0xff]
  %v533 = vld [vmem:[%s1 + $0xfa8] sm:$0xff]
  %v534 = vld [vmem:[%s1 + $0xfb0] sm:$0xff]
  %v535 = vld [vmem:[%s1 + $0xfb8] sm:$0xff]
  %v536 = vld [vmem:[%s1 + $0xfc0] sm:$0xff]
  %v537 = vld [vmem:[%s1 + $0xfc8] sm:$0xff]
  %v538 = vld [vmem:[%s1 + $0xfd0] sm:$0xff]
  %v539 = vld [vmem:[%s1 + $0xfd8] sm:$0xff]
  %v540 = vld [vmem:[%s1 + $0xfe0] sm:$0xff]
  %v541 = vld [vmem:[%s1 + $0xfe8] sm:$0xff]
  %v542 = vld [vmem:[%s1 + $0xff0] sm:$0xff]
  %v543 = vld [vmem:[%s1 + $0xff8] sm:$0xff]
  %v544 = vld [vmem:[%s1 + $0x1000] sm:$0xff]
  %v545 = vld [vmem:[%s1 + $0x1008] sm:$0xff]
  %v546 = vld [vmem:[%s1 + $0x1010] sm:$0xff]
  %v547 = vld [vmem:[%s1 + $0x1018] sm:$0xff]
  %v548 = vld [vmem:[%s1 + $0x1020] sm:$0xff]
  %v549 = vld [vmem:[%s1 + $0x1028] sm:$0xff]
  %v550 = vld [vmem:[%s1 + $0x1030] sm:$0xff]
  %v551 = vld [vmem:[%s1 + $0x1038] sm:$0xff]
  %v552 = vld [vmem:[%s1 + $0x1040] sm:$0xff]
  %v553 = vld [vmem:[%s1 + $0x1048] sm:$0xff]
  %v554 = vld [vmem:[%s1 + $0x1050] sm:$0xff]
  %v555 = vld [vmem:[%s1 + $0x1058] sm:$0xff]
  %v556 = vld [vmem:[%s1 + $0x1060] sm:$0xff]
  %v557 = vld [vmem:[%s1 + $0x1068] sm:$0xff]
  %v558 = vld [vmem:[%s1 + $0x1070] sm:$0xff]
  %v559 = vld [vmem:[%s1 + $0x1078] sm:$0xff]
  %v560 = vld [vmem:[%s1 + $0x1080] sm:$0xff]
  %v561 = vld [vmem:[%s1 + $0x1088] sm:$0xff]
  %v562 = vld [vmem:[%s1 + $0x1090] sm:$0xff]
  %v563 = vld [vmem:[%s1 + $0x1098] sm:$0xff]
  %v564 = vld [vmem:[%s1 + $0x10a0] sm:$0xff]
  %v565 = vld [vmem:[%s1 + $0x10a8] sm:$0xff]
  %v566 = vld [vmem:[%s1 + $0x10b0] sm:$0xff]
  %v567 = vld [vmem:[%s1 + $0x10b8] sm:$0xff]
  %v568 = vld [vmem:[%s1 + $0x10c0] sm:$0xff]
  %v569 = vld [vmem:[%s1 + $0x10c8] sm:$0xff]
  %v570 = vld [vmem:[%s1 + $0x10d0] sm:$0xff]
  %v571 = vld [vmem:[%s1 + $0x10d8] sm:$0xff]
  %v572 = vld [vmem:[%s1 + $0x10e0] sm:$0xff]
  %v573 = vld [vmem:[%s1 + $0x10e8] sm:$0xff]
  %v574 = vld [vmem:[%s1 + $0x10f0] sm:$0xff]
  %v575 = vld [vmem:[%s1 + $0x10f8] sm:$0xff]
  %v576 = vld [vmem:[%s1 + $0x1100] sm:$0xff]
  %v577 = vld [vmem:[%s1 + $0x1108] sm:$0xff]
  %v578 = vld [vmem:[%s1 + $0x1110] sm:$0xff]
  %v579 = vld [vmem:[%s1 + $0x1118] sm:$0xff]
  %v580 = vld [vmem:[%s1 + $0x1120] sm:$0xff]
  %v581 = vld [vmem:[%s1 + $0x1128] sm:$0xff]
  %v582 = vld [vmem:[%s1 + $0x1130] sm:$0xff]
  %v583 = vld [vmem:[%s1 + $0x1138] sm:$0xff]
  %v584 = vld [vmem:[%s1 + $0x1140] sm:$0xff]
  %v585 = vld [vmem:[%s1 + $0x1148] sm:$0xff]
  %v586 = vld [vmem:[%s1 + $0x1150] sm:$0xff]
  %v587 = vld [vmem:[%s1 + $0x1158] sm:$0xff]
  %v588 = vld [vmem:[%s1 + $0x1160] sm:$0xff]
  %v589 = vld [vmem:[%s1 + $0x1168] sm:$0xff]
  %v590 = vld [vmem:[%s1 + $0x1170] sm:$0xff]
  %v591 = vld [vmem:[%s1 + $0x1178] sm:$0xff]
  %v592 = vld [vmem:[%s1 + $0x1180] sm:$0xff]
  %v593 = vld [vmem:[%s1 + $0x1188] sm:$0xff]
  %v594 = vld [vmem:[%s1 + $0x1190] sm:$0xff]
  %v595 = vld [vmem:[%s1 + $0x1198] sm:$0xff]
  %v596 = vld [vmem:[%s1 + $0x11a0] sm:$0xff]
  %v597 = vld [vmem:[%s1 + $0x11a8] sm:$0xff]
  %v598 = vld [vmem:[%s1 + $0x11b0] sm:$0xff]
  %v599 = vld [vmem:[%s1 + $0x11b8] sm:$0xff]
  %v600 = vld [vmem:[%s1 + $0x11c0] sm:$0xff]
  %v601 = vld [vmem:[%s1 + $0x11c8] sm:$0xff]
  %v602 = vld [vmem:[%s1 + $0x11d0] sm:$0xff]
  %v603 = vld [vmem:[%s1 + $0x11d8] sm:$0xff]
  %v604 = vld [vmem:[%s1 + $0x11e0] sm:$0xff]
  %v605 = vld [vmem:[%s1 + $0x11e8] sm:$0xff]
  %v606 = vld [vmem:[%s1 + $0x11f0] sm:$0xff]
  %v607 = vld [vmem:[%s1 + $0x11f8] sm:$0xff]
  %v608 = vld [vmem:[%s2] sm:$0x3]
  %v610 = vlaneseq
  %v611 = vshrl.u32 %v610, 7
  %v612 = vsub.s32 0, %v611
  %v613 = vrot.slane %v608, %v612
  %v614 = vlaneseq
  %v615 = vshrl.u32 %v614, 7
  %v616 = vsub.s32 1, %v615
  %v617 = vrot.slane %v608, %v616
  %620 = vmatprep.subr.mxu0 %v33
  %621 = vmatpush1.msra.mxu0 %v32
  %622 = vmatprep.subr.mxu0 %v35
  %623 = vmatpush1.msra.mxu0 %v34
  %624 = vmatprep.subr.mxu0 %v37
  %625 = vmatpush1.msra.mxu0 %v36
  %626 = vmatprep.subr.mxu0 %v39
  %627 = vmatpush1.msra.mxu0 %v38
  %628 = vmatprep.subr.mxu0 %v41
  %629 = vmatpush1.msra.mxu0 %v40
  %630 = vmatprep.subr.mxu0 %v43
  %631 = vmatpush1.msra.mxu0 %v42
  %632 = vmatprep.subr.mxu0 %v45
  %633 = vmatpush1.msra.mxu0 %v44
  %634 = vmatprep.subr.mxu0 %v47
  %635 = vmatpush1.msra.mxu0 %v46
  %636 = vmatprep.subr.mxu0 %v49
  %637 = vmatpush1.msra.mxu0 %v48
  %638 = vmatprep.subr.mxu0 %v51
  %639 = vmatpush1.msra.mxu0 %v50
  %640 = vmatprep.subr.mxu0 %v53
  %641 = vmatpush1.msra.mxu0 %v52
  %642 = vmatprep.subr.mxu0 %v55
  %643 = vmatpush1.msra.mxu0 %v54
  %644 = vmatprep.subr.mxu0 %v57
  %645 = vmatpush1.msra.mxu0 %v56
  %646 = vmatprep.subr.mxu0 %v59
  %647 = vmatpush1.msra.mxu0 %v58
  %648 = vmatprep.subr.mxu0 %v61
  %649 = vmatpush1.msra.mxu0 %v60
  %650 = vmatprep.subr.mxu0 %v63
  %651 = vmatpush1.msra.mxu0 %v62
  %652 = vmatprep.subr.mxu0 %v65
  %653 = vmatpush1.msra.mxu0 %v64
  %654 = vmatprep.subr.mxu0 %v67
  %655 = vmatpush1.msra.mxu0 %v66
  %656 = vmatprep.subr.mxu0 %v69
  %657 = vmatpush1.msra.mxu0 %v68
  %658 = vmatprep.subr.mxu0 %v71
  %659 = vmatpush1.msra.mxu0 %v70
  %660 = vmatprep.subr.mxu0 %v73
  %661 = vmatpush1.msra.mxu0 %v72
  %662 = vmatprep.subr.mxu0 %v75
  %663 = vmatpush1.msra.mxu0 %v74
  %664 = vmatprep.subr.mxu0 %v77
  %665 = vmatpush1.msra.mxu0 %v76
  %666 = vmatprep.subr.mxu0 %v79
  %667 = vmatpush1.msra.mxu0 %v78
  %668 = vmatprep.subr.mxu0 %v81
  %669 = vmatpush1.msra.mxu0 %v80
  %670 = vmatprep.subr.mxu0 %v83
  %671 = vmatpush1.msra.mxu0 %v82
  %672 = vmatprep.subr.mxu0 %v85
  %673 = vmatpush1.msra.mxu0 %v84
  %674 = vmatprep.subr.mxu0 %v87
  %675 = vmatpush1.msra.mxu0 %v86
  %676 = vmatprep.subr.mxu0 %v89
  %677 = vmatpush1.msra.mxu0 %v88
  %678 = vmatprep.subr.mxu0 %v91
  %679 = vmatpush1.msra.mxu0 %v90
  %680 = vmatprep.subr.mxu0 %v93
  %681 = vmatpush1.msra.mxu0 %v92
  %682 = vmatprep.subr.mxu0 %v95
  %683 = vmatpush1.msra.mxu0 %v94
  %684 = vmatprep.mubr.f32.mxu0 %v15
  %685 = vmatmul.mubr.f32.gmra.mrb[0].mxu0 %v14
  %v686 = vpop.f32.mrb[0].mxu0
  %v687 = vadd.f32 %v613, %v686
  %v688 = vpop.f32.mrb[0].mxu0
  %v689 = vadd.f32 %v617, %v688
  %690 = vdwg.mxu0
  %691 = vmatprep.subr.mxu0 %v97
  %692 = vmatpush1.msra.mxu0 %v96
  %693 = vmatprep.subr.mxu0 %v99
  %694 = vmatpush1.msra.mxu0 %v98
  %695 = vmatprep.subr.mxu0 %v101
  %696 = vmatpush1.msra.mxu0 %v100
  %697 = vmatprep.subr.mxu0 %v103
  %698 = vmatpush1.msra.mxu0 %v102
  %699 = vmatprep.subr.mxu0 %v105
  %700 = vmatpush1.msra.mxu0 %v104
  %701 = vmatprep.subr.mxu0 %v107
  %702 = vmatpush1.msra.mxu0 %v106
  %703 = vmatprep.subr.mxu0 %v109
  %704 = vmatpush1.msra.mxu0 %v108
  %705 = vmatprep.subr.mxu0 %v111
  %706 = vmatpush1.msra.mxu0 %v110
  %707 = vmatprep.subr.mxu0 %v113
  %708 = vmatpush1.msra.mxu0 %v112
  %709 = vmatprep.subr.mxu0 %v115
  %710 = vmatpush1.msra.mxu0 %v114
  %711 = vmatprep.subr.mxu0 %v117
  %712 = vmatpush1.msra.mxu0 %v116
  %713 = vmatprep.subr.mxu0 %v119
  %714 = vmatpush1.msra.mxu0 %v118
  %715 = vmatprep.subr.mxu0 %v121
  %716 = vmatpush1.msra.mxu0 %v120
  %717 = vmatprep.subr.mxu0 %v123
  %718 = vmatpush1.msra.mxu0 %v122
  %719 = vmatprep.subr.mxu0 %v125
  %720 = vmatpush1.msra.mxu0 %v124
  %721 = vmatprep.subr.mxu0 %v127
  %722 = vmatpush1.msra.mxu0 %v126
  %723 = vmatprep.subr.mxu0 %v129
  %724 = vmatpush1.msra.mxu0 %v128
  %725 = vmatprep.subr.mxu0 %v131
  %726 = vmatpush1.msra.mxu0 %v130
  %727 = vmatprep.subr.mxu0 %v133
  %728 = vmatpush1.msra.mxu0 %v132
  %729 = vmatprep.subr.mxu0 %v135
  %730 = vmatpush1.msra.mxu0 %v134
  %731 = vmatprep.subr.mxu0 %v137
  %732 = vmatpush1.msra.mxu0 %v136
  %733 = vmatprep.subr.mxu0 %v139
  %734 = vmatpush1.msra.mxu0 %v138
  %735 = vmatprep.subr.mxu0 %v141
  %736 = vmatpush1.msra.mxu0 %v140
  %737 = vmatprep.subr.mxu0 %v143
  %738 = vmatpush1.msra.mxu0 %v142
  %739 = vmatprep.subr.mxu0 %v145
  %740 = vmatpush1.msra.mxu0 %v144
  %741 = vmatprep.subr.mxu0 %v147
  %742 = vmatpush1.msra.mxu0 %v146
  %743 = vmatprep.subr.mxu0 %v149
  %744 = vmatpush1.msra.mxu0 %v148
  %745 = vmatprep.subr.mxu0 %v151
  %746 = vmatpush1.msra.mxu0 %v150
  %747 = vmatprep.subr.mxu0 %v153
  %748 = vmatpush1.msra.mxu0 %v152
  %749 = vmatprep.subr.mxu0 %v155
  %750 = vmatpush1.msra.mxu0 %v154
  %751 = vmatprep.subr.mxu0 %v157
  %752 = vmatpush1.msra.mxu0 %v156
  %753 = vmatprep.subr.mxu0 %v159
  %754 = vmatpush1.msra.mxu0 %v158
  %755 = vmatprep.mubr.f32.mxu0 %v17
  %756 = vmatmul.mubr.f32.gmra.mrb[0].mxu0 %v16
  %v757 = vpop.f32.mrb[0].mxu0
  %v758 = vadd.f32 %v687, %v757
  %v759 = vpop.f32.mrb[0].mxu0
  %v760 = vadd.f32 %v689, %v759
  %761 = vdwg.mxu0
  %762 = vmatprep.subr.mxu0 %v161
  %763 = vmatpush1.msra.mxu0 %v160
  %764 = vmatprep.subr.mxu0 %v163
  %765 = vmatpush1.msra.mxu0 %v162
  %766 = vmatprep.subr.mxu0 %v165
  %767 = vmatpush1.msra.mxu0 %v164
  %768 = vmatprep.subr.mxu0 %v167
  %769 = vmatpush1.msra.mxu0 %v166
  %770 = vmatprep.subr.mxu0 %v169
  %771 = vmatpush1.msra.mxu0 %v168
  %772 = vmatprep.subr.mxu0 %v171
  %773 = vmatpush1.msra.mxu0 %v170
  %774 = vmatprep.subr.mxu0 %v173
  %775 = vmatpush1.msra.mxu0 %v172
  %776 = vmatprep.subr.mxu0 %v175
  %777 = vmatpush1.msra.mxu0 %v174
  %778 = vmatprep.subr.mxu0 %v177
  %779 = vmatpush1.msra.mxu0 %v176
  %780 = vmatprep.subr.mxu0 %v179
  %781 = vmatpush1.msra.mxu0 %v178
  %782 = vmatprep.subr.mxu0 %v181
  %783 = vmatpush1.msra.mxu0 %v180
  %784 = vmatprep.subr.mxu0 %v183
  %785 = vmatpush1.msra.mxu0 %v182
  %786 = vmatprep.subr.mxu0 %v185
  %787 = vmatpush1.msra.mxu0 %v184
  %788 = vmatprep.subr.mxu0 %v187
  %789 = vmatpush1.msra.mxu0 %v186
  %790 = vmatprep.subr.mxu0 %v189
  %791 = vmatpush1.msra.mxu0 %v188
  %792 = vmatprep.subr.mxu0 %v191
  %793 = vmatpush1.msra.mxu0 %v190
  %794 = vmatprep.subr.mxu0 %v193
  %795 = vmatpush1.msra.mxu0 %v192
  %796 = vmatprep.subr.mxu0 %v195
  %797 = vmatpush1.msra.mxu0 %v194
  %798 = vmatprep.subr.mxu0 %v197
  %799 = vmatpush1.msra.mxu0 %v196
  %800 = vmatprep.subr.mxu0 %v199
  %801 = vmatpush1.msra.mxu0 %v198
  %802 = vmatprep.subr.mxu0 %v201
  %803 = vmatpush1.msra.mxu0 %v200
  %804 = vmatprep.subr.mxu0 %v203
  %805 = vmatpush1.msra.mxu0 %v202
  %806 = vmatprep.subr.mxu0 %v205
  %807 = vmatpush1.msra.mxu0 %v204
  %808 = vmatprep.subr.mxu0 %v207
  %809 = vmatpush1.msra.mxu0 %v206
  %810 = vmatprep.subr.mxu0 %v209
  %811 = vmatpush1.msra.mxu0 %v208
  %812 = vmatprep.subr.mxu0 %v211
  %813 = vmatpush1.msra.mxu0 %v210
  %814 = vmatprep.subr.mxu0 %v213
  %815 = vmatpush1.msra.mxu0 %v212
  %816 = vmatprep.subr.mxu0 %v215
  %817 = vmatpush1.msra.mxu0 %v214
  %818 = vmatprep.subr.mxu0 %v217
  %819 = vmatpush1.msra.mxu0 %v216
  %820 = vmatprep.subr.mxu0 %v219
  %821 = vmatpush1.msra.mxu0 %v218
  %822 = vmatprep.subr.mxu0 %v221
  %823 = vmatpush1.msra.mxu0 %v220
  %824 = vmatprep.subr.mxu0 %v223
  %825 = vmatpush1.msra.mxu0 %v222
  %826 = vmatprep.mubr.f32.mxu0 %v19
  %827 = vmatmul.mubr.f32.gmra.mrb[0].mxu0 %v18
  %v828 = vpop.f32.mrb[0].mxu0
  %v829 = vadd.f32 %v758, %v828
  %v830 = vpop.f32.mrb[0].mxu0
  %v831 = vadd.f32 %v760, %v830
  %832 = vdwg.mxu0
  %833 = vmatprep.subr.mxu0 %v225
  %834 = vmatpush1.msra.mxu0 %v224
  %835 = vmatprep.subr.mxu0 %v227
  %836 = vmatpush1.msra.mxu0 %v226
  %837 = vmatprep.subr.mxu0 %v229
  %838 = vmatpush1.msra.mxu0 %v228
  %839 = vmatprep.subr.mxu0 %v231
  %840 = vmatpush1.msra.mxu0 %v230
  %841 = vmatprep.subr.mxu0 %v233
  %842 = vmatpush1.msra.mxu0 %v232
  %843 = vmatprep.subr.mxu0 %v235
  %844 = vmatpush1.msra.mxu0 %v234
  %845 = vmatprep.subr.mxu0 %v237
  %846 = vmatpush1.msra.mxu0 %v236
  %847 = vmatprep.subr.mxu0 %v239
  %848 = vmatpush1.msra.mxu0 %v238
  %849 = vmatprep.subr.mxu0 %v241
  %850 = vmatpush1.msra.mxu0 %v240
  %851 = vmatprep.subr.mxu0 %v243
  %852 = vmatpush1.msra.mxu0 %v242
  %853 = vmatprep.subr.mxu0 %v245
  %854 = vmatpush1.msra.mxu0 %v244
  %855 = vmatprep.subr.mxu0 %v247
  %856 = vmatpush1.msra.mxu0 %v246
  %857 = vmatprep.subr.mxu0 %v249
  %858 = vmatpush1.msra.mxu0 %v248
  %859 = vmatprep.subr.mxu0 %v251
  %860 = vmatpush1.msra.mxu0 %v250
  %861 = vmatprep.subr.mxu0 %v253
  %862 = vmatpush1.msra.mxu0 %v252
  %863 = vmatprep.subr.mxu0 %v255
  %864 = vmatpush1.msra.mxu0 %v254
  %865 = vmatprep.subr.mxu0 %v257
  %866 = vmatpush1.msra.mxu0 %v256
  %867 = vmatprep.subr.mxu0 %v259
  %868 = vmatpush1.msra.mxu0 %v258
  %869 = vmatprep.subr.mxu0 %v261
  %870 = vmatpush1.msra.mxu0 %v260
  %871 = vmatprep.subr.mxu0 %v263
  %872 = vmatpush1.msra.mxu0 %v262
  %873 = vmatprep.subr.mxu0 %v265
  %874 = vmatpush1.msra.mxu0 %v264
  %875 = vmatprep.subr.mxu0 %v267
  %876 = vmatpush1.msra.mxu0 %v266
  %877 = vmatprep.subr.mxu0 %v269
  %878 = vmatpush1.msra.mxu0 %v268
  %879 = vmatprep.subr.mxu0 %v271
  %880 = vmatpush1.msra.mxu0 %v270
  %881 = vmatprep.subr.mxu0 %v273
  %882 = vmatpush1.msra.mxu0 %v272
  %883 = vmatprep.subr.mxu0 %v275
  %884 = vmatpush1.msra.mxu0 %v274
  %885 = vmatprep.subr.mxu0 %v277
  %886 = vmatpush1.msra.mxu0 %v276
  %887 = vmatprep.subr.mxu0 %v279
  %888 = vmatpush1.msra.mxu0 %v278
  %889 = vmatprep.subr.mxu0 %v281
  %890 = vmatpush1.msra.mxu0 %v280
  %891 = vmatprep.subr.mxu0 %v283
  %892 = vmatpush1.msra.mxu0 %v282
  %893 = vmatprep.subr.mxu0 %v285
  %894 = vmatpush1.msra.mxu0 %v284
  %895 = vmatprep.subr.mxu0 %v287
  %896 = vmatpush1.msra.mxu0 %v286
  %897 = vmatprep.mubr.f32.mxu0 %v21
  %898 = vmatmul.mubr.f32.gmra.mrb[0].mxu0 %v20
  %v899 = vpop.f32.mrb[0].mxu0
  %v900 = vadd.f32 %v829, %v899
  %v901 = vpop.f32.mrb[0].mxu0
  %v902 = vadd.f32 %v831, %v901
  %903 = vdwg.mxu0
  %904 = vmatprep.subr.mxu0 %v289
  %905 = vmatpush1.msra.mxu0 %v288
  %906 = vmatprep.subr.mxu0 %v291
  %907 = vmatpush1.msra.mxu0 %v290
  %908 = vmatprep.subr.mxu0 %v293
  %909 = vmatpush1.msra.mxu0 %v292
  %910 = vmatprep.subr.mxu0 %v295
  %911 = vmatpush1.msra.mxu0 %v294
  %912 = vmatprep.subr.mxu0 %v297
  %913 = vmatpush1.msra.mxu0 %v296
  %914 = vmatprep.subr.mxu0 %v299
  %915 = vmatpush1.msra.mxu0 %v298
  %916 = vmatprep.subr.mxu0 %v301
  %917 = vmatpush1.msra.mxu0 %v300
  %918 = vmatprep.subr.mxu0 %v303
  %919 = vmatpush1.msra.mxu0 %v302
  %920 = vmatprep.subr.mxu0 %v305
  %921 = vmatpush1.msra.mxu0 %v304
  %922 = vmatprep.subr.mxu0 %v307
  %923 = vmatpush1.msra.mxu0 %v306
  %924 = vmatprep.subr.mxu0 %v309
  %925 = vmatpush1.msra.mxu0 %v308
  %926 = vmatprep.subr.mxu0 %v311
  %927 = vmatpush1.msra.mxu0 %v310
  %928 = vmatprep.subr.mxu0 %v313
  %929 = vmatpush1.msra.mxu0 %v312
  %930 = vmatprep.subr.mxu0 %v315
  %931 = vmatpush1.msra.mxu0 %v314
  %932 = vmatprep.subr.mxu0 %v317
  %933 = vmatpush1.msra.mxu0 %v316
  %934 = vmatprep.subr.mxu0 %v319
  %935 = vmatpush1.msra.mxu0 %v318
  %936 = vmatprep.subr.mxu0 %v321
  %937 = vmatpush1.msra.mxu0 %v320
  %938 = vmatprep.subr.mxu0 %v323
  %939 = vmatpush1.msra.mxu0 %v322
  %940 = vmatprep.subr.mxu0 %v325
  %941 = vmatpush1.msra.mxu0 %v324
  %942 = vmatprep.subr.mxu0 %v327
  %943 = vmatpush1.msra.mxu0 %v326
  %944 = vmatprep.subr.mxu0 %v329
  %945 = vmatpush1.msra.mxu0 %v328
  %946 = vmatprep.subr.mxu0 %v331
  %947 = vmatpush1.msra.mxu0 %v330
  %948 = vmatprep.subr.mxu0 %v333
  %949 = vmatpush1.msra.mxu0 %v332
  %950 = vmatprep.subr.mxu0 %v335
  %951 = vmatpush1.msra.mxu0 %v334
  %952 = vmatprep.subr.mxu0 %v337
  %953 = vmatpush1.msra.mxu0 %v336
  %954 = vmatprep.subr.mxu0 %v339
  %955 = vmatpush1.msra.mxu0 %v338
  %956 = vmatprep.subr.mxu0 %v341
  %957 = vmatpush1.msra.mxu0 %v340
  %958 = vmatprep.subr.mxu0 %v343
  %959 = vmatpush1.msra.mxu0 %v342
  %960 = vmatprep.subr.mxu0 %v345
  %961 = vmatpush1.msra.mxu0 %v344
  %962 = vmatprep.subr.mxu0 %v347
  %963 = vmatpush1.msra.mxu0 %v346
  %964 = vmatprep.subr.mxu0 %v349
  %965 = vmatpush1.msra.mxu0 %v348
  %966 = vmatprep.subr.mxu0 %v351
  %967 = vmatpush1.msra.mxu0 %v350
  %968 = vmatprep.mubr.f32.mxu0 %v23
  %969 = vmatmul.mubr.f32.gmra.mrb[0].mxu0 %v22
  %v970 = vpop.f32.mrb[0].mxu0
  %v971 = vadd.f32 %v900, %v970
  %v972 = vpop.f32.mrb[0].mxu0
  %v973 = vadd.f32 %v902, %v972
  %974 = vdwg.mxu0
  %975 = vmatprep.subr.mxu0 %v353
  %976 = vmatpush1.msra.mxu0 %v352
  %977 = vmatprep.subr.mxu0 %v355
  %978 = vmatpush1.msra.mxu0 %v354
  %979 = vmatprep.subr.mxu0 %v357
  %980 = vmatpush1.msra.mxu0 %v356
  %981 = vmatprep.subr.mxu0 %v359
  %982 = vmatpush1.msra.mxu0 %v358
  %983 = vmatprep.subr.mxu0 %v361
  %984 = vmatpush1.msra.mxu0 %v360
  %985 = vmatprep.subr.mxu0 %v363
  %986 = vmatpush1.msra.mxu0 %v362
  %987 = vmatprep.subr.mxu0 %v365
  %988 = vmatpush1.msra.mxu0 %v364
  %989 = vmatprep.subr.mxu0 %v367
  %990 = vmatpush1.msra.mxu0 %v366
  %991 = vmatprep.subr.mxu0 %v369
  %992 = vmatpush1.msra.mxu0 %v368
  %993 = vmatprep.subr.mxu0 %v371
  %994 = vmatpush1.msra.mxu0 %v370
  %995 = vmatprep.subr.mxu0 %v373
  %996 = vmatpush1.msra.mxu0 %v372
  %997 = vmatprep.subr.mxu0 %v375
  %998 = vmatpush1.msra.mxu0 %v374
  %999 = vmatprep.subr.mxu0 %v377
  %1000 = vmatpush1.msra.mxu0 %v376
  %1001 = vmatprep.subr.mxu0 %v379
  %1002 = vmatpush1.msra.mxu0 %v378
  %1003 = vmatprep.subr.mxu0 %v381
  %1004 = vmatpush1.msra.mxu0 %v380
  %1005 = vmatprep.subr.mxu0 %v383
  %1006 = vmatpush1.msra.mxu0 %v382
  %1007 = vmatprep.subr.mxu0 %v385
  %1008 = vmatpush1.msra.mxu0 %v384
  %1009 = vmatprep.subr.mxu0 %v387
  %1010 = vmatpush1.msra.mxu0 %v386
  %1011 = vmatprep.subr.mxu0 %v389
  %1012 = vmatpush1.msra.mxu0 %v388
  %1013 = vmatprep.subr.mxu0 %v391
  %1014 = vmatpush1.msra.mxu0 %v390
  %1015 = vmatprep.subr.mxu0 %v393
  %1016 = vmatpush1.msra.mxu0 %v392
  %1017 = vmatprep.subr.mxu0 %v395
  %1018 = vmatpush1.msra.mxu0 %v394
  %1019 = vmatprep.subr.mxu0 %v397
  %1020 = vmatpush1.msra.mxu0 %v396
  %1021 = vmatprep.subr.mxu0 %v399
  %1022 = vmatpush1.msra.mxu0 %v398
  %1023 = vmatprep.subr.mxu0 %v401
  %1024 = vmatpush1.msra.mxu0 %v400
  %1025 = vmatprep.subr.mxu0 %v403
  %1026 = vmatpush1.msra.mxu0 %v402
  %1027 = vmatprep.subr.mxu0 %v405
  %1028 = vmatpush1.msra.mxu0 %v404
  %1029 = vmatprep.subr.mxu0 %v407
  %1030 = vmatpush1.msra.mxu0 %v406
  %1031 = vmatprep.subr.mxu0 %v409
  %1032 = vmatpush1.msra.mxu0 %v408
  %1033 = vmatprep.subr.mxu0 %v411
  %1034 = vmatpush1.msra.mxu0 %v410
  %1035 = vmatprep.subr.mxu0 %v413
  %1036 = vmatpush1.msra.mxu0 %v412
  %1037 = vmatprep.subr.mxu0 %v415
  %1038 = vmatpush1.msra.mxu0 %v414
  %1039 = vmatprep.mubr.f32.mxu0 %v25
  %1040 = vmatmul.mubr.f32.gmra.mrb[0].mxu0 %v24
  %v1041 = vpop.f32.mrb[0].mxu0
  %v1042 = vadd.f32 %v971, %v1041
  %v1043 = vpop.f32.mrb[0].mxu0
  %v1044 = vadd.f32 %v973, %v1043
  %1045 = vdwg.mxu0
  %1046 = vmatprep.subr.mxu0 %v417
  %1047 = vmatpush1.msra.mxu0 %v416
  %1048 = vmatprep.subr.mxu0 %v419
  %1049 = vmatpush1.msra.mxu0 %v418
  %1050 = vmatprep.subr.mxu0 %v421
  %1051 = vmatpush1.msra.mxu0 %v420
  %1052 = vmatprep.subr.mxu0 %v423
  %1053 = vmatpush1.msra.mxu0 %v422
  %1054 = vmatprep.subr.mxu0 %v425
  %1055 = vmatpush1.msra.mxu0 %v424
  %1056 = vmatprep.subr.mxu0 %v427
  %1057 = vmatpush1.msra.mxu0 %v426
  %1058 = vmatprep.subr.mxu0 %v429
  %1059 = vmatpush1.msra.mxu0 %v428
  %1060 = vmatprep.subr.mxu0 %v431
  %1061 = vmatpush1.msra.mxu0 %v430
  %1062 = vmatprep.subr.mxu0 %v433
  %1063 = vmatpush1.msra.mxu0 %v432
  %1064 = vmatprep.subr.mxu0 %v435
  %1065 = vmatpush1.msra.mxu0 %v434
  %1066 = vmatprep.subr.mxu0 %v437
  %1067 = vmatpush1.msra.mxu0 %v436
  %1068 = vmatprep.subr.mxu0 %v439
  %1069 = vmatpush1.msra.mxu0 %v438
  %1070 = vmatprep.subr.mxu0 %v441
  %1071 = vmatpush1.msra.mxu0 %v440
  %1072 = vmatprep.subr.mxu0 %v443
  %1073 = vmatpush1.msra.mxu0 %v442
  %1074 = vmatprep.subr.mxu0 %v445
  %1075 = vmatpush1.msra.mxu0 %v444
  %1076 = vmatprep.subr.mxu0 %v447
  %1077 = vmatpush1.msra.mxu0 %v446
  %1078 = vmatprep.subr.mxu0 %v449
  %1079 = vmatpush1.msra.mxu0 %v448
  %1080 = vmatprep.subr.mxu0 %v451
  %1081 = vmatpush1.msra.mxu0 %v450
  %1082 = vmatprep.subr.mxu0 %v453
  %1083 = vmatpush1.msra.mxu0 %v452
  %1084 = vmatprep.subr.mxu0 %v455
  %1085 = vmatpush1.msra.mxu0 %v454
  %1086 = vmatprep.subr.mxu0 %v457
  %1087 = vmatpush1.msra.mxu0 %v456
  %1088 = vmatprep.subr.mxu0 %v459
  %1089 = vmatpush1.msra.mxu0 %v458
  %1090 = vmatprep.subr.mxu0 %v461
  %1091 = vmatpush1.msra.mxu0 %v460
  %1092 = vmatprep.subr.mxu0 %v463
  %1093 = vmatpush1.msra.mxu0 %v462
  %1094 = vmatprep.subr.mxu0 %v465
  %1095 = vmatpush1.msra.mxu0 %v464
  %1096 = vmatprep.subr.mxu0 %v467
  %1097 = vmatpush1.msra.mxu0 %v466
  %1098 = vmatprep.subr.mxu0 %v469
  %1099 = vmatpush1.msra.mxu0 %v468
  %1100 = vmatprep.subr.mxu0 %v471
  %1101 = vmatpush1.msra.mxu0 %v470
  %1102 = vmatprep.subr.mxu0 %v473
  %1103 = vmatpush1.msra.mxu0 %v472
  %1104 = vmatprep.subr.mxu0 %v475
  %1105 = vmatpush1.msra.mxu0 %v474
  %1106 = vmatprep.subr.mxu0 %v477
  %1107 = vmatpush1.msra.mxu0 %v476
  %1108 = vmatprep.subr.mxu0 %v479
  %1109 = vmatpush1.msra.mxu0 %v478
  %1110 = vmatprep.mubr.f32.mxu0 %v27
  %1111 = vmatmul.mubr.f32.gmra.mrb[0].mxu0 %v26
  %v1112 = vpop.f32.mrb[0].mxu0
  %v1113 = vadd.f32 %v1042, %v1112
  %v1114 = vpop.f32.mrb[0].mxu0
  %v1115 = vadd.f32 %v1044, %v1114
  %1116 = vdwg.mxu0
  %1117 = vmatprep.subr.mxu0 %v481
  %1118 = vmatpush1.msra.mxu0 %v480
  %1119 = vmatprep.subr.mxu0 %v483
  %1120 = vmatpush1.msra.mxu0 %v482
  %1121 = vmatprep.subr.mxu0 %v485
  %1122 = vmatpush1.msra.mxu0 %v484
  %1123 = vmatprep.subr.mxu0 %v487
  %1124 = vmatpush1.msra.mxu0 %v486
  %1125 = vmatprep.subr.mxu0 %v489
  %1126 = vmatpush1.msra.mxu0 %v488
  %1127 = vmatprep.subr.mxu0 %v491
  %1128 = vmatpush1.msra.mxu0 %v490
  %1129 = vmatprep.subr.mxu0 %v493
  %1130 = vmatpush1.msra.mxu0 %v492
  %1131 = vmatprep.subr.mxu0 %v495
  %1132 = vmatpush1.msra.mxu0 %v494
  %1133 = vmatprep.subr.mxu0 %v497
  %1134 = vmatpush1.msra.mxu0 %v496
  %1135 = vmatprep.subr.mxu0 %v499
  %1136 = vmatpush1.msra.mxu0 %v498
  %1137 = vmatprep.subr.mxu0 %v501
  %1138 = vmatpush1.msra.mxu0 %v500
  %1139 = vmatprep.subr.mxu0 %v503
  %1140 = vmatpush1.msra.mxu0 %v502
  %1141 = vmatprep.subr.mxu0 %v505
  %1142 = vmatpush1.msra.mxu0 %v504
  %1143 = vmatprep.subr.mxu0 %v507
  %1144 = vmatpush1.msra.mxu0 %v506
  %1145 = vmatprep.subr.mxu0 %v509
  %1146 = vmatpush1.msra.mxu0 %v508
  %1147 = vmatprep.subr.mxu0 %v511
  %1148 = vmatpush1.msra.mxu0 %v510
  %1149 = vmatprep.subr.mxu0 %v513
  %1150 = vmatpush1.msra.mxu0 %v512
  %1151 = vmatprep.subr.mxu0 %v515
  %1152 = vmatpush1.msra.mxu0 %v514
  %1153 = vmatprep.subr.mxu0 %v517
  %1154 = vmatpush1.msra.mxu0 %v516
  %1155 = vmatprep.subr.mxu0 %v519
  %1156 = vmatpush1.msra.mxu0 %v518
  %1157 = vmatprep.subr.mxu0 %v521
  %1158 = vmatpush1.msra.mxu0 %v520
  %1159 = vmatprep.subr.mxu0 %v523
  %1160 = vmatpush1.msra.mxu0 %v522
  %1161 = vmatprep.subr.mxu0 %v525
  %1162 = vmatpush1.msra.mxu0 %v524
  %1163 = vmatprep.subr.mxu0 %v527
  %1164 = vmatpush1.msra.mxu0 %v526
  %1165 = vmatprep.subr.mxu0 %v529
  %1166 = vmatpush1.msra.mxu0 %v528
  %1167 = vmatprep.subr.mxu0 %v531
  %1168 = vmatpush1.msra.mxu0 %v530
  %1169 = vmatprep.subr.mxu0 %v533
  %1170 = vmatpush1.msra.mxu0 %v532
  %1171 = vmatprep.subr.mxu0 %v535
  %1172 = vmatpush1.msra.mxu0 %v534
  %1173 = vmatprep.subr.mxu0 %v537
  %1174 = vmatpush1.msra.mxu0 %v536
  %1175 = vmatprep.subr.mxu0 %v539
  %1176 = vmatpush1.msra.mxu0 %v538
  %1177 = vmatprep.subr.mxu0 %v541
  %1178 = vmatpush1.msra.mxu0 %v540
  %1179 = vmatprep.subr.mxu0 %v543
  %1180 = vmatpush1.msra.mxu0 %v542
  %1181 = vmatprep.mubr.f32.mxu0 %v29
  %1182 = vmatmul.mubr.f32.gmra.mrb[0].mxu0 %v28
  %v1183 = vpop.f32.mrb[0].mxu0
  %v1184 = vadd.f32 %v1113, %v1183
  %v1185 = vpop.f32.mrb[0].mxu0
  %v1186 = vadd.f32 %v1115, %v1185
  %1187 = vdwg.mxu0
  %1188 = vmatprep.subr.mxu0 %v545
  %1189 = vmatpush1.msra.mxu0 %v544
  %1190 = vmatprep.subr.mxu0 %v547
  %1191 = vmatpush1.msra.mxu0 %v546
  %1192 = vmatprep.subr.mxu0 %v549
  %1193 = vmatpush1.msra.mxu0 %v548
  %1194 = vmatprep.subr.mxu0 %v551
  %1195 = vmatpush1.msra.mxu0 %v550
  %1196 = vmatprep.subr.mxu0 %v553
  %1197 = vmatpush1.msra.mxu0 %v552
  %1198 = vmatprep.subr.mxu0 %v555
  %1199 = vmatpush1.msra.mxu0 %v554
  %1200 = vmatprep.subr.mxu0 %v557
  %1201 = vmatpush1.msra.mxu0 %v556
  %1202 = vmatprep.subr.mxu0 %v559
  %1203 = vmatpush1.msra.mxu0 %v558
  %1204 = vmatprep.subr.mxu0 %v561
  %1205 = vmatpush1.msra.mxu0 %v560
  %1206 = vmatprep.subr.mxu0 %v563
  %1207 = vmatpush1.msra.mxu0 %v562
  %1208 = vmatprep.subr.mxu0 %v565
  %1209 = vmatpush1.msra.mxu0 %v564
  %1210 = vmatprep.subr.mxu0 %v567
  %1211 = vmatpush1.msra.mxu0 %v566
  %1212 = vmatprep.subr.mxu0 %v569
  %1213 = vmatpush1.msra.mxu0 %v568
  %1214 = vmatprep.subr.mxu0 %v571
  %1215 = vmatpush1.msra.mxu0 %v570
  %1216 = vmatprep.subr.mxu0 %v573
  %1217 = vmatpush1.msra.mxu0 %v572
  %1218 = vmatprep.subr.mxu0 %v575
  %1219 = vmatpush1.msra.mxu0 %v574
  %1220 = vmatprep.subr.mxu0 %v577
  %1221 = vmatpush1.msra.mxu0 %v576
  %1222 = vmatprep.subr.mxu0 %v579
  %1223 = vmatpush1.msra.mxu0 %v578
  %1224 = vmatprep.subr.mxu0 %v581
  %1225 = vmatpush1.msra.mxu0 %v580
  %1226 = vmatprep.subr.mxu0 %v583
  %1227 = vmatpush1.msra.mxu0 %v582
  %1228 = vmatprep.subr.mxu0 %v585
  %1229 = vmatpush1.msra.mxu0 %v584
  %1230 = vmatprep.subr.mxu0 %v587
  %1231 = vmatpush1.msra.mxu0 %v586
  %1232 = vmatprep.subr.mxu0 %v589
  %1233 = vmatpush1.msra.mxu0 %v588
  %1234 = vmatprep.subr.mxu0 %v591
  %1235 = vmatpush1.msra.mxu0 %v590
  %1236 = vmatprep.subr.mxu0 %v593
  %1237 = vmatpush1.msra.mxu0 %v592
  %1238 = vmatprep.subr.mxu0 %v595
  %1239 = vmatpush1.msra.mxu0 %v594
  %1240 = vmatprep.subr.mxu0 %v597
  %1241 = vmatpush1.msra.mxu0 %v596
  %1242 = vmatprep.subr.mxu0 %v599
  %1243 = vmatpush1.msra.mxu0 %v598
  %1244 = vmatprep.subr.mxu0 %v601
  %1245 = vmatpush1.msra.mxu0 %v600
  %1246 = vmatprep.subr.mxu0 %v603
  %1247 = vmatpush1.msra.mxu0 %v602
  %1248 = vmatprep.subr.mxu0 %v605
  %1249 = vmatpush1.msra.mxu0 %v604
  %1250 = vmatprep.subr.mxu0 %v607
  %1251 = vmatpush1.msra.mxu0 %v606
  %1252 = vmatprep.mubr.f32.mxu0 %v31
  %1253 = vmatmul.mubr.f32.gmra.mrb[0].mxu0 %v30
  %v1254 = vpop.f32.mrb[0].mxu0
  %v1255 = vadd.f32 %v1184, %v1254
  %v1256 = vpop.f32.mrb[0].mxu0
  %v1257 = vadd.f32 %v1186, %v1256
  %1258 = vdwg.mxu0
  %v1259 = vmax.f32 %v1255, 0.0
  %v1260 = vmax.f32 %v1257, 0.0
  %1261 = vst [vmem:[%s3] sm:$0xff] %v1259
  %1262 = vst [vmem:[%s3 + $0x8] sm:$0xff] %v1260
  // Predicated region
  $region14: #{autoencoder_6_forward.11} parent=0 // pred_check
    _
  $region15: #{autoencoder_6_forward.11} parent=0 // pred_check_branch
    %1264 = sbr.rel (0) target = $region17
  $region16: #{autoencoder_6_forward.11} parent=0 // pred_region
    _
  $region17: #{autoencoder_6_forward.11} parent=0 // pred_fallthru
    _
  // Predicated region
  $region18: #{autoencoder_6_forward.11} parent=0 // pred_check
    _
  $region19: #{autoencoder_6_forward.11} parent=0 // pred_check_branch
    %1266 = sbr.rel (0) target = $region21
  $region20: #{autoencoder_6_forward.11} parent=0 // pred_region
    _
  $region21: #{autoencoder_6_forward.11} parent=0 // pred_fallthru
    _

// kernel: tile.22
$region0: #{tile.22}
  #allocation0 [shape = 's32[1]{0}', space=sflag, size = 0x4, scoped, tag = 'scoped memory for tile.22']
  %s0 = inlined_call_operand.vmem [shape: f32[128], index: 0, kind: input, shape index: {}]
  %s1 = inlined_call_operand.vmem [shape: f32[4,128], index: 1, kind: output, shape index: {}]
  // Predicated region
  $region2: #{tile.22} parent=0 // pred_check
    _
  $region3: #{tile.22} parent=0 // pred_check_branch
    %3 = sbr.rel (0) target = $region5
  $region4: #{tile.22} parent=0 // pred_region
    _
  $region5: #{tile.22} parent=0 // pred_fallthru
    _
  %v4 = vld [vmem:[%s0] ss:$0 sm:$0xff]
  %5 = vst [vmem:[%s1] sm:$0xf] %v4

// kernel: autoencoder_6_forward.12
$region0: #{autoencoder_6_forward.12}
  #allocation0 [shape = 'u32[]', space=smem, size = 0x4, offset = 0x4, fixed_abs, tag = 'smem constant byte address 0x4 - core index']
  #allocation1 [shape = 'u32[144,128]{1,0:T(1,128)}', space=vmem, size = 0x12000, scoped, tag = 'internal scratch']
  %s0 = inlined_call_operand.vmem [shape: f32[18,1024], index: 0, kind: input, shape index: {}]
  %s1 = inlined_call_operand.vmem [shape: f32[1024,512], index: 1, kind: input, shape index: {}]
  %s2 = inlined_call_operand.vmem [shape: f32[1,512], index: 2, kind: input, shape index: {}]
  %s3 = inlined_call_operand.vmem [shape: f32[18,512], index: 3, kind: output, shape index: {}]
  %s4 = sld [smem:[#allocation0]]
  $region22: #{autoencoder_6_forward.12} parent=0
    _
  %s6 = ssub.s32 1, %s4
  %s7 = scalar_select 0, %s6, %s4
  // Predicated region
  $region2: #{autoencoder_6_forward.12} parent=0 // pred_check
    _
  $region3: #{autoencoder_6_forward.12} parent=0 // pred_check_branch
    %9 = sbr.rel (0) target = $region5
  $region4: #{autoencoder_6_forward.12} parent=0 // pred_region
    _
  $region5: #{autoencoder_6_forward.12} parent=0 // pred_fallthru
    _
  // Predicated region
  $region6: #{autoencoder_6_forward.12} parent=0 // pred_check
    _
  $region7: #{autoencoder_6_forward.12} parent=0 // pred_check_branch
    %11 = sbr.rel (0) target = $region9
  $region8: #{autoencoder_6_forward.12} parent=0 // pred_region
    _
  $region9: #{autoencoder_6_forward.12} parent=0 // pred_fallthru
    _
  // Predicated region
  $region10: #{autoencoder_6_forward.12} parent=0 // pred_check
    _
  $region11: #{autoencoder_6_forward.12} parent=0 // pred_check_branch
    %13 = sbr.rel (0) target = $region13
  $region12: #{autoencoder_6_forward.12} parent=0 // pred_region
    _
  $region13: #{autoencoder_6_forward.12} parent=0 // pred_fallthru
    _
  %v14 = vld [vmem:[%s0] sm:$0xff]
  %v15 = vld [vmem:[%s0 + $0x8] sm:$0xff]
  %v16 = vld [vmem:[%s0 + $0x10] sm:$0xff]
  %v17 = vld [vmem:[%s0 + $0x18] sm:$0xff]
  %v18 = vld [vmem:[%s0 + $0x20] sm:$0xff]
  %v19 = vld [vmem:[%s0 + $0x28] sm:$0xff]
  %v20 = vld [vmem:[%s0 + $0x30] sm:$0xff]
  %v21 = vld [vmem:[%s0 + $0x38] sm:$0xff]
  %v22 = vld [vmem:[%s0 + $0x40] sm:$0xff]
  %v23 = vld [vmem:[%s0 + $0x48] sm:$0xff]
  %v24 = vld [vmem:[%s0 + $0x50] sm:$0xff]
  %v25 = vld [vmem:[%s0 + $0x58] sm:$0xff]
  %v26 = vld [vmem:[%s0 + $0x60] sm:$0xff]
  %v27 = vld [vmem:[%s0 + $0x68] sm:$0xff]
  %v28 = vld [vmem:[%s0 + $0x70] sm:$0xff]
  %v29 = vld [vmem:[%s0 + $0x78] sm:$0xff]
  %v30 = vld [vmem:[%s0 + $0x80] sm:$0x3]
  %v31 = vld [vmem:[%s0 + $0x88] sm:$0x3]
  %v32 = vld [vmem:[%s0 + $0x90] sm:$0x3]
  %v33 = vld [vmem:[%s0 + $0x98] sm:$0x3]
  %v34 = vld [vmem:[%s0 + $0xa0] sm:$0x3]
  %v35 = vld [vmem:[%s0 + $0xa8] sm:$0x3]
  %v36 = vld [vmem:[%s0 + $0xb0] sm:$0x3]
  %v37 = vld [vmem:[%s0 + $0xb8] sm:$0x3]
  %v38 = vld [vmem:[%s1] sm:$0xff]
  %v39 = vld [vmem:[%s1 + $0x8] sm:$0xff]
  %v40 = vld [vmem:[%s1 + $0x10] sm:$0xff]
  %v41 = vld [vmem:[%s1 + $0x18] sm:$0xff]
  %v42 = vld [vmem:[%s1 + $0x20] sm:$0xff]
  %v43 = vld [vmem:[%s1 + $0x28] sm:$0xff]
  %v44 = vld [vmem:[%s1 + $0x30] sm:$0xff]
  %v45 = vld [vmem:[%s1 + $0x38] sm:$0xff]
  %v46 = vld [vmem:[%s1 + $0x40] sm:$0xff]
  %v47 = vld [vmem:[%s1 + $0x48] sm:$0xff]
  %v48 = vld [vmem:[%s1 + $0x50] sm:$0xff]
  %v49 = vld [vmem:[%s1 + $0x58] sm:$0xff]
  %v50 = vld [vmem:[%s1 + $0x60] sm:$0xff]
  %v51 = vld [vmem:[%s1 + $0x68] sm:$0xff]
  %v52 = vld [vmem:[%s1 + $0x70] sm:$0xff]
  %v53 = vld [vmem:[%s1 + $0x78] sm:$0xff]
  %v54 = vld [vmem:[%s1 + $0x80] sm:$0xff]
  %v55 = vld [vmem:[%s1 + $0x88] sm:$0xff]
  %v56 = vld [vmem:[%s1 + $0x90] sm:$0xff]
  %v57 = vld [vmem:[%s1 + $0x98] sm:$0xff]
  %v58 = vld [vmem:[%s1 + $0xa0] sm:$0xff]
  %v59 = vld [vmem:[%s1 + $0xa8] sm:$0xff]
  %v60 = vld [vmem:[%s1 + $0xb0] sm:$0xff]
  %v61 = vld [vmem:[%s1 + $0xb8] sm:$0xff]
  %v62 = vld [vmem:[%s1 + $0xc0] sm:$0xff]
  %v63 = vld [vmem:[%s1 + $0xc8] sm:$0xff]
  %v64 = vld [vmem:[%s1 + $0xd0] sm:$0xff]
  %v65 = vld [vmem:[%s1 + $0xd8] sm:$0xff]
  %v66 = vld [vmem:[%s1 + $0xe0] sm:$0xff]
  %v67 = vld [vmem:[%s1 + $0xe8] sm:$0xff]
  %v68 = vld [vmem:[%s1 + $0xf0] sm:$0xff]
  %v69 = vld [vmem:[%s1 + $0xf8] sm:$0xff]
  %v70 = vld [vmem:[%s1 + $0x100] sm:$0xff]
  %v71 = vld [vmem:[%s1 + $0x108] sm:$0xff]
  %v72 = vld [vmem:[%s1 + $0x110] sm:$0xff]
  %v73 = vld [vmem:[%s1 + $0x118] sm:$0xff]
  %v74 = vld [vmem:[%s1 + $0x120] sm:$0xff]
  %v75 = vld [vmem:[%s1 + $0x128] sm:$0xff]
  %v76 = vld [vmem:[%s1 + $0x130] sm:$0xff]
  %v77 = vld [vmem:[%s1 + $0x138] sm:$0xff]
  %v78 = vld [vmem:[%s1 + $0x140] sm:$0xff]
  %v79 = vld [vmem:[%s1 + $0x148] sm:$0xff]
  %v80 = vld [vmem:[%s1 + $0x150] sm:$0xff]
  %v81 = vld [vmem:[%s1 + $0x158] sm:$0xff]
  %v82 = vld [vmem:[%s1 + $0x160] sm:$0xff]
  %v83 = vld [vmem:[%s1 + $0x168] sm:$0xff]
  %v84 = vld [vmem:[%s1 + $0x170] sm:$0xff]
  %v85 = vld [vmem:[%s1 + $0x178] sm:$0xff]
  %v86 = vld [vmem:[%s1 + $0x180] sm:$0xff]
  %v87 = vld [vmem:[%s1 + $0x188] sm:$0xff]
  %v88 = vld [vmem:[%s1 + $0x190] sm:$0xff]
  %v89 = vld [vmem:[%s1 + $0x198] sm:$0xff]
  %v90 = vld [vmem:[%s1 + $0x1a0] sm:$0xff]
  %v91 = vld [vmem:[%s1 + $0x1a8] sm:$0xff]
  %v92 = vld [vmem:[%s1 + $0x1b0] sm:$0xff]
  %v93 = vld [vmem:[%s1 + $0x1b8] sm:$0xff]
  %v94 = vld [vmem:[%s1 + $0x1c0] sm:$0xff]
  %v95 = vld [vmem:[%s1 + $0x1c8] sm:$0xff]
  %v96 = vld [vmem:[%s1 + $0x1d0] sm:$0xff]
  %v97 = vld [vmem:[%s1 + $0x1d8] sm:$0xff]
  %v98 = vld [vmem:[%s1 + $0x1e0] sm:$0xff]
  %v99 = vld [vmem:[%s1 + $0x1e8] sm:$0xff]
  %v100 = vld [vmem:[%s1 + $0x1f0] sm:$0xff]
  %v101 = vld [vmem:[%s1 + $0x1f8] sm:$0xff]
  %v102 = vld [vmem:[%s1 + $0x200] sm:$0xff]
  %v103 = vld [vmem:[%s1 + $0x208] sm:$0xff]
  %v104 = vld [vmem:[%s1 + $0x210] sm:$0xff]
  %v105 = vld [vmem:[%s1 + $0x218] sm:$0xff]
  %v106 = vld [vmem:[%s1 + $0x220] sm:$0xff]
  %v107 = vld [vmem:[%s1 + $0x228] sm:$0xff]
  %v108 = vld [vmem:[%s1 + $0x230] sm:$0xff]
  %v109 = vld [vmem:[%s1 + $0x238] sm:$0xff]
  %v110 = vld [vmem:[%s1 + $0x240] sm:$0xff]
  %v111 = vld [vmem:[%s1 + $0x248] sm:$0xff]
  %v112 = vld [vmem:[%s1 + $0x250] sm:$0xff]
  %v113 = vld [vmem:[%s1 + $0x258] sm:$0xff]
  %v114 = vld [vmem:[%s1 + $0x260] sm:$0xff]
  %v115 = vld [vmem:[%s1 + $0x268] sm:$0xff]
  %v116 = vld [vmem:[%s1 + $0x270] sm:$0xff]
  %v117 = vld [vmem:[%s1 + $0x278] sm:$0xff]
  %v118 = vld [vmem:[%s1 + $0x280] sm:$0xff]
  %v119 = vld [vmem:[%s1 + $0x288] sm:$0xff]
  %v120 = vld [vmem:[%s1 + $0x290] sm:$0xff]
  %v121 = vld [vmem:[%s1 + $0x298] sm:$0xff]
  %v122 = vld [vmem:[%s1 + $0x2a0] sm:$0xff]
  %v123 = vld [vmem:[%s1 + $0x2a8] sm:$0xff]
  %v124 = vld [vmem:[%s1 + $0x2b0] sm:$0xff]
  %v125 = vld [vmem:[%s1 + $0x2b8] sm:$0xff]
  %v126 = vld [vmem:[%s1 + $0x2c0] sm:$0xff]
  %v127 = vld [vmem:[%s1 + $0x2c8] sm:$0xff]
  %v128 = vld [vmem:[%s1 + $0x2d0] sm:$0xff]
  %v129 = vld [vmem:[%s1 + $0x2d8] sm:$0xff]
  %v130 = vld [vmem:[%s1 + $0x2e0] sm:$0xff]
  %v131 = vld [vmem:[%s1 + $0x2e8] sm:$0xff]
  %v132 = vld [vmem:[%s1 + $0x2f0] sm:$0xff]
  %v133 = vld [vmem:[%s1 + $0x2f8] sm:$0xff]
  %v134 = vld [vmem:[%s1 + $0x300] sm:$0xff]
  %v135 = vld [vmem:[%s1 + $0x308] sm:$0xff]
  %v136 = vld [vmem:[%s1 + $0x310] sm:$0xff]
  %v137 = vld [vmem:[%s1 + $0x318] sm:$0xff]
  %v138 = vld [vmem:[%s1 + $0x320] sm:$0xff]
  %v139 = vld [vmem:[%s1 + $0x328] sm:$0xff]
  %v140 = vld [vmem:[%s1 + $0x330] sm:$0xff]
  %v141 = vld [vmem:[%s1 + $0x338] sm:$0xff]
  %v142 = vld [vmem:[%s1 + $0x340] sm:$0xff]
  %v143 = vld [vmem:[%s1 + $0x348] sm:$0xff]
  %v144 = vld [vmem:[%s1 + $0x350] sm:$0xff]
  %v145 = vld [vmem:[%s1 + $0x358] sm:$0xff]
  %v146 = vld [vmem:[%s1 + $0x360] sm:$0xff]
  %v147 = vld [vmem:[%s1 + $0x368] sm:$0xff]
  %v148 = vld [vmem:[%s1 + $0x370] sm:$0xff]
  %v149 = vld [vmem:[%s1 + $0x378] sm:$0xff]
  %v150 = vld [vmem:[%s1 + $0x380] sm:$0xff]
  %v151 = vld [vmem:[%s1 + $0x388] sm:$0xff]
  %v152 = vld [vmem:[%s1 + $0x390] sm:$0xff]
  %v153 = vld [vmem:[%s1 + $0x398] sm:$0xff]
  %v154 = vld [vmem:[%s1 + $0x3a0] sm:$0xff]
  %v155 = vld [vmem:[%s1 + $0x3a8] sm:$0xff]
  %v156 = vld [vmem:[%s1 + $0x3b0] sm:$0xff]
  %v157 = vld [vmem:[%s1 + $0x3b8] sm:$0xff]
  %v158 = vld [vmem:[%s1 + $0x3c0] sm:$0xff]
  %v159 = vld [vmem:[%s1 + $0x3c8] sm:$0xff]
  %v160 = vld [vmem:[%s1 + $0x3d0] sm:$0xff]
  %v161 = vld [vmem:[%s1 + $0x3d8] sm:$0xff]
  %v162 = vld [vmem:[%s1 + $0x3e0] sm:$0xff]
  %v163 = vld [vmem:[%s1 + $0x3e8] sm:$0xff]
  %v164 = vld [vmem:[%s1 + $0x3f0] sm:$0xff]
  %v165 = vld [vmem:[%s1 + $0x3f8] sm:$0xff]
  %v166 = vld [vmem:[%s1 + $0x400] sm:$0xff]
  %v167 = vld [vmem:[%s1 + $0x408] sm:$0xff]
  %v168 = vld [vmem:[%s1 + $0x410] sm:$0xff]
  %v169 = vld [vmem:[%s1 + $0x418] sm:$0xff]
  %v170 = vld [vmem:[%s1 + $0x420] sm:$0xff]
  %v171 = vld [vmem:[%s1 + $0x428] sm:$0xff]
  %v172 = vld [vmem:[%s1 + $0x430] sm:$0xff]
  %v173 = vld [vmem:[%s1 + $0x438] sm:$0xff]
  %v174 = vld [vmem:[%s1 + $0x440] sm:$0xff]
  %v175 = vld [vmem:[%s1 + $0x448] sm:$0xff]
  %v176 = vld [vmem:[%s1 + $0x450] sm:$0xff]
  %v177 = vld [vmem:[%s1 + $0x458] sm:$0xff]
  %v178 = vld [vmem:[%s1 + $0x460] sm:$0xff]
  %v179 = vld [vmem:[%s1 + $0x468] sm:$0xff]
  %v180 = vld [vmem:[%s1 + $0x470] sm:$0xff]
  %v181 = vld [vmem:[%s1 + $0x478] sm:$0xff]
  %v182 = vld [vmem:[%s1 + $0x480] sm:$0xff]
  %v183 = vld [vmem:[%s1 + $0x488] sm:$0xff]
  %v184 = vld [vmem:[%s1 + $0x490] sm:$0xff]
  %v185 = vld [vmem:[%s1 + $0x498] sm:$0xff]
  %v186 = vld [vmem:[%s1 + $0x4a0] sm:$0xff]
  %v187 = vld [vmem:[%s1 + $0x4a8] sm:$0xff]
  %v188 = vld [vmem:[%s1 + $0x4b0] sm:$0xff]
  %v189 = vld [vmem:[%s1 + $0x4b8] sm:$0xff]
  %v190 = vld [vmem:[%s1 + $0x4c0] sm:$0xff]
  %v191 = vld [vmem:[%s1 + $0x4c8] sm:$0xff]
  %v192 = vld [vmem:[%s1 + $0x4d0] sm:$0xff]
  %v193 = vld [vmem:[%s1 + $0x4d8] sm:$0xff]
  %v194 = vld [vmem:[%s1 + $0x4e0] sm:$0xff]
  %v195 = vld [vmem:[%s1 + $0x4e8] sm:$0xff]
  %v196 = vld [vmem:[%s1 + $0x4f0] sm:$0xff]
  %v197 = vld [vmem:[%s1 + $0x4f8] sm:$0xff]
  %v198 = vld [vmem:[%s1 + $0x500] sm:$0xff]
  %v199 = vld [vmem:[%s1 + $0x508] sm:$0xff]
  %v200 = vld [vmem:[%s1 + $0x510] sm:$0xff]
  %v201 = vld [vmem:[%s1 + $0x518] sm:$0xff]
  %v202 = vld [vmem:[%s1 + $0x520] sm:$0xff]
  %v203 = vld [vmem:[%s1 + $0x528] sm:$0xff]
  %v204 = vld [vmem:[%s1 + $0x530] sm:$0xff]
  %v205 = vld [vmem:[%s1 + $0x538] sm:$0xff]
  %v206 = vld [vmem:[%s1 + $0x540] sm:$0xff]
  %v207 = vld [vmem:[%s1 + $0x548] sm:$0xff]
  %v208 = vld [vmem:[%s1 + $0x550] sm:$0xff]
  %v209 = vld [vmem:[%s1 + $0x558] sm:$0xff]
  %v210 = vld [vmem:[%s1 + $0x560] sm:$0xff]
  %v211 = vld [vmem:[%s1 + $0x568] sm:$0xff]
  %v212 = vld [vmem:[%s1 + $0x570] sm:$0xff]
  %v213 = vld [vmem:[%s1 + $0x578] sm:$0xff]
  %v214 = vld [vmem:[%s1 + $0x580] sm:$0xff]
  %v215 = vld [vmem:[%s1 + $0x588] sm:$0xff]
  %v216 = vld [vmem:[%s1 + $0x590] sm:$0xff]
  %v217 = vld [vmem:[%s1 + $0x598] sm:$0xff]
  %v218 = vld [vmem:[%s1 + $0x5a0] sm:$0xff]
  %v219 = vld [vmem:[%s1 + $0x5a8] sm:$0xff]
  %v220 = vld [vmem:[%s1 + $0x5b0] sm:$0xff]
  %v221 = vld [vmem:[%s1 + $0x5b8] sm:$0xff]
  %v222 = vld [vmem:[%s1 + $0x5c0] sm:$0xff]
  %v223 = vld [vmem:[%s1 + $0x5c8] sm:$0xff]
  %v224 = vld [vmem:[%s1 + $0x5d0] sm:$0xff]
  %v225 = vld [vmem:[%s1 + $0x5d8] sm:$0xff]
  %v226 = vld [vmem:[%s1 + $0x5e0] sm:$0xff]
  %v227 = vld [vmem:[%s1 + $0x5e8] sm:$0xff]
  %v228 = vld [vmem:[%s1 + $0x5f0] sm:$0xff]
  %v229 = vld [vmem:[%s1 + $0x5f8] sm:$0xff]
  %v230 = vld [vmem:[%s1 + $0x600] sm:$0xff]
  %v231 = vld [vmem:[%s1 + $0x608] sm:$0xff]
  %v232 = vld [vmem:[%s1 + $0x610] sm:$0xff]
  %v233 = vld [vmem:[%s1 + $0x618] sm:$0xff]
  %v234 = vld [vmem:[%s1 + $0x620] sm:$0xff]
  %v235 = vld [vmem:[%s1 + $0x628] sm:$0xff]
  %v236 = vld [vmem:[%s1 + $0x630] sm:$0xff]
  %v237 = vld [vmem:[%s1 + $0x638] sm:$0xff]
  %v238 = vld [vmem:[%s1 + $0x640] sm:$0xff]
  %v239 = vld [vmem:[%s1 + $0x648] sm:$0xff]
  %v240 = vld [vmem:[%s1 + $0x650] sm:$0xff]
  %v241 = vld [vmem:[%s1 + $0x658] sm:$0xff]
  %v242 = vld [vmem:[%s1 + $0x660] sm:$0xff]
  %v243 = vld [vmem:[%s1 + $0x668] sm:$0xff]
  %v244 = vld [vmem:[%s1 + $0x670] sm:$0xff]
  %v245 = vld [vmem:[%s1 + $0x678] sm:$0xff]
  %v246 = vld [vmem:[%s1 + $0x680] sm:$0xff]
  %v247 = vld [vmem:[%s1 + $0x688] sm:$0xff]
  %v248 = vld [vmem:[%s1 + $0x690] sm:$0xff]
  %v249 = vld [vmem:[%s1 + $0x698] sm:$0xff]
  %v250 = vld [vmem:[%s1 + $0x6a0] sm:$0xff]
  %v251 = vld [vmem:[%s1 + $0x6a8] sm:$0xff]
  %v252 = vld [vmem:[%s1 + $0x6b0] sm:$0xff]
  %v253 = vld [vmem:[%s1 + $0x6b8] sm:$0xff]
  %v254 = vld [vmem:[%s1 + $0x6c0] sm:$0xff]
  %v255 = vld [vmem:[%s1 + $0x6c8] sm:$0xff]
  %v256 = vld [vmem:[%s1 + $0x6d0] sm:$0xff]
  %v257 = vld [vmem:[%s1 + $0x6d8] sm:$0xff]
  %v258 = vld [vmem:[%s1 + $0x6e0] sm:$0xff]
  %v259 = vld [vmem:[%s1 + $0x6e8] sm:$0xff]
  %v260 = vld [vmem:[%s1 + $0x6f0] sm:$0xff]
  %v261 = vld [vmem:[%s1 + $0x6f8] sm:$0xff]
  %v262 = vld [vmem:[%s1 + $0x700] sm:$0xff]
  %v263 = vld [vmem:[%s1 + $0x708] sm:$0xff]
  %v264 = vld [vmem:[%s1 + $0x710] sm:$0xff]
  %v265 = vld [vmem:[%s1 + $0x718] sm:$0xff]
  %v266 = vld [vmem:[%s1 + $0x720] sm:$0xff]
  %v267 = vld [vmem:[%s1 + $0x728] sm:$0xff]
  %v268 = vld [vmem:[%s1 + $0x730] sm:$0xff]
  %v269 = vld [vmem:[%s1 + $0x738] sm:$0xff]
  %v270 = vld [vmem:[%s1 + $0x740] sm:$0xff]
  %v271 = vld [vmem:[%s1 + $0x748] sm:$0xff]
  %v272 = vld [vmem:[%s1 + $0x750] sm:$0xff]
  %v273 = vld [vmem:[%s1 + $0x758] sm:$0xff]
  %v274 = vld [vmem:[%s1 + $0x760] sm:$0xff]
  %v275 = vld [vmem:[%s1 + $0x768] sm:$0xff]
  %v276 = vld [vmem:[%s1 + $0x770] sm:$0xff]
  %v277 = vld [vmem:[%s1 + $0x778] sm:$0xff]
  %v278 = vld [vmem:[%s1 + $0x780] sm:$0xff]
  %v279 = vld [vmem:[%s1 + $0x788] sm:$0xff]
  %v280 = vld [vmem:[%s1 + $0x790] sm:$0xff]
  %v281 = vld [vmem:[%s1 + $0x798] sm:$0xff]
  %v282 = vld [vmem:[%s1 + $0x7a0] sm:$0xff]
  %v283 = vld [vmem:[%s1 + $0x7a8] sm:$0xff]
  %v284 = vld [vmem:[%s1 + $0x7b0] sm:$0xff]
  %v285 = vld [vmem:[%s1 + $0x7b8] sm:$0xff]
  %v286 = vld [vmem:[%s1 + $0x7c0] sm:$0xff]
  %v287 = vld [vmem:[%s1 + $0x7c8] sm:$0xff]
  %v288 = vld [vmem:[%s1 + $0x7d0] sm:$0xff]
  %v289 = vld [vmem:[%s1 + $0x7d8] sm:$0xff]
  %v290 = vld [vmem:[%s1 + $0x7e0] sm:$0xff]
  %v291 = vld [vmem:[%s1 + $0x7e8] sm:$0xff]
  %v292 = vld [vmem:[%s1 + $0x7f0] sm:$0xff]
  %v293 = vld [vmem:[%s1 + $0x7f8] sm:$0xff]
  %v294 = vld [vmem:[%s1 + $0x800] sm:$0xff]
  %v295 = vld [vmem:[%s1 + $0x808] sm:$0xff]
  %v296 = vld [vmem:[%s1 + $0x810] sm:$0xff]
  %v297 = vld [vmem:[%s1 + $0x818] sm:$0xff]
  %v298 = vld [vmem:[%s1 + $0x820] sm:$0xff]
  %v299 = vld [vmem:[%s1 + $0x828] sm:$0xff]
  %v300 = vld [vmem:[%s1 + $0x830] sm:$0xff]
  %v301 = vld [vmem:[%s1 + $0x838] sm:$0xff]
  %v302 = vld [vmem:[%s1 + $0x840] sm:$0xff]
  %v303 = vld [vmem:[%s1 + $0x848] sm:$0xff]
  %v304 = vld [vmem:[%s1 + $0x850] sm:$0xff]
  %v305 = vld [vmem:[%s1 + $0x858] sm:$0xff]
  %v306 = vld [vmem:[%s1 + $0x860] sm:$0xff]
  %v307 = vld [vmem:[%s1 + $0x868] sm:$0xff]
  %v308 = vld [vmem:[%s1 + $0x870] sm:$0xff]
  %v309 = vld [vmem:[%s1 + $0x878] sm:$0xff]
  %v310 = vld [vmem:[%s1 + $0x880] sm:$0xff]
  %v311 = vld [vmem:[%s1 + $0x888] sm:$0xff]
  %v312 = vld [vmem:[%s1 + $0x890] sm:$0xff]
  %v313 = vld [vmem:[%s1 + $0x898] sm:$0xff]
  %v314 = vld [vmem:[%s1 + $0x8a0] sm:$0xff]
  %v315 = vld [vmem:[%s1 + $0x8a8] sm:$0xff]
  %v316 = vld [vmem:[%s1 + $0x8b0] sm:$0xff]
  %v317 = vld [vmem:[%s1 + $0x8b8] sm:$0xff]
  %v318 = vld [vmem:[%s1 + $0x8c0] sm:$0xff]
  %v319 = vld [vmem:[%s1 + $0x8c8] sm:$0xff]
  %v320 = vld [vmem:[%s1 + $0x8d0] sm:$0xff]
  %v321 = vld [vmem:[%s1 + $0x8d8] sm:$0xff]
  %v322 = vld [vmem:[%s1 + $0x8e0] sm:$0xff]
  %v323 = vld [vmem:[%s1 + $0x8e8] sm:$0xff]
  %v324 = vld [vmem:[%s1 + $0x8f0] sm:$0xff]
  %v325 = vld [vmem:[%s1 + $0x8f8] sm:$0xff]
  %v326 = vld [vmem:[%s1 + $0x900] sm:$0xff]
  %v327 = vld [vmem:[%s1 + $0x908] sm:$0xff]
  %v328 = vld [vmem:[%s1 + $0x910] sm:$0xff]
  %v329 = vld [vmem:[%s1 + $0x918] sm:$0xff]
  %v330 = vld [vmem:[%s1 + $0x920] sm:$0xff]
  %v331 = vld [vmem:[%s1 + $0x928] sm:$0xff]
  %v332 = vld [vmem:[%s1 + $0x930] sm:$0xff]
  %v333 = vld [vmem:[%s1 + $0x938] sm:$0xff]
  %v334 = vld [vmem:[%s1 + $0x940] sm:$0xff]
  %v335 = vld [vmem:[%s1 + $0x948] sm:$0xff]
  %v336 = vld [vmem:[%s1 + $0x950] sm:$0xff]
  %v337 = vld [vmem:[%s1 + $0x958] sm:$0xff]
  %v338 = vld [vmem:[%s1 + $0x960] sm:$0xff]
  %v339 = vld [vmem:[%s1 + $0x968] sm:$0xff]
  %v340 = vld [vmem:[%s1 + $0x970] sm:$0xff]
  %v341 = vld [vmem:[%s1 + $0x978] sm:$0xff]
  %v342 = vld [vmem:[%s1 + $0x980] sm:$0xff]
  %v343 = vld [vmem:[%s1 + $0x988] sm:$0xff]
  %v344 = vld [vmem:[%s1 + $0x990] sm:$0xff]
  %v345 = vld [vmem:[%s1 + $0x998] sm:$0xff]
  %v346 = vld [vmem:[%s1 + $0x9a0] sm:$0xff]
  %v347 = vld [vmem:[%s1 + $0x9a8] sm:$0xff]
  %v348 = vld [vmem:[%s1 + $0x9b0] sm:$0xff]
  %v349 = vld [vmem:[%s1 + $0x9b8] sm:$0xff]
  %v350 = vld [vmem:[%s1 + $0x9c0] sm:$0xff]
  %v351 = vld [vmem:[%s1 + $0x9c8] sm:$0xff]
  %v352 = vld [vmem:[%s1 + $0x9d0] sm:$0xff]
  %v353 = vld [vmem:[%s1 + $0x9d8] sm:$0xff]
  %v354 = vld [vmem:[%s1 + $0x9e0] sm:$0xff]
  %v355 = vld [vmem:[%s1 + $0x9e8] sm:$0xff]
  %v356 = vld [vmem:[%s1 + $0x9f0] sm:$0xff]
  %v357 = vld [vmem:[%s1 + $0x9f8] sm:$0xff]
  %v358 = vld [vmem:[%s1 + $0xa00] sm:$0xff]
  %v359 = vld [vmem:[%s1 + $0xa08] sm:$0xff]
  %v360 = vld [vmem:[%s1 + $0xa10] sm:$0xff]
  %v361 = vld [vmem:[%s1 + $0xa18] sm:$0xff]
  %v362 = vld [vmem:[%s1 + $0xa20] sm:$0xff]
  %v363 = vld [vmem:[%s1 + $0xa28] sm:$0xff]
  %v364 = vld [vmem:[%s1 + $0xa30] sm:$0xff]
  %v365 = vld [vmem:[%s1 + $0xa38] sm:$0xff]
  %v366 = vld [vmem:[%s1 + $0xa40] sm:$0xff]
  %v367 = vld [vmem:[%s1 + $0xa48] sm:$0xff]
  %v368 = vld [vmem:[%s1 + $0xa50] sm:$0xff]
  %v369 = vld [vmem:[%s1 + $0xa58] sm:$0xff]
  %v370 = vld [vmem:[%s1 + $0xa60] sm:$0xff]
  %v371 = vld [vmem:[%s1 + $0xa68] sm:$0xff]
  %v372 = vld [vmem:[%s1 + $0xa70] sm:$0xff]
  %v373 = vld [vmem:[%s1 + $0xa78] sm:$0xff]
  %v374 = vld [vmem:[%s1 + $0xa80] sm:$0xff]
  %v375 = vld [vmem:[%s1 + $0xa88] sm:$0xff]
  %v376 = vld [vmem:[%s1 + $0xa90] sm:$0xff]
  %v377 = vld [vmem:[%s1 + $0xa98] sm:$0xff]
  %v378 = vld [vmem:[%s1 + $0xaa0] sm:$0xff]
  %v379 = vld [vmem:[%s1 + $0xaa8] sm:$0xff]
  %v380 = vld [vmem:[%s1 + $0xab0] sm:$0xff]
  %v381 = vld [vmem:[%s1 + $0xab8] sm:$0xff]
  %v382 = vld [vmem:[%s1 + $0xac0] sm:$0xff]
  %v383 = vld [vmem:[%s1 + $0xac8] sm:$0xff]
  %v384 = vld [vmem:[%s1 + $0xad0] sm:$0xff]
  %v385 = vld [vmem:[%s1 + $0xad8] sm:$0xff]
  %v386 = vld [vmem:[%s1 + $0xae0] sm:$0xff]
  %v387 = vld [vmem:[%s1 + $0xae8] sm:$0xff]
  %v388 = vld [vmem:[%s1 + $0xaf0] sm:$0xff]
  %v389 = vld [vmem:[%s1 + $0xaf8] sm:$0xff]
  %v390 = vld [vmem:[%s1 + $0xb00] sm:$0xff]
  %v391 = vld [vmem:[%s1 + $0xb08] sm:$0xff]
  %v392 = vld [vmem:[%s1 + $0xb10] sm:$0xff]
  %v393 = vld [vmem:[%s1 + $0xb18] sm:$0xff]
  %v394 = vld [vmem:[%s1 + $0xb20] sm:$0xff]
  %v395 = vld [vmem:[%s1 + $0xb28] sm:$0xff]
  %v396 = vld [vmem:[%s1 + $0xb30] sm:$0xff]
  %v397 = vld [vmem:[%s1 + $0xb38] sm:$0xff]
  %v398 = vld [vmem:[%s1 + $0xb40] sm:$0xff]
  %v399 = vld [vmem:[%s1 + $0xb48] sm:$0xff]
  %v400 = vld [vmem:[%s1 + $0xb50] sm:$0xff]
  %v401 = vld [vmem:[%s1 + $0xb58] sm:$0xff]
  %v402 = vld [vmem:[%s1 + $0xb60] sm:$0xff]
  %v403 = vld [vmem:[%s1 + $0xb68] sm:$0xff]
  %v404 = vld [vmem:[%s1 + $0xb70] sm:$0xff]
  %v405 = vld [vmem:[%s1 + $0xb78] sm:$0xff]
  %v406 = vld [vmem:[%s1 + $0xb80] sm:$0xff]
  %v407 = vld [vmem:[%s1 + $0xb88] sm:$0xff]
  %v408 = vld [vmem:[%s1 + $0xb90] sm:$0xff]
  %v409 = vld [vmem:[%s1 + $0xb98] sm:$0xff]
  %v410 = vld [vmem:[%s1 + $0xba0] sm:$0xff]
  %v411 = vld [vmem:[%s1 + $0xba8] sm:$0xff]
  %v412 = vld [vmem:[%s1 + $0xbb0] sm:$0xff]
  %v413 = vld [vmem:[%s1 + $0xbb8] sm:$0xff]
  %v414 = vld [vmem:[%s1 + $0xbc0] sm:$0xff]
  %v415 = vld [vmem:[%s1 + $0xbc8] sm:$0xff]
  %v416 = vld [vmem:[%s1 + $0xbd0] sm:$0xff]
  %v417 = vld [vmem:[%s1 + $0xbd8] sm:$0xff]
  %v418 = vld [vmem:[%s1 + $0xbe0] sm:$0xff]
  %v419 = vld [vmem:[%s1 + $0xbe8] sm:$0xff]
  %v420 = vld [vmem:[%s1 + $0xbf0] sm:$0xff]
  %v421 = vld [vmem:[%s1 + $0xbf8] sm:$0xff]
  %v422 = vld [vmem:[%s1 + $0xc00] sm:$0xff]
  %v423 = vld [vmem:[%s1 + $0xc08] sm:$0xff]
  %v424 = vld [vmem:[%s1 + $0xc10] sm:$0xff]
  %v425 = vld [vmem:[%s1 + $0xc18] sm:$0xff]
  %v426 = vld [vmem:[%s1 + $0xc20] sm:$0xff]
  %v427 = vld [vmem:[%s1 + $0xc28] sm:$0xff]
  %v428 = vld [vmem:[%s1 + $0xc30] sm:$0xff]
  %v429 = vld [vmem:[%s1 + $0xc38] sm:$0xff]
  %v430 = vld [vmem:[%s1 + $0xc40] sm:$0xff]
  %v431 = vld [vmem:[%s1 + $0xc48] sm:$0xff]
  %v432 = vld [vmem:[%s1 + $0xc50] sm:$0xff]
  %v433 = vld [vmem:[%s1 + $0xc58] sm:$0xff]
  %v434 = vld [vmem:[%s1 + $0xc60] sm:$0xff]
  %v435 = vld [vmem:[%s1 + $0xc68] sm:$0xff]
  %v436 = vld [vmem:[%s1 + $0xc70] sm:$0xff]
  %v437 = vld [vmem:[%s1 + $0xc78] sm:$0xff]
  %v438 = vld [vmem:[%s1 + $0xc80] sm:$0xff]
  %v439 = vld [vmem:[%s1 + $0xc88] sm:$0xff]
  %v440 = vld [vmem:[%s1 + $0xc90] sm:$0xff]
  %v441 = vld [vmem:[%s1 + $0xc98] sm:$0xff]
  %v442 = vld [vmem:[%s1 + $0xca0] sm:$0xff]
  %v443 = vld [vmem:[%s1 + $0xca8] sm:$0xff]
  %v444 = vld [vmem:[%s1 + $0xcb0] sm:$0xff]
  %v445 = vld [vmem:[%s1 + $0xcb8] sm:$0xff]
  %v446 = vld [vmem:[%s1 + $0xcc0] sm:$0xff]
  %v447 = vld [vmem:[%s1 + $0xcc8] sm:$0xff]
  %v448 = vld [vmem:[%s1 + $0xcd0] sm:$0xff]
  %v449 = vld [vmem:[%s1 + $0xcd8] sm:$0xff]
  %v450 = vld [vmem:[%s1 + $0xce0] sm:$0xff]
  %v451 = vld [vmem:[%s1 + $0xce8] sm:$0xff]
  %v452 = vld [vmem:[%s1 + $0xcf0] sm:$0xff]
  %v453 = vld [vmem:[%s1 + $0xcf8] sm:$0xff]
  %v454 = vld [vmem:[%s1 + $0xd00] sm:$0xff]
  %v455 = vld [vmem:[%s1 + $0xd08] sm:$0xff]
  %v456 = vld [vmem:[%s1 + $0xd10] sm:$0xff]
  %v457 = vld [vmem:[%s1 + $0xd18] sm:$0xff]
  %v458 = vld [vmem:[%s1 + $0xd20] sm:$0xff]
  %v459 = vld [vmem:[%s1 + $0xd28] sm:$0xff]
  %v460 = vld [vmem:[%s1 + $0xd30] sm:$0xff]
  %v461 = vld [vmem:[%s1 + $0xd38] sm:$0xff]
  %v462 = vld [vmem:[%s1 + $0xd40] sm:$0xff]
  %v463 = vld [vmem:[%s1 + $0xd48] sm:$0xff]
  %v464 = vld [vmem:[%s1 + $0xd50] sm:$0xff]
  %v465 = vld [vmem:[%s1 + $0xd58] sm:$0xff]
  %v466 = vld [vmem:[%s1 + $0xd60] sm:$0xff]
  %v467 = vld [vmem:[%s1 + $0xd68] sm:$0xff]
  %v468 = vld [vmem:[%s1 + $0xd70] sm:$0xff]
  %v469 = vld [vmem:[%s1 + $0xd78] sm:$0xff]
  %v470 = vld [vmem:[%s1 + $0xd80] sm:$0xff]
  %v471 = vld [vmem:[%s1 + $0xd88] sm:$0xff]
  %v472 = vld [vmem:[%s1 + $0xd90] sm:$0xff]
  %v473 = vld [vmem:[%s1 + $0xd98] sm:$0xff]
  %v474 = vld [vmem:[%s1 + $0xda0] sm:$0xff]
  %v475 = vld [vmem:[%s1 + $0xda8] sm:$0xff]
  %v476 = vld [vmem:[%s1 + $0xdb0] sm:$0xff]
  %v477 = vld [vmem:[%s1 + $0xdb8] sm:$0xff]
  %v478 = vld [vmem:[%s1 + $0xdc0] sm:$0xff]
  %v479 = vld [vmem:[%s1 + $0xdc8] sm:$0xff]
  %v480 = vld [vmem:[%s1 + $0xdd0] sm:$0xff]
  %v481 = vld [vmem:[%s1 + $0xdd8] sm:$0xff]
  %v482 = vld [vmem:[%s1 + $0xde0] sm:$0xff]
  %v483 = vld [vmem:[%s1 + $0xde8] sm:$0xff]
  %v484 = vld [vmem:[%s1 + $0xdf0] sm:$0xff]
  %v485 = vld [vmem:[%s1 + $0xdf8] sm:$0xff]
  %v486 = vld [vmem:[%s1 + $0xe00] sm:$0xff]
  %v487 = vld [vmem:[%s1 + $0xe08] sm:$0xff]
  %v488 = vld [vmem:[%s1 + $0xe10] sm:$0xff]
  %v489 = vld [vmem:[%s1 + $0xe18] sm:$0xff]
  %v490 = vld [vmem:[%s1 + $0xe20] sm:$0xff]
  %v491 = vld [vmem:[%s1 + $0xe28] sm:$0xff]
  %v492 = vld [vmem:[%s1 + $0xe30] sm:$0xff]
  %v493 = vld [vmem:[%s1 + $0xe38] sm:$0xff]
  %v494 = vld [vmem:[%s1 + $0xe40] sm:$0xff]
  %v495 = vld [vmem:[%s1 + $0xe48] sm:$0xff]
  %v496 = vld [vmem:[%s1 + $0xe50] sm:$0xff]
  %v497 = vld [vmem:[%s1 + $0xe58] sm:$0xff]
  %v498 = vld [vmem:[%s1 + $0xe60] sm:$0xff]
  %v499 = vld [vmem:[%s1 + $0xe68] sm:$0xff]
  %v500 = vld [vmem:[%s1 + $0xe70] sm:$0xff]
  %v501 = vld [vmem:[%s1 + $0xe78] sm:$0xff]
  %v502 = vld [vmem:[%s1 + $0xe80] sm:$0xff]
  %v503 = vld [vmem:[%s1 + $0xe88] sm:$0xff]
  %v504 = vld [vmem:[%s1 + $0xe90] sm:$0xff]
  %v505 = vld [vmem:[%s1 + $0xe98] sm:$0xff]
  %v506 = vld [vmem:[%s1 + $0xea0] sm:$0xff]
  %v507 = vld [vmem:[%s1 + $0xea8] sm:$0xff]
  %v508 = vld [vmem:[%s1 + $0xeb0] sm:$0xff]
  %v509 = vld [vmem:[%s1 + $0xeb8] sm:$0xff]
  %v510 = vld [vmem:[%s1 + $0xec0] sm:$0xff]
  %v511 = vld [vmem:[%s1 + $0xec8] sm:$0xff]
  %v512 = vld [vmem:[%s1 + $0xed0] sm:$0xff]
  %v513 = vld [vmem:[%s1 + $0xed8] sm:$0xff]
  %v514 = vld [vmem:[%s1 + $0xee0] sm:$0xff]
  %v515 = vld [vmem:[%s1 + $0xee8] sm:$0xff]
  %v516 = vld [vmem:[%s1 + $0xef0] sm:$0xff]
  %v517 = vld [vmem:[%s1 + $0xef8] sm:$0xff]
  %v518 = vld [vmem:[%s1 + $0xf00] sm:$0xff]
  %v519 = vld [vmem:[%s1 + $0xf08] sm:$0xff]
  %v520 = vld [vmem:[%s1 + $0xf10] sm:$0xff]
  %v521 = vld [vmem:[%s1 + $0xf18] sm:$0xff]
  %v522 = vld [vmem:[%s1 + $0xf20] sm:$0xff]
  %v523 = vld [vmem:[%s1 + $0xf28] sm:$0xff]
  %v524 = vld [vmem:[%s1 + $0xf30] sm:$0xff]
  %v525 = vld [vmem:[%s1 + $0xf38] sm:$0xff]
  %v526 = vld [vmem:[%s1 + $0xf40] sm:$0xff]
  %v527 = vld [vmem:[%s1 + $0xf48] sm:$0xff]
  %v528 = vld [vmem:[%s1 + $0xf50] sm:$0xff]
  %v529 = vld [vmem:[%s1 + $0xf58] sm:$0xff]
  %v530 = vld [vmem:[%s1 + $0xf60] sm:$0xff]
  %v531 = vld [vmem:[%s1 + $0xf68] sm:$0xff]
  %v532 = vld [vmem:[%s1 + $0xf70] sm:$0xff]
  %v533 = vld [vmem:[%s1 + $0xf78] sm:$0xff]
  %v534 = vld [vmem:[%s1 + $0xf80] sm:$0xff]
  %v535 = vld [vmem:[%s1 + $0xf88] sm:$0xff]
  %v536 = vld [vmem:[%s1 + $0xf90] sm:$0xff]
  %v537 = vld [vmem:[%s1 + $0xf98] sm:$0xff]
  %v538 = vld [vmem:[%s1 + $0xfa0] sm:$0xff]
  %v539 = vld [vmem:[%s1 + $0xfa8] sm:$0xff]
  %v540 = vld [vmem:[%s1 + $0xfb0] sm:$0xff]
  %v541 = vld [vmem:[%s1 + $0xfb8] sm:$0xff]
  %v542 = vld [vmem:[%s1 + $0xfc0] sm:$0xff]
  %v543 = vld [vmem:[%s1 + $0xfc8] sm:$0xff]
  %v544 = vld [vmem:[%s1 + $0xfd0] sm:$0xff]
  %v545 = vld [vmem:[%s1 + $0xfd8] sm:$0xff]
  %v546 = vld [vmem:[%s1 + $0xfe0] sm:$0xff]
  %v547 = vld [vmem:[%s1 + $0xfe8] sm:$0xff]
  %v548 = vld [vmem:[%s1 + $0xff0] sm:$0xff]
  %v549 = vld [vmem:[%s1 + $0xff8] sm:$0xff]
  %v550 = vld [vmem:[%s2] sm:$0xf]
  %v552 = vlaneseq
  %v553 = vshrl.u32 %v552, 7
  %v554 = vsub.s32 0, %v553
  %v555 = vrot.slane %v550, %v554
  %v556 = vlaneseq
  %v557 = vshrl.u32 %v556, 7
  %v558 = vsub.s32 1, %v557
  %v559 = vrot.slane %v550, %v558
  %v560 = vlaneseq
  %v561 = vshrl.u32 %v560, 7
  %v562 = vsub.s32 2, %v561
  %v563 = vrot.slane %v550, %v562
  %v564 = vlaneseq
  %v565 = vshrl.u32 %v564, 7
  %v566 = vsub.s32 3, %v565
  %v567 = vrot.slane %v550, %v566
  %572 = vmatprep.subr.mxu0 %v39
  %573 = vmatpush1.msra.mxu0 %v38
  %574 = vmatprep.subr.mxu0 %v43
  %575 = vmatpush1.msra.mxu0 %v42
  %576 = vmatprep.subr.mxu0 %v47
  %577 = vmatpush1.msra.mxu0 %v46
  %578 = vmatprep.subr.mxu0 %v51
  %579 = vmatpush1.msra.mxu0 %v50
  %580 = vmatprep.subr.mxu0 %v55
  %581 = vmatpush1.msra.mxu0 %v54
  %582 = vmatprep.subr.mxu0 %v59
  %583 = vmatpush1.msra.mxu0 %v58
  %584 = vmatprep.subr.mxu0 %v63
  %585 = vmatpush1.msra.mxu0 %v62
  %586 = vmatprep.subr.mxu0 %v67
  %587 = vmatpush1.msra.mxu0 %v66
  %588 = vmatprep.subr.mxu0 %v71
  %589 = vmatpush1.msra.mxu0 %v70
  %590 = vmatprep.subr.mxu0 %v75
  %591 = vmatpush1.msra.mxu0 %v74
  %592 = vmatprep.subr.mxu0 %v79
  %593 = vmatpush1.msra.mxu0 %v78
  %594 = vmatprep.subr.mxu0 %v83
  %595 = vmatpush1.msra.mxu0 %v82
  %596 = vmatprep.subr.mxu0 %v87
  %597 = vmatpush1.msra.mxu0 %v86
  %598 = vmatprep.subr.mxu0 %v91
  %599 = vmatpush1.msra.mxu0 %v90
  %600 = vmatprep.subr.mxu0 %v95
  %601 = vmatpush1.msra.mxu0 %v94
  %602 = vmatprep.subr.mxu0 %v99
  %603 = vmatpush1.msra.mxu0 %v98
  %604 = vmatprep.subr.mxu0 %v103
  %605 = vmatpush1.msra.mxu0 %v102
  %606 = vmatprep.subr.mxu0 %v107
  %607 = vmatpush1.msra.mxu0 %v106
  %608 = vmatprep.subr.mxu0 %v111
  %609 = vmatpush1.msra.mxu0 %v110
  %610 = vmatprep.subr.mxu0 %v115
  %611 = vmatpush1.msra.mxu0 %v114
  %612 = vmatprep.subr.mxu0 %v119
  %613 = vmatpush1.msra.mxu0 %v118
  %614 = vmatprep.subr.mxu0 %v123
  %615 = vmatpush1.msra.mxu0 %v122
  %616 = vmatprep.subr.mxu0 %v127
  %617 = vmatpush1.msra.mxu0 %v126
  %618 = vmatprep.subr.mxu0 %v131
  %619 = vmatpush1.msra.mxu0 %v130
  %620 = vmatprep.subr.mxu0 %v135
  %621 = vmatpush1.msra.mxu0 %v134
  %622 = vmatprep.subr.mxu0 %v139
  %623 = vmatpush1.msra.mxu0 %v138
  %624 = vmatprep.subr.mxu0 %v143
  %625 = vmatpush1.msra.mxu0 %v142
  %626 = vmatprep.subr.mxu0 %v147
  %627 = vmatpush1.msra.mxu0 %v146
  %628 = vmatprep.subr.mxu0 %v151
  %629 = vmatpush1.msra.mxu0 %v150
  %630 = vmatprep.subr.mxu0 %v155
  %631 = vmatpush1.msra.mxu0 %v154
  %632 = vmatprep.subr.mxu0 %v159
  %633 = vmatpush1.msra.mxu0 %v158
  %634 = vmatprep.subr.mxu0 %v163
  %635 = vmatpush1.msra.mxu0 %v162
  %636 = vmatprep.mubr.f32.mxu0 %v15
  %637 = vmatmul.mubr.f32.gmra.mrb[0].mxu0 %v14
  %v638 = vpop.f32.mrb[0].mxu0
  %v639 = vadd.f32 %v555, %v638
  %v640 = vpop.f32.mrb[0].mxu0
  %v641 = vadd.f32 %v559, %v640
  %642 = vmatprep.mubr.f32.mxu0 %v23
  %643 = vmatmul.mubr.f32.gmra.mrb[0].mxu0 %v22
  %v644 = vpop.f32.mrb[0].mxu0
  %v645 = vadd.f32 %v555, %v644
  %v646 = vpop.f32.mrb[0].mxu0
  %v647 = vadd.f32 %v559, %v646
  %648 = vmatprep.mubr.f32.mxu0 %v31
  %649 = vmatmul.mubr.f32.gmra.mrb[0].mxu0 %v30
  %v650 = vpop.f32.mrb[0].mxu0
  %v651 = vadd.f32 %v555, %v650
  %v652 = vpop.f32.mrb[0].mxu0
  %v653 = vadd.f32 %v559, %v652
  %654 = vdwg.mxu0
  %655 = vmatprep.subr.mxu0 %v167
  %656 = vmatpush1.msra.mxu0 %v166
  %657 = vmatprep.subr.mxu0 %v171
  %658 = vmatpush1.msra.mxu0 %v170
  %659 = vmatprep.subr.mxu0 %v175
  %660 = vmatpush1.msra.mxu0 %v174
  %661 = vmatprep.subr.mxu0 %v179
  %662 = vmatpush1.msra.mxu0 %v178
  %663 = vmatprep.subr.mxu0 %v183
  %664 = vmatpush1.msra.mxu0 %v182
  %665 = vmatprep.subr.mxu0 %v187
  %666 = vmatpush1.msra.mxu0 %v186
  %667 = vmatprep.subr.mxu0 %v191
  %668 = vmatpush1.msra.mxu0 %v190
  %669 = vmatprep.subr.mxu0 %v195
  %670 = vmatpush1.msra.mxu0 %v194
  %671 = vmatprep.subr.mxu0 %v199
  %672 = vmatpush1.msra.mxu0 %v198
  %673 = vmatprep.subr.mxu0 %v203
  %674 = vmatpush1.msra.mxu0 %v202
  %675 = vmatprep.subr.mxu0 %v207
  %676 = vmatpush1.msra.mxu0 %v206
  %677 = vmatprep.subr.mxu0 %v211
  %678 = vmatpush1.msra.mxu0 %v210
  %679 = vmatprep.subr.mxu0 %v215
  %680 = vmatpush1.msra.mxu0 %v214
  %681 = vmatprep.subr.mxu0 %v219
  %682 = vmatpush1.msra.mxu0 %v218
  %683 = vmatprep.subr.mxu0 %v223
  %684 = vmatpush1.msra.mxu0 %v222
  %685 = vmatprep.subr.mxu0 %v227
  %686 = vmatpush1.msra.mxu0 %v226
  %687 = vmatprep.subr.mxu0 %v231
  %688 = vmatpush1.msra.mxu0 %v230
  %689 = vmatprep.subr.mxu0 %v235
  %690 = vmatpush1.msra.mxu0 %v234
  %691 = vmatprep.subr.mxu0 %v239
  %692 = vmatpush1.msra.mxu0 %v238
  %693 = vmatprep.subr.mxu0 %v243
  %694 = vmatpush1.msra.mxu0 %v242
  %695 = vmatprep.subr.mxu0 %v247
  %696 = vmatpush1.msra.mxu0 %v246
  %697 = vmatprep.subr.mxu0 %v251
  %698 = vmatpush1.msra.mxu0 %v250
  %699 = vmatprep.subr.mxu0 %v255
  %700 = vmatpush1.msra.mxu0 %v254
  %701 = vmatprep.subr.mxu0 %v259
  %702 = vmatpush1.msra.mxu0 %v258
  %703 = vmatprep.subr.mxu0 %v263
  %704 = vmatpush1.msra.mxu0 %v262
  %705 = vmatprep.subr.mxu0 %v267
  %706 = vmatpush1.msra.mxu0 %v266
  %707 = vmatprep.subr.mxu0 %v271
  %708 = vmatpush1.msra.mxu0 %v270
  %709 = vmatprep.subr.mxu0 %v275
  %710 = vmatpush1.msra.mxu0 %v274
  %711 = vmatprep.subr.mxu0 %v279
  %712 = vmatpush1.msra.mxu0 %v278
  %713 = vmatprep.subr.mxu0 %v283
  %714 = vmatpush1.msra.mxu0 %v282
  %715 = vmatprep.subr.mxu0 %v287
  %716 = vmatpush1.msra.mxu0 %v286
  %717 = vmatprep.subr.mxu0 %v291
  %718 = vmatpush1.msra.mxu0 %v290
  %719 = vmatprep.mubr.f32.mxu0 %v17
  %720 = vmatmul.mubr.f32.gmra.mrb[0].mxu0 %v16
  %v721 = vpop.f32.mrb[0].mxu0
  %v722 = vadd.f32 %v639, %v721
  %v723 = vpop.f32.mrb[0].mxu0
  %v724 = vadd.f32 %v641, %v723
  %725 = vmatprep.mubr.f32.mxu0 %v25
  %726 = vmatmul.mubr.f32.gmra.mrb[0].mxu0 %v24
  %v727 = vpop.f32.mrb[0].mxu0
  %v728 = vadd.f32 %v645, %v727
  %v729 = vpop.f32.mrb[0].mxu0
  %v730 = vadd.f32 %v647, %v729
  %731 = vmatprep.mubr.f32.mxu0 %v33
  %732 = vmatmul.mubr.f32.gmra.mrb[0].mxu0 %v32
  %v733 = vpop.f32.mrb[0].mxu0
  %v734 = vadd.f32 %v651, %v733
  %v735 = vpop.f32.mrb[0].mxu0
  %v736 = vadd.f32 %v653, %v735
  %737 = vdwg.mxu0
  %738 = vmatprep.subr.mxu0 %v295
  %739 = vmatpush1.msra.mxu0 %v294
  %740 = vmatprep.subr.mxu0 %v299
  %741 = vmatpush1.msra.mxu0 %v298
  %742 = vmatprep.subr.mxu0 %v303
  %743 = vmatpush1.msra.mxu0 %v302
  %744 = vmatprep.subr.mxu0 %v307
  %745 = vmatpush1.msra.mxu0 %v306
  %746 = vmatprep.subr.mxu0 %v311
  %747 = vmatpush1.msra.mxu0 %v310
  %748 = vmatprep.subr.mxu0 %v315
  %749 = vmatpush1.msra.mxu0 %v314
  %750 = vmatprep.subr.mxu0 %v319
  %751 = vmatpush1.msra.mxu0 %v318
  %752 = vmatprep.subr.mxu0 %v323
  %753 = vmatpush1.msra.mxu0 %v322
  %754 = vmatprep.subr.mxu0 %v327
  %755 = vmatpush1.msra.mxu0 %v326
  %756 = vmatprep.subr.mxu0 %v331
  %757 = vmatpush1.msra.mxu0 %v330
  %758 = vmatprep.subr.mxu0 %v335
  %759 = vmatpush1.msra.mxu0 %v334
  %760 = vmatprep.subr.mxu0 %v339
  %761 = vmatpush1.msra.mxu0 %v338
  %762 = vmatprep.subr.mxu0 %v343
  %763 = vmatpush1.msra.mxu0 %v342
  %764 = vmatprep.subr.mxu0 %v347
  %765 = vmatpush1.msra.mxu0 %v346
  %766 = vmatprep.subr.mxu0 %v351
  %767 = vmatpush1.msra.mxu0 %v350
  %768 = vmatprep.subr.mxu0 %v355
  %769 = vmatpush1.msra.mxu0 %v354
  %770 = vmatprep.subr.mxu0 %v359
  %771 = vmatpush1.msra.mxu0 %v358
  %772 = vmatprep.subr.mxu0 %v363
  %773 = vmatpush1.msra.mxu0 %v362
  %774 = vmatprep.subr.mxu0 %v367
  %775 = vmatpush1.msra.mxu0 %v366
  %776 = vmatprep.subr.mxu0 %v371
  %777 = vmatpush1.msra.mxu0 %v370
  %778 = vmatprep.subr.mxu0 %v375
  %779 = vmatpush1.msra.mxu0 %v374
  %780 = vmatprep.subr.mxu0 %v379
  %781 = vmatpush1.msra.mxu0 %v378
  %782 = vmatprep.subr.mxu0 %v383
  %783 = vmatpush1.msra.mxu0 %v382
  %784 = vmatprep.subr.mxu0 %v387
  %785 = vmatpush1.msra.mxu0 %v386
  %786 = vmatprep.subr.mxu0 %v391
  %787 = vmatpush1.msra.mxu0 %v390
  %788 = vmatprep.subr.mxu0 %v395
  %789 = vmatpush1.msra.mxu0 %v394
  %790 = vmatprep.subr.mxu0 %v399
  %791 = vmatpush1.msra.mxu0 %v398
  %792 = vmatprep.subr.mxu0 %v403
  %793 = vmatpush1.msra.mxu0 %v402
  %794 = vmatprep.subr.mxu0 %v407
  %795 = vmatpush1.msra.mxu0 %v406
  %796 = vmatprep.subr.mxu0 %v411
  %797 = vmatpush1.msra.mxu0 %v410
  %798 = vmatprep.subr.mxu0 %v415
  %799 = vmatpush1.msra.mxu0 %v414
  %800 = vmatprep.subr.mxu0 %v419
  %801 = vmatpush1.msra.mxu0 %v418
  %802 = vmatprep.mubr.f32.mxu0 %v19
  %803 = vmatmul.mubr.f32.gmra.mrb[0].mxu0 %v18
  %v804 = vpop.f32.mrb[0].mxu0
  %v805 = vadd.f32 %v722, %v804
  %v806 = vpop.f32.mrb[0].mxu0
  %v807 = vadd.f32 %v724, %v806
  %808 = vmatprep.mubr.f32.mxu0 %v27
  %809 = vmatmul.mubr.f32.gmra.mrb[0].mxu0 %v26
  %v810 = vpop.f32.mrb[0].mxu0
  %v811 = vadd.f32 %v728, %v810
  %v812 = vpop.f32.mrb[0].mxu0
  %v813 = vadd.f32 %v730, %v812
  %814 = vmatprep.mubr.f32.mxu0 %v35
  %815 = vmatmul.mubr.f32.gmra.mrb[0].mxu0 %v34
  %v816 = vpop.f32.mrb[0].mxu0
  %v817 = vadd.f32 %v734, %v816
  %v818 = vpop.f32.mrb[0].mxu0
  %v819 = vadd.f32 %v736, %v818
  %820 = vdwg.mxu0
  %821 = vmatprep.subr.mxu0 %v423
  %822 = vmatpush1.msra.mxu0 %v422
  %823 = vmatprep.subr.mxu0 %v427
  %824 = vmatpush1.msra.mxu0 %v426
  %825 = vmatprep.subr.mxu0 %v431
  %826 = vmatpush1.msra.mxu0 %v430
  %827 = vmatprep.subr.mxu0 %v435
  %828 = vmatpush1.msra.mxu0 %v434
  %829 = vmatprep.subr.mxu0 %v439
  %830 = vmatpush1.msra.mxu0 %v438
  %831 = vmatprep.subr.mxu0 %v443
  %832 = vmatpush1.msra.mxu0 %v442
  %833 = vmatprep.subr.mxu0 %v447
  %834 = vmatpush1.msra.mxu0 %v446
  %835 = vmatprep.subr.mxu0 %v451
  %836 = vmatpush1.msra.mxu0 %v450
  %837 = vmatprep.subr.mxu0 %v455
  %838 = vmatpush1.msra.mxu0 %v454
  %839 = vmatprep.subr.mxu0 %v459
  %840 = vmatpush1.msra.mxu0 %v458
  %841 = vmatprep.subr.mxu0 %v463
  %842 = vmatpush1.msra.mxu0 %v462
  %843 = vmatprep.subr.mxu0 %v467
  %844 = vmatpush1.msra.mxu0 %v466
  %845 = vmatprep.subr.mxu0 %v471
  %846 = vmatpush1.msra.mxu0 %v470
  %847 = vmatprep.subr.mxu0 %v475
  %848 = vmatpush1.msra.mxu0 %v474
  %849 = vmatprep.subr.mxu0 %v479
  %850 = vmatpush1.msra.mxu0 %v478
  %851 = vmatprep.subr.mxu0 %v483
  %852 = vmatpush1.msra.mxu0 %v482
  %853 = vmatprep.subr.mxu0 %v487
  %854 = vmatpush1.msra.mxu0 %v486
  %855 = vmatprep.subr.mxu0 %v491
  %856 = vmatpush1.msra.mxu0 %v490
  %857 = vmatprep.subr.mxu0 %v495
  %858 = vmatpush1.msra.mxu0 %v494
  %859 = vmatprep.subr.mxu0 %v499
  %860 = vmatpush1.msra.mxu0 %v498
  %861 = vmatprep.subr.mxu0 %v503
  %862 = vmatpush1.msra.mxu0 %v502
  %863 = vmatprep.subr.mxu0 %v507
  %864 = vmatpush1.msra.mxu0 %v506
  %865 = vmatprep.subr.mxu0 %v511
  %866 = vmatpush1.msra.mxu0 %v510
  %867 = vmatprep.subr.mxu0 %v515
  %868 = vmatpush1.msra.mxu0 %v514
  %869 = vmatprep.subr.mxu0 %v519
  %870 = vmatpush1.msra.mxu0 %v518
  %871 = vmatprep.subr.mxu0 %v523
  %872 = vmatpush1.msra.mxu0 %v522
  %873 = vmatprep.subr.mxu0 %v527
  %874 = vmatpush1.msra.mxu0 %v526
  %875 = vmatprep.subr.mxu0 %v531
  %876 = vmatpush1.msra.mxu0 %v530
  %877 = vmatprep.subr.mxu0 %v535
  %878 = vmatpush1.msra.mxu0 %v534
  %879 = vmatprep.subr.mxu0 %v539
  %880 = vmatpush1.msra.mxu0 %v538
  %881 = vmatprep.subr.mxu0 %v543
  %882 = vmatpush1.msra.mxu0 %v542
  %883 = vmatprep.subr.mxu0 %v547
  %884 = vmatpush1.msra.mxu0 %v546
  %885 = vmatprep.mubr.f32.mxu0 %v21
  %886 = vmatmul.mubr.f32.gmra.mrb[0].mxu0 %v20
  %v887 = vpop.f32.mrb[0].mxu0
  %v888 = vadd.f32 %v805, %v887
  %v889 = vpop.f32.mrb[0].mxu0
  %v890 = vadd.f32 %v807, %v889
  %891 = vmatprep.mubr.f32.mxu0 %v29
  %892 = vmatmul.mubr.f32.gmra.mrb[0].mxu0 %v28
  %v893 = vpop.f32.mrb[0].mxu0
  %v894 = vadd.f32 %v811, %v893
  %v895 = vpop.f32.mrb[0].mxu0
  %v896 = vadd.f32 %v813, %v895
  %897 = vmatprep.mubr.f32.mxu0 %v37
  %898 = vmatmul.mubr.f32.gmra.mrb[0].mxu0 %v36
  %v899 = vpop.f32.mrb[0].mxu0
  %v900 = vadd.f32 %v817, %v899
  %v901 = vpop.f32.mrb[0].mxu0
  %v902 = vadd.f32 %v819, %v901
  %903 = vdwg.mxu0
  %904 = vmatprep.subr.mxu0 %v41
  %905 = vmatpush1.msra.mxu0 %v40
  %906 = vmatprep.subr.mxu0 %v45
  %907 = vmatpush1.msra.mxu0 %v44
  %908 = vmatprep.subr.mxu0 %v49
  %909 = vmatpush1.msra.mxu0 %v48
  %910 = vmatprep.subr.mxu0 %v53
  %911 = vmatpush1.msra.mxu0 %v52
  %912 = vmatprep.subr.mxu0 %v57
  %913 = vmatpush1.msra.mxu0 %v56
  %914 = vmatprep.subr.mxu0 %v61
  %915 = vmatpush1.msra.mxu0 %v60
  %916 = vmatprep.subr.mxu0 %v65
  %917 = vmatpush1.msra.mxu0 %v64
  %918 = vmatprep.subr.mxu0 %v69
  %919 = vmatpush1.msra.mxu0 %v68
  %920 = vmatprep.subr.mxu0 %v73
  %921 = vmatpush1.msra.mxu0 %v72
  %922 = vmatprep.subr.mxu0 %v77
  %923 = vmatpush1.msra.mxu0 %v76
  %924 = vmatprep.subr.mxu0 %v81
  %925 = vmatpush1.msra.mxu0 %v80
  %926 = vmatprep.subr.mxu0 %v85
  %927 = vmatpush1.msra.mxu0 %v84
  %928 = vmatprep.subr.mxu0 %v89
  %929 = vmatpush1.msra.mxu0 %v88
  %930 = vmatprep.subr.mxu0 %v93
  %931 = vmatpush1.msra.mxu0 %v92
  %932 = vmatprep.subr.mxu0 %v97
  %933 = vmatpush1.msra.mxu0 %v96
  %934 = vmatprep.subr.mxu0 %v101
  %935 = vmatpush1.msra.mxu0 %v100
  %936 = vmatprep.subr.mxu0 %v105
  %937 = vmatpush1.msra.mxu0 %v104
  %938 = vmatprep.subr.mxu0 %v109
  %939 = vmatpush1.msra.mxu0 %v108
  %940 = vmatprep.subr.mxu0 %v113
  %941 = vmatpush1.msra.mxu0 %v112
  %942 = vmatprep.subr.mxu0 %v117
  %943 = vmatpush1.msra.mxu0 %v116
  %944 = vmatprep.subr.mxu0 %v121
  %945 = vmatpush1.msra.mxu0 %v120
  %946 = vmatprep.subr.mxu0 %v125
  %947 = vmatpush1.msra.mxu0 %v124
  %948 = vmatprep.subr.mxu0 %v129
  %949 = vmatpush1.msra.mxu0 %v128
  %950 = vmatprep.subr.mxu0 %v133
  %951 = vmatpush1.msra.mxu0 %v132
  %952 = vmatprep.subr.mxu0 %v137
  %953 = vmatpush1.msra.mxu0 %v136
  %954 = vmatprep.subr.mxu0 %v141
  %955 = vmatpush1.msra.mxu0 %v140
  %956 = vmatprep.subr.mxu0 %v145
  %957 = vmatpush1.msra.mxu0 %v144
  %958 = vmatprep.subr.mxu0 %v149
  %959 = vmatpush1.msra.mxu0 %v148
  %960 = vmatprep.subr.mxu0 %v153
  %961 = vmatpush1.msra.mxu0 %v152
  %962 = vmatprep.subr.mxu0 %v157
  %963 = vmatpush1.msra.mxu0 %v156
  %964 = vmatprep.subr.mxu0 %v161
  %965 = vmatpush1.msra.mxu0 %v160
  %966 = vmatprep.subr.mxu0 %v165
  %967 = vmatpush1.msra.mxu0 %v164
  %968 = vmatprep.mubr.f32.mxu0 %v15
  %969 = vmatmul.mubr.f32.gmra.mrb[0].mxu0 %v14
  %v970 = vpop.f32.mrb[0].mxu0
  %v971 = vadd.f32 %v563, %v970
  %v972 = vpop.f32.mrb[0].mxu0
  %v973 = vadd.f32 %v567, %v972
  %974 = vmatprep.mubr.f32.mxu0 %v23
  %975 = vmatmul.mubr.f32.gmra.mrb[0].mxu0 %v22
  %v976 = vpop.f32.mrb[0].mxu0
  %v977 = vadd.f32 %v563, %v976
  %v978 = vpop.f32.mrb[0].mxu0
  %v979 = vadd.f32 %v567, %v978
  %980 = vmatprep.mubr.f32.mxu0 %v31
  %981 = vmatmul.mubr.f32.gmra.mrb[0].mxu0 %v30
  %v982 = vpop.f32.mrb[0].mxu0
  %v983 = vadd.f32 %v563, %v982
  %v984 = vpop.f32.mrb[0].mxu0
  %v985 = vadd.f32 %v567, %v984
  %986 = vdwg.mxu0
  %987 = vmatprep.subr.mxu0 %v169
  %988 = vmatpush1.msra.mxu0 %v168
  %989 = vmatprep.subr.mxu0 %v173
  %990 = vmatpush1.msra.mxu0 %v172
  %991 = vmatprep.subr.mxu0 %v177
  %992 = vmatpush1.msra.mxu0 %v176
  %993 = vmatprep.subr.mxu0 %v181
  %994 = vmatpush1.msra.mxu0 %v180
  %995 = vmatprep.subr.mxu0 %v185
  %996 = vmatpush1.msra.mxu0 %v184
  %997 = vmatprep.subr.mxu0 %v189
  %998 = vmatpush1.msra.mxu0 %v188
  %999 = vmatprep.subr.mxu0 %v193
  %1000 = vmatpush1.msra.mxu0 %v192
  %1001 = vmatprep.subr.mxu0 %v197
  %1002 = vmatpush1.msra.mxu0 %v196
  %1003 = vmatprep.subr.mxu0 %v201
  %1004 = vmatpush1.msra.mxu0 %v200
  %1005 = vmatprep.subr.mxu0 %v205
  %1006 = vmatpush1.msra.mxu0 %v204
  %1007 = vmatprep.subr.mxu0 %v209
  %1008 = vmatpush1.msra.mxu0 %v208
  %1009 = vmatprep.subr.mxu0 %v213
  %1010 = vmatpush1.msra.mxu0 %v212
  %1011 = vmatprep.subr.mxu0 %v217
  %1012 = vmatpush1.msra.mxu0 %v216
  %1013 = vmatprep.subr.mxu0 %v221
  %1014 = vmatpush1.msra.mxu0 %v220
  %1015 = vmatprep.subr.mxu0 %v225
  %1016 = vmatpush1.msra.mxu0 %v224
  %1017 = vmatprep.subr.mxu0 %v229
  %1018 = vmatpush1.msra.mxu0 %v228
  %1019 = vmatprep.subr.mxu0 %v233
  %1020 = vmatpush1.msra.mxu0 %v232
  %1021 = vmatprep.subr.mxu0 %v237
  %1022 = vmatpush1.msra.mxu0 %v236
  %1023 = vmatprep.subr.mxu0 %v241
  %1024 = vmatpush1.msra.mxu0 %v240
  %1025 = vmatprep.subr.mxu0 %v245
  %1026 = vmatpush1.msra.mxu0 %v244
  %1027 = vmatprep.subr.mxu0 %v249
  %1028 = vmatpush1.msra.mxu0 %v248
  %1029 = vmatprep.subr.mxu0 %v253
  %1030 = vmatpush1.msra.mxu0 %v252
  %1031 = vmatprep.subr.mxu0 %v257
  %1032 = vmatpush1.msra.mxu0 %v256
  %1033 = vmatprep.subr.mxu0 %v261
  %1034 = vmatpush1.msra.mxu0 %v260
  %1035 = vmatprep.subr.mxu0 %v265
  %1036 = vmatpush1.msra.mxu0 %v264
  %1037 = vmatprep.subr.mxu0 %v269
  %1038 = vmatpush1.msra.mxu0 %v268
  %1039 = vmatprep.subr.mxu0 %v273
  %1040 = vmatpush1.msra.mxu0 %v272
  %1041 = vmatprep.subr.mxu0 %v277
  %1042 = vmatpush1.msra.mxu0 %v276
  %1043 = vmatprep.subr.mxu0 %v281
  %1044 = vmatpush1.msra.mxu0 %v280
  %1045 = vmatprep.subr.mxu0 %v285
  %1046 = vmatpush1.msra.mxu0 %v284
  %1047 = vmatprep.subr.mxu0 %v289
  %1048 = vmatpush1.msra.mxu0 %v288
  %1049 = vmatprep.subr.mxu0 %v293
  %1050 = vmatpush1.msra.mxu0 %v292
  %1051 = vmatprep.mubr.f32.mxu0 %v17
  %1052 = vmatmul.mubr.f32.gmra.mrb[0].mxu0 %v16
  %v1053 = vpop.f32.mrb[0].mxu0
  %v1054 = vadd.f32 %v971, %v1053
  %v1055 = vpop.f32.mrb[0].mxu0
  %v1056 = vadd.f32 %v973, %v1055
  %1057 = vmatprep.mubr.f32.mxu0 %v25
  %1058 = vmatmul.mubr.f32.gmra.mrb[0].mxu0 %v24
  %v1059 = vpop.f32.mrb[0].mxu0
  %v1060 = vadd.f32 %v977, %v1059
  %v1061 = vpop.f32.mrb[0].mxu0
  %v1062 = vadd.f32 %v979, %v1061
  %1063 = vmatprep.mubr.f32.mxu0 %v33
  %1064 = vmatmul.mubr.f32.gmra.mrb[0].mxu0 %v32
  %v1065 = vpop.f32.mrb[0].mxu0
  %v1066 = vadd.f32 %v983, %v1065
  %v1067 = vpop.f32.mrb[0].mxu0
  %v1068 = vadd.f32 %v985, %v1067
  %1069 = vdwg.mxu0
  %1070 = vmatprep.subr.mxu0 %v297
  %1071 = vmatpush1.msra.mxu0 %v296
  %1072 = vmatprep.subr.mxu0 %v301
  %1073 = vmatpush1.msra.mxu0 %v300
  %1074 = vmatprep.subr.mxu0 %v305
  %1075 = vmatpush1.msra.mxu0 %v304
  %1076 = vmatprep.subr.mxu0 %v309
  %1077 = vmatpush1.msra.mxu0 %v308
  %1078 = vmatprep.subr.mxu0 %v313
  %1079 = vmatpush1.msra.mxu0 %v312
  %1080 = vmatprep.subr.mxu0 %v317
  %1081 = vmatpush1.msra.mxu0 %v316
  %1082 = vmatprep.subr.mxu0 %v321
  %1083 = vmatpush1.msra.mxu0 %v320
  %1084 = vmatprep.subr.mxu0 %v325
  %1085 = vmatpush1.msra.mxu0 %v324
  %1086 = vmatprep.subr.mxu0 %v329
  %1087 = vmatpush1.msra.mxu0 %v328
  %1088 = vmatprep.subr.mxu0 %v333
  %1089 = vmatpush1.msra.mxu0 %v332
  %1090 = vmatprep.subr.mxu0 %v337
  %1091 = vmatpush1.msra.mxu0 %v336
  %1092 = vmatprep.subr.mxu0 %v341
  %1093 = vmatpush1.msra.mxu0 %v340
  %1094 = vmatprep.subr.mxu0 %v345
  %1095 = vmatpush1.msra.mxu0 %v344
  %1096 = vmatprep.subr.mxu0 %v349
  %1097 = vmatpush1.msra.mxu0 %v348
  %1098 = vmatprep.subr.mxu0 %v353
  %1099 = vmatpush1.msra.mxu0 %v352
  %1100 = vmatprep.subr.mxu0 %v357
  %1101 = vmatpush1.msra.mxu0 %v356
  %1102 = vmatprep.subr.mxu0 %v361
  %1103 = vmatpush1.msra.mxu0 %v360
  %1104 = vmatprep.subr.mxu0 %v365
  %1105 = vmatpush1.msra.mxu0 %v364
  %1106 = vmatprep.subr.mxu0 %v369
  %1107 = vmatpush1.msra.mxu0 %v368
  %1108 = vmatprep.subr.mxu0 %v373
  %1109 = vmatpush1.msra.mxu0 %v372
  %1110 = vmatprep.subr.mxu0 %v377
  %1111 = vmatpush1.msra.mxu0 %v376
  %1112 = vmatprep.subr.mxu0 %v381
  %1113 = vmatpush1.msra.mxu0 %v380
  %1114 = vmatprep.subr.mxu0 %v385
  %1115 = vmatpush1.msra.mxu0 %v384
  %1116 = vmatprep.subr.mxu0 %v389
  %1117 = vmatpush1.msra.mxu0 %v388
  %1118 = vmatprep.subr.mxu0 %v393
  %1119 = vmatpush1.msra.mxu0 %v392
  %1120 = vmatprep.subr.mxu0 %v397
  %1121 = vmatpush1.msra.mxu0 %v396
  %1122 = vmatprep.subr.mxu0 %v401
  %1123 = vmatpush1.msra.mxu0 %v400
  %1124 = vmatprep.subr.mxu0 %v405
  %1125 = vmatpush1.msra.mxu0 %v404
  %1126 = vmatprep.subr.mxu0 %v409
  %1127 = vmatpush1.msra.mxu0 %v408
  %1128 = vmatprep.subr.mxu0 %v413
  %1129 = vmatpush1.msra.mxu0 %v412
  %1130 = vmatprep.subr.mxu0 %v417
  %1131 = vmatpush1.msra.mxu0 %v416
  %1132 = vmatprep.subr.mxu0 %v421
  %1133 = vmatpush1.msra.mxu0 %v420
  %1134 = vmatprep.mubr.f32.mxu0 %v19
  %1135 = vmatmul.mubr.f32.gmra.mrb[0].mxu0 %v18
  %v1136 = vpop.f32.mrb[0].mxu0
  %v1137 = vadd.f32 %v1054, %v1136
  %v1138 = vpop.f32.mrb[0].mxu0
  %v1139 = vadd.f32 %v1056, %v1138
  %1140 = vmatprep.mubr.f32.mxu0 %v27
  %1141 = vmatmul.mubr.f32.gmra.mrb[0].mxu0 %v26
  %v1142 = vpop.f32.mrb[0].mxu0
  %v1143 = vadd.f32 %v1060, %v1142
  %v1144 = vpop.f32.mrb[0].mxu0
  %v1145 = vadd.f32 %v1062, %v1144
  %1146 = vmatprep.mubr.f32.mxu0 %v35
  %1147 = vmatmul.mubr.f32.gmra.mrb[0].mxu0 %v34
  %v1148 = vpop.f32.mrb[0].mxu0
  %v1149 = vadd.f32 %v1066, %v1148
  %v1150 = vpop.f32.mrb[0].mxu0
  %v1151 = vadd.f32 %v1068, %v1150
  %1152 = vdwg.mxu0
  %1153 = vmatprep.subr.mxu0 %v425
  %1154 = vmatpush1.msra.mxu0 %v424
  %1155 = vmatprep.subr.mxu0 %v429
  %1156 = vmatpush1.msra.mxu0 %v428
  %1157 = vmatprep.subr.mxu0 %v433
  %1158 = vmatpush1.msra.mxu0 %v432
  %1159 = vmatprep.subr.mxu0 %v437
  %1160 = vmatpush1.msra.mxu0 %v436
  %1161 = vmatprep.subr.mxu0 %v441
  %1162 = vmatpush1.msra.mxu0 %v440
  %1163 = vmatprep.subr.mxu0 %v445
  %1164 = vmatpush1.msra.mxu0 %v444
  %1165 = vmatprep.subr.mxu0 %v449
  %1166 = vmatpush1.msra.mxu0 %v448
  %1167 = vmatprep.subr.mxu0 %v453
  %1168 = vmatpush1.msra.mxu0 %v452
  %1169 = vmatprep.subr.mxu0 %v457
  %1170 = vmatpush1.msra.mxu0 %v456
  %1171 = vmatprep.subr.mxu0 %v461
  %1172 = vmatpush1.msra.mxu0 %v460
  %1173 = vmatprep.subr.mxu0 %v465
  %1174 = vmatpush1.msra.mxu0 %v464
  %1175 = vmatprep.subr.mxu0 %v469
  %1176 = vmatpush1.msra.mxu0 %v468
  %1177 = vmatprep.subr.mxu0 %v473
  %1178 = vmatpush1.msra.mxu0 %v472
  %1179 = vmatprep.subr.mxu0 %v477
  %1180 = vmatpush1.msra.mxu0 %v476
  %1181 = vmatprep.subr.mxu0 %v481
  %1182 = vmatpush1.msra.mxu0 %v480
  %1183 = vmatprep.subr.mxu0 %v485
  %1184 = vmatpush1.msra.mxu0 %v484
  %1185 = vmatprep.subr.mxu0 %v489
  %1186 = vmatpush1.msra.mxu0 %v488
  %1187 = vmatprep.subr.mxu0 %v493
  %1188 = vmatpush1.msra.mxu0 %v492
  %1189 = vmatprep.subr.mxu0 %v497
  %1190 = vmatpush1.msra.mxu0 %v496
  %1191 = vmatprep.subr.mxu0 %v501
  %1192 = vmatpush1.msra.mxu0 %v500
  %1193 = vmatprep.subr.mxu0 %v505
  %1194 = vmatpush1.msra.mxu0 %v504
  %1195 = vmatprep.subr.mxu0 %v509
  %1196 = vmatpush1.msra.mxu0 %v508
  %1197 = vmatprep.subr.mxu0 %v513
  %1198 = vmatpush1.msra.mxu0 %v512
  %1199 = vmatprep.subr.mxu0 %v517
  %1200 = vmatpush1.msra.mxu0 %v516
  %1201 = vmatprep.subr.mxu0 %v521
  %1202 = vmatpush1.msra.mxu0 %v520
  %1203 = vmatprep.subr.mxu0 %v525
  %1204 = vmatpush1.msra.mxu0 %v524
  %1205 = vmatprep.subr.mxu0 %v529
  %1206 = vmatpush1.msra.mxu0 %v528
  %1207 = vmatprep.subr.mxu0 %v533
  %1208 = vmatpush1.msra.mxu0 %v532
  %1209 = vmatprep.subr.mxu0 %v537
  %1210 = vmatpush1.msra.mxu0 %v536
  %1211 = vmatprep.subr.mxu0 %v541
  %1212 = vmatpush1.msra.mxu0 %v540
  %1213 = vmatprep.subr.mxu0 %v545
  %1214 = vmatpush1.msra.mxu0 %v544
  %1215 = vmatprep.subr.mxu0 %v549
  %1216 = vmatpush1.msra.mxu0 %v548
  %1217 = vmatprep.mubr.f32.mxu0 %v21
  %1218 = vmatmul.mubr.f32.gmra.mrb[0].mxu0 %v20
  %v1219 = vpop.f32.mrb[0].mxu0
  %v1220 = vadd.f32 %v1137, %v1219
  %v1221 = vpop.f32.mrb[0].mxu0
  %v1222 = vadd.f32 %v1139, %v1221
  %1223 = vmatprep.mubr.f32.mxu0 %v29
  %1224 = vmatmul.mubr.f32.gmra.mrb[0].mxu0 %v28
  %v1225 = vpop.f32.mrb[0].mxu0
  %v1226 = vadd.f32 %v1143, %v1225
  %v1227 = vpop.f32.mrb[0].mxu0
  %v1228 = vadd.f32 %v1145, %v1227
  %1229 = vmatprep.mubr.f32.mxu0 %v37
  %1230 = vmatmul.mubr.f32.gmra.mrb[0].mxu0 %v36
  %v1231 = vpop.f32.mrb[0].mxu0
  %v1232 = vadd.f32 %v1149, %v1231
  %v1233 = vpop.f32.mrb[0].mxu0
  %v1234 = vadd.f32 %v1151, %v1233
  %1235 = vdwg.mxu0
  %v1236 = vmax.f32 %v888, 0.0
  %v1237 = vmax.f32 %v890, 0.0
  %v1238 = vmax.f32 %v1220, 0.0
  %v1239 = vmax.f32 %v1222, 0.0
  %v1240 = vmax.f32 %v894, 0.0
  %v1241 = vmax.f32 %v896, 0.0
  %v1242 = vmax.f32 %v1226, 0.0
  %v1243 = vmax.f32 %v1228, 0.0
  %v1244 = vmax.f32 %v900, 0.0
  %v1245 = vmax.f32 %v902, 0.0
  %v1246 = vmax.f32 %v1232, 0.0
  %v1247 = vmax.f32 %v1234, 0.0
  %1248 = vst [vmem:[%s3] sm:$0xff] %v1236
  %1249 = vst [vmem:[%s3 + $0x8] sm:$0xff] %v1237
  %1250 = vst [vmem:[%s3 + $0x10] sm:$0xff] %v1238
  %1251 = vst [vmem:[%s3 + $0x18] sm:$0xff] %v1239
  %1252 = vst [vmem:[%s3 + $0x20] sm:$0xff] %v1240
  %1253 = vst [vmem:[%s3 + $0x28] sm:$0xff] %v1241
  %1254 = vst [vmem:[%s3 + $0x30] sm:$0xff] %v1242
  %1255 = vst [vmem:[%s3 + $0x38] sm:$0xff] %v1243
  %1256 = vst [vmem:[%s3 + $0x40] sm:$0x3] %v1244
  %1257 = vst [vmem:[%s3 + $0x48] sm:$0x3] %v1245
  %1258 = vst [vmem:[%s3 + $0x50] sm:$0x3] %v1246
  %1259 = vst [vmem:[%s3 + $0x58] sm:$0x3] %v1247
  // Predicated region
  $region14: #{autoencoder_6_forward.12} parent=0 // pred_check
    _
  $region15: #{autoencoder_6_forward.12} parent=0 // pred_check_branch
    %1261 = sbr.rel (0) target = $region17
  $region16: #{autoencoder_6_forward.12} parent=0 // pred_region
    _
  $region17: #{autoencoder_6_forward.12} parent=0 // pred_fallthru
    _
  // Predicated region
  $region18: #{autoencoder_6_forward.12} parent=0 // pred_check
    _
  $region19: #{autoencoder_6_forward.12} parent=0 // pred_check_branch
    %1263 = sbr.rel (0) target = $region21
  $region20: #{autoencoder_6_forward.12} parent=0 // pred_region
    _
  $region21: #{autoencoder_6_forward.12} parent=0 // pred_fallthru
    _

// kernel: tile.27
$region0: #{tile.27}
  #allocation0 [shape = 's32[1]{0}', space=sflag, size = 0x4, scoped, tag = 'scoped memory for tile.27']
  %s0 = inlined_call_operand.vmem [shape: f32[64], index: 0, kind: input, shape index: {}]
  %s1 = inlined_call_operand.vmem [shape: f32[4,64], index: 1, kind: output, shape index: {}]
  // Predicated region
  $region2: #{tile.27} parent=0 // pred_check
    _
  $region3: #{tile.27} parent=0 // pred_check_branch
    %3 = sbr.rel (0) target = $region5
  $region4: #{tile.27} parent=0 // pred_region
    _
  $region5: #{tile.27} parent=0 // pred_fallthru
    _
  %v4 = vld [vmem:[%s0] ss:$0 sm:$0xff]
  %5 = vst [vmem:[%s1] sm:$0xf] %v4

// kernel: tile.28
$region0: #{tile.28}
  %s0 = inlined_call_operand.vmem [shape: f32[4,64], index: 0, kind: input, shape index: {}]
  %s1 = inlined_call_operand.vmem [shape: f32[1,256], index: 1, kind: output, shape index: {}]
  $region1: #{tile.28} parent=0
    #allocation0 [shape = 'u8[8192]{0}', space=vmem, size = 0x2000, scoped, tag = 'scoped mem for output reshape']
    #allocation1 [shape = 'u8[4096]{0}', space=vmem, size = 0x1000, scoped, tag = 'scoped mem for input reshape']
    %s3 = sshllo.u32 0, 4
    %v4 = vld [vmem:[%s0] sm:%s3]
    %5 = vst [vmem:[#allocation1] sm:%s3] %v4
    %s6 = smov 3
    %v7 = vld [vmem:[#allocation1] ss:$2 sm:%s6]
    %vm8 = vcmask 523264
    %9 = vst.msk [vmem:[#allocation0] ss:$8 sm:$0x3] %vm8, %v7
    %s10 = scalar_lea.vmem [#allocation1], 1
    %s11 = smov 3
    %v12 = vld [vmem:[%s10] ss:$2 sm:%s11]
    %13 = vrot.lane.b32.xlu0 %v12, 64
    %v14 = vpop.permute.xlu0 %13
    %vm15 = vcmask 1048064
    %16 = vst.msk [vmem:[#allocation0] ss:$8 sm:$0x3] %vm15, %v14
    %s18 = sshllo.u32 0, 1
    %v20 = vld [vmem:[#allocation0] sm:%s18]
    %s21 = sshllo.u32 0, 1
    %22 = vst [vmem:[%s1] sm:%s21] %v20
    %s23 = scalar_lea.vmem [#allocation0], 8
    %v24 = vld [vmem:[%s23] sm:%s18]
    %s25 = sshllo.u32 0, 1
    %s26 = scalar_lea.vmem %s1, 1
    %27 = vst [vmem:[%s26] sm:%s25] %v24

// kernel: autoencoder_6_forward.13
$region0: #{autoencoder_6_forward.13}
  #allocation0 [shape = 'u32[]', space=smem, size = 0x4, offset = 0x4, fixed_abs, tag = 'smem constant byte address 0x4 - core index']
  #allocation1 [shape = 'u32[144,128]{1,0:T(1,128)}', space=vmem, size = 0x12000, scoped, tag = 'internal scratch']
  %s0 = inlined_call_operand.vmem [shape: f32[72,512], index: 0, kind: input, shape index: {}]
  %s1 = inlined_call_operand.vmem [shape: f32[512,256], index: 1, kind: input, shape index: {}]
  %s2 = inlined_call_operand.vmem [shape: f32[1,256], index: 2, kind: input, shape index: {}]
  %s3 = inlined_call_operand.vmem [shape: f32[72,256], index: 3, kind: output, shape index: {}]
  %s4 = sld [smem:[#allocation0]]
  $region22: #{autoencoder_6_forward.13} parent=0
    _
  %s6 = ssub.s32 1, %s4
  %s7 = scalar_select 0, %s6, %s4
  // Predicated region
  $region2: #{autoencoder_6_forward.13} parent=0 // pred_check
    _
  $region3: #{autoencoder_6_forward.13} parent=0 // pred_check_branch
    %9 = sbr.rel (0) target = $region5
  $region4: #{autoencoder_6_forward.13} parent=0 // pred_region
    _
  $region5: #{autoencoder_6_forward.13} parent=0 // pred_fallthru
    _
  // Predicated region
  $region6: #{autoencoder_6_forward.13} parent=0 // pred_check
    _
  $region7: #{autoencoder_6_forward.13} parent=0 // pred_check_branch
    %11 = sbr.rel (0) target = $region9
  $region8: #{autoencoder_6_forward.13} parent=0 // pred_region
    _
  $region9: #{autoencoder_6_forward.13} parent=0 // pred_fallthru
    _
  // Predicated region
  $region10: #{autoencoder_6_forward.13} parent=0 // pred_check
    _
  $region11: #{autoencoder_6_forward.13} parent=0 // pred_check_branch
    %13 = sbr.rel (0) target = $region13
  $region12: #{autoencoder_6_forward.13} parent=0 // pred_region
    _
  $region13: #{autoencoder_6_forward.13} parent=0 // pred_fallthru
    _
  %v14 = vld [vmem:[%s0] sm:$0xff]
  %v15 = vld [vmem:[%s0 + $0x8] sm:$0xff]
  %v16 = vld [vmem:[%s0 + $0x10] sm:$0xff]
  %v17 = vld [vmem:[%s0 + $0x18] sm:$0xff]
  %v18 = vld [vmem:[%s0 + $0x20] sm:$0xff]
  %v19 = vld [vmem:[%s0 + $0x28] sm:$0xff]
  %v20 = vld [vmem:[%s0 + $0x30] sm:$0xff]
  %v21 = vld [vmem:[%s0 + $0x38] sm:$0xff]
  %v22 = vld [vmem:[%s0 + $0x40] sm:$0xff]
  %v23 = vld [vmem:[%s0 + $0x48] sm:$0xff]
  %v24 = vld [vmem:[%s0 + $0x50] sm:$0xff]
  %v25 = vld [vmem:[%s0 + $0x58] sm:$0xff]
  %v26 = vld [vmem:[%s0 + $0x60] sm:$0xff]
  %v27 = vld [vmem:[%s0 + $0x68] sm:$0xff]
  %v28 = vld [vmem:[%s0 + $0x70] sm:$0xff]
  %v29 = vld [vmem:[%s0 + $0x78] sm:$0xff]
  %v30 = vld [vmem:[%s0 + $0x80] sm:$0xff]
  %v31 = vld [vmem:[%s0 + $0x88] sm:$0xff]
  %v32 = vld [vmem:[%s0 + $0x90] sm:$0xff]
  %v33 = vld [vmem:[%s0 + $0x98] sm:$0xff]
  %v34 = vld [vmem:[%s0 + $0xa0] sm:$0xff]
  %v35 = vld [vmem:[%s0 + $0xa8] sm:$0xff]
  %v36 = vld [vmem:[%s0 + $0xb0] sm:$0xff]
  %v37 = vld [vmem:[%s0 + $0xb8] sm:$0xff]
  %v38 = vld [vmem:[%s0 + $0xc0] sm:$0xff]
  %v39 = vld [vmem:[%s0 + $0xc8] sm:$0xff]
  %v40 = vld [vmem:[%s0 + $0xd0] sm:$0xff]
  %v41 = vld [vmem:[%s0 + $0xd8] sm:$0xff]
  %v42 = vld [vmem:[%s0 + $0xe0] sm:$0xff]
  %v43 = vld [vmem:[%s0 + $0xe8] sm:$0xff]
  %v44 = vld [vmem:[%s0 + $0xf0] sm:$0xff]
  %v45 = vld [vmem:[%s0 + $0xf8] sm:$0xff]
  %v46 = vld [vmem:[%s0 + $0x100] sm:$0xff]
  %v47 = vld [vmem:[%s0 + $0x108] sm:$0xff]
  %v48 = vld [vmem:[%s0 + $0x110] sm:$0xff]
  %v49 = vld [vmem:[%s0 + $0x118] sm:$0xff]
  %v50 = vld [vmem:[%s1] sm:$0xff]
  %v51 = vld [vmem:[%s1 + $0x8] sm:$0xff]
  %v52 = vld [vmem:[%s1 + $0x10] sm:$0xff]
  %v53 = vld [vmem:[%s1 + $0x18] sm:$0xff]
  %v54 = vld [vmem:[%s1 + $0x20] sm:$0xff]
  %v55 = vld [vmem:[%s1 + $0x28] sm:$0xff]
  %v56 = vld [vmem:[%s1 + $0x30] sm:$0xff]
  %v57 = vld [vmem:[%s1 + $0x38] sm:$0xff]
  %v58 = vld [vmem:[%s1 + $0x40] sm:$0xff]
  %v59 = vld [vmem:[%s1 + $0x48] sm:$0xff]
  %v60 = vld [vmem:[%s1 + $0x50] sm:$0xff]
  %v61 = vld [vmem:[%s1 + $0x58] sm:$0xff]
  %v62 = vld [vmem:[%s1 + $0x60] sm:$0xff]
  %v63 = vld [vmem:[%s1 + $0x68] sm:$0xff]
  %v64 = vld [vmem:[%s1 + $0x70] sm:$0xff]
  %v65 = vld [vmem:[%s1 + $0x78] sm:$0xff]
  %v66 = vld [vmem:[%s1 + $0x80] sm:$0xff]
  %v67 = vld [vmem:[%s1 + $0x88] sm:$0xff]
  %v68 = vld [vmem:[%s1 + $0x90] sm:$0xff]
  %v69 = vld [vmem:[%s1 + $0x98] sm:$0xff]
  %v70 = vld [vmem:[%s1 + $0xa0] sm:$0xff]
  %v71 = vld [vmem:[%s1 + $0xa8] sm:$0xff]
  %v72 = vld [vmem:[%s1 + $0xb0] sm:$0xff]
  %v73 = vld [vmem:[%s1 + $0xb8] sm:$0xff]
  %v74 = vld [vmem:[%s1 + $0xc0] sm:$0xff]
  %v75 = vld [vmem:[%s1 + $0xc8] sm:$0xff]
  %v76 = vld [vmem:[%s1 + $0xd0] sm:$0xff]
  %v77 = vld [vmem:[%s1 + $0xd8] sm:$0xff]
  %v78 = vld [vmem:[%s1 + $0xe0] sm:$0xff]
  %v79 = vld [vmem:[%s1 + $0xe8] sm:$0xff]
  %v80 = vld [vmem:[%s1 + $0xf0] sm:$0xff]
  %v81 = vld [vmem:[%s1 + $0xf8] sm:$0xff]
  %v82 = vld [vmem:[%s1 + $0x100] sm:$0xff]
  %v83 = vld [vmem:[%s1 + $0x108] sm:$0xff]
  %v84 = vld [vmem:[%s1 + $0x110] sm:$0xff]
  %v85 = vld [vmem:[%s1 + $0x118] sm:$0xff]
  %v86 = vld [vmem:[%s1 + $0x120] sm:$0xff]
  %v87 = vld [vmem:[%s1 + $0x128] sm:$0xff]
  %v88 = vld [vmem:[%s1 + $0x130] sm:$0xff]
  %v89 = vld [vmem:[%s1 + $0x138] sm:$0xff]
  %v90 = vld [vmem:[%s1 + $0x140] sm:$0xff]
  %v91 = vld [vmem:[%s1 + $0x148] sm:$0xff]
  %v92 = vld [vmem:[%s1 + $0x150] sm:$0xff]
  %v93 = vld [vmem:[%s1 + $0x158] sm:$0xff]
  %v94 = vld [vmem:[%s1 + $0x160] sm:$0xff]
  %v95 = vld [vmem:[%s1 + $0x168] sm:$0xff]
  %v96 = vld [vmem:[%s1 + $0x170] sm:$0xff]
  %v97 = vld [vmem:[%s1 + $0x178] sm:$0xff]
  %v98 = vld [vmem:[%s1 + $0x180] sm:$0xff]
  %v99 = vld [vmem:[%s1 + $0x188] sm:$0xff]
  %v100 = vld [vmem:[%s1 + $0x190] sm:$0xff]
  %v101 = vld [vmem:[%s1 + $0x198] sm:$0xff]
  %v102 = vld [vmem:[%s1 + $0x1a0] sm:$0xff]
  %v103 = vld [vmem:[%s1 + $0x1a8] sm:$0xff]
  %v104 = vld [vmem:[%s1 + $0x1b0] sm:$0xff]
  %v105 = vld [vmem:[%s1 + $0x1b8] sm:$0xff]
  %v106 = vld [vmem:[%s1 + $0x1c0] sm:$0xff]
  %v107 = vld [vmem:[%s1 + $0x1c8] sm:$0xff]
  %v108 = vld [vmem:[%s1 + $0x1d0] sm:$0xff]
  %v109 = vld [vmem:[%s1 + $0x1d8] sm:$0xff]
  %v110 = vld [vmem:[%s1 + $0x1e0] sm:$0xff]
  %v111 = vld [vmem:[%s1 + $0x1e8] sm:$0xff]
  %v112 = vld [vmem:[%s1 + $0x1f0] sm:$0xff]
  %v113 = vld [vmem:[%s1 + $0x1f8] sm:$0xff]
  %v114 = vld [vmem:[%s1 + $0x200] sm:$0xff]
  %v115 = vld [vmem:[%s1 + $0x208] sm:$0xff]
  %v116 = vld [vmem:[%s1 + $0x210] sm:$0xff]
  %v117 = vld [vmem:[%s1 + $0x218] sm:$0xff]
  %v118 = vld [vmem:[%s1 + $0x220] sm:$0xff]
  %v119 = vld [vmem:[%s1 + $0x228] sm:$0xff]
  %v120 = vld [vmem:[%s1 + $0x230] sm:$0xff]
  %v121 = vld [vmem:[%s1 + $0x238] sm:$0xff]
  %v122 = vld [vmem:[%s1 + $0x240] sm:$0xff]
  %v123 = vld [vmem:[%s1 + $0x248] sm:$0xff]
  %v124 = vld [vmem:[%s1 + $0x250] sm:$0xff]
  %v125 = vld [vmem:[%s1 + $0x258] sm:$0xff]
  %v126 = vld [vmem:[%s1 + $0x260] sm:$0xff]
  %v127 = vld [vmem:[%s1 + $0x268] sm:$0xff]
  %v128 = vld [vmem:[%s1 + $0x270] sm:$0xff]
  %v129 = vld [vmem:[%s1 + $0x278] sm:$0xff]
  %v130 = vld [vmem:[%s1 + $0x280] sm:$0xff]
  %v131 = vld [vmem:[%s1 + $0x288] sm:$0xff]
  %v132 = vld [vmem:[%s1 + $0x290] sm:$0xff]
  %v133 = vld [vmem:[%s1 + $0x298] sm:$0xff]
  %v134 = vld [vmem:[%s1 + $0x2a0] sm:$0xff]
  %v135 = vld [vmem:[%s1 + $0x2a8] sm:$0xff]
  %v136 = vld [vmem:[%s1 + $0x2b0] sm:$0xff]
  %v137 = vld [vmem:[%s1 + $0x2b8] sm:$0xff]
  %v138 = vld [vmem:[%s1 + $0x2c0] sm:$0xff]
  %v139 = vld [vmem:[%s1 + $0x2c8] sm:$0xff]
  %v140 = vld [vmem:[%s1 + $0x2d0] sm:$0xff]
  %v141 = vld [vmem:[%s1 + $0x2d8] sm:$0xff]
  %v142 = vld [vmem:[%s1 + $0x2e0] sm:$0xff]
  %v143 = vld [vmem:[%s1 + $0x2e8] sm:$0xff]
  %v144 = vld [vmem:[%s1 + $0x2f0] sm:$0xff]
  %v145 = vld [vmem:[%s1 + $0x2f8] sm:$0xff]
  %v146 = vld [vmem:[%s1 + $0x300] sm:$0xff]
  %v147 = vld [vmem:[%s1 + $0x308] sm:$0xff]
  %v148 = vld [vmem:[%s1 + $0x310] sm:$0xff]
  %v149 = vld [vmem:[%s1 + $0x318] sm:$0xff]
  %v150 = vld [vmem:[%s1 + $0x320] sm:$0xff]
  %v151 = vld [vmem:[%s1 + $0x328] sm:$0xff]
  %v152 = vld [vmem:[%s1 + $0x330] sm:$0xff]
  %v153 = vld [vmem:[%s1 + $0x338] sm:$0xff]
  %v154 = vld [vmem:[%s1 + $0x340] sm:$0xff]
  %v155 = vld [vmem:[%s1 + $0x348] sm:$0xff]
  %v156 = vld [vmem:[%s1 + $0x350] sm:$0xff]
  %v157 = vld [vmem:[%s1 + $0x358] sm:$0xff]
  %v158 = vld [vmem:[%s1 + $0x360] sm:$0xff]
  %v159 = vld [vmem:[%s1 + $0x368] sm:$0xff]
  %v160 = vld [vmem:[%s1 + $0x370] sm:$0xff]
  %v161 = vld [vmem:[%s1 + $0x378] sm:$0xff]
  %v162 = vld [vmem:[%s1 + $0x380] sm:$0xff]
  %v163 = vld [vmem:[%s1 + $0x388] sm:$0xff]
  %v164 = vld [vmem:[%s1 + $0x390] sm:$0xff]
  %v165 = vld [vmem:[%s1 + $0x398] sm:$0xff]
  %v166 = vld [vmem:[%s1 + $0x3a0] sm:$0xff]
  %v167 = vld [vmem:[%s1 + $0x3a8] sm:$0xff]
  %v168 = vld [vmem:[%s1 + $0x3b0] sm:$0xff]
  %v169 = vld [vmem:[%s1 + $0x3b8] sm:$0xff]
  %v170 = vld [vmem:[%s1 + $0x3c0] sm:$0xff]
  %v171 = vld [vmem:[%s1 + $0x3c8] sm:$0xff]
  %v172 = vld [vmem:[%s1 + $0x3d0] sm:$0xff]
  %v173 = vld [vmem:[%s1 + $0x3d8] sm:$0xff]
  %v174 = vld [vmem:[%s1 + $0x3e0] sm:$0xff]
  %v175 = vld [vmem:[%s1 + $0x3e8] sm:$0xff]
  %v176 = vld [vmem:[%s1 + $0x3f0] sm:$0xff]
  %v177 = vld [vmem:[%s1 + $0x3f8] sm:$0xff]
  %v178 = vld [vmem:[%s2] sm:$0x3]
  %v180 = vlaneseq
  %v181 = vshrl.u32 %v180, 7
  %v182 = vsub.s32 0, %v181
  %v183 = vrot.slane %v178, %v182
  %v184 = vlaneseq
  %v185 = vshrl.u32 %v184, 7
  %v186 = vsub.s32 1, %v185
  %v187 = vrot.slane %v178, %v186
  %190 = vmatprep.subr.mxu0 %v51
  %191 = vmatpush1.msra.mxu0 %v50
  %192 = vmatprep.subr.mxu0 %v53
  %193 = vmatpush1.msra.mxu0 %v52
  %194 = vmatprep.subr.mxu0 %v55
  %195 = vmatpush1.msra.mxu0 %v54
  %196 = vmatprep.subr.mxu0 %v57
  %197 = vmatpush1.msra.mxu0 %v56
  %198 = vmatprep.subr.mxu0 %v59
  %199 = vmatpush1.msra.mxu0 %v58
  %200 = vmatprep.subr.mxu0 %v61
  %201 = vmatpush1.msra.mxu0 %v60
  %202 = vmatprep.subr.mxu0 %v63
  %203 = vmatpush1.msra.mxu0 %v62
  %204 = vmatprep.subr.mxu0 %v65
  %205 = vmatpush1.msra.mxu0 %v64
  %206 = vmatprep.subr.mxu0 %v67
  %207 = vmatpush1.msra.mxu0 %v66
  %208 = vmatprep.subr.mxu0 %v69
  %209 = vmatpush1.msra.mxu0 %v68
  %210 = vmatprep.subr.mxu0 %v71
  %211 = vmatpush1.msra.mxu0 %v70
  %212 = vmatprep.subr.mxu0 %v73
  %213 = vmatpush1.msra.mxu0 %v72
  %214 = vmatprep.subr.mxu0 %v75
  %215 = vmatpush1.msra.mxu0 %v74
  %216 = vmatprep.subr.mxu0 %v77
  %217 = vmatpush1.msra.mxu0 %v76
  %218 = vmatprep.subr.mxu0 %v79
  %219 = vmatpush1.msra.mxu0 %v78
  %220 = vmatprep.subr.mxu0 %v81
  %221 = vmatpush1.msra.mxu0 %v80
  %222 = vmatprep.subr.mxu0 %v83
  %223 = vmatpush1.msra.mxu0 %v82
  %224 = vmatprep.subr.mxu0 %v85
  %225 = vmatpush1.msra.mxu0 %v84
  %226 = vmatprep.subr.mxu0 %v87
  %227 = vmatpush1.msra.mxu0 %v86
  %228 = vmatprep.subr.mxu0 %v89
  %229 = vmatpush1.msra.mxu0 %v88
  %230 = vmatprep.subr.mxu0 %v91
  %231 = vmatpush1.msra.mxu0 %v90
  %232 = vmatprep.subr.mxu0 %v93
  %233 = vmatpush1.msra.mxu0 %v92
  %234 = vmatprep.subr.mxu0 %v95
  %235 = vmatpush1.msra.mxu0 %v94
  %236 = vmatprep.subr.mxu0 %v97
  %237 = vmatpush1.msra.mxu0 %v96
  %238 = vmatprep.subr.mxu0 %v99
  %239 = vmatpush1.msra.mxu0 %v98
  %240 = vmatprep.subr.mxu0 %v101
  %241 = vmatpush1.msra.mxu0 %v100
  %242 = vmatprep.subr.mxu0 %v103
  %243 = vmatpush1.msra.mxu0 %v102
  %244 = vmatprep.subr.mxu0 %v105
  %245 = vmatpush1.msra.mxu0 %v104
  %246 = vmatprep.subr.mxu0 %v107
  %247 = vmatpush1.msra.mxu0 %v106
  %248 = vmatprep.subr.mxu0 %v109
  %249 = vmatpush1.msra.mxu0 %v108
  %250 = vmatprep.subr.mxu0 %v111
  %251 = vmatpush1.msra.mxu0 %v110
  %252 = vmatprep.subr.mxu0 %v113
  %253 = vmatpush1.msra.mxu0 %v112
  %254 = vmatprep.mubr.f32.mxu0 %v15
  %255 = vmatmul.mubr.f32.gmra.mrb[0].mxu0 %v14
  %v256 = vpop.f32.mrb[0].mxu0
  %v257 = vadd.f32 %v183, %v256
  %v258 = vpop.f32.mrb[0].mxu0
  %v259 = vadd.f32 %v187, %v258
  %260 = vmatprep.mubr.f32.mxu0 %v19
  %261 = vmatmul.mubr.f32.gmra.mrb[0].mxu0 %v18
  %v262 = vpop.f32.mrb[0].mxu0
  %v263 = vadd.f32 %v183, %v262
  %v264 = vpop.f32.mrb[0].mxu0
  %v265 = vadd.f32 %v187, %v264
  %266 = vmatprep.mubr.f32.mxu0 %v23
  %267 = vmatmul.mubr.f32.gmra.mrb[0].mxu0 %v22
  %v268 = vpop.f32.mrb[0].mxu0
  %v269 = vadd.f32 %v183, %v268
  %v270 = vpop.f32.mrb[0].mxu0
  %v271 = vadd.f32 %v187, %v270
  %272 = vmatprep.mubr.f32.mxu0 %v27
  %273 = vmatmul.mubr.f32.gmra.mrb[0].mxu0 %v26
  %v274 = vpop.f32.mrb[0].mxu0
  %v275 = vadd.f32 %v183, %v274
  %v276 = vpop.f32.mrb[0].mxu0
  %v277 = vadd.f32 %v187, %v276
  %278 = vmatprep.mubr.f32.mxu0 %v31
  %279 = vmatmul.mubr.f32.gmra.mrb[0].mxu0 %v30
  %v280 = vpop.f32.mrb[0].mxu0
  %v281 = vadd.f32 %v183, %v280
  %v282 = vpop.f32.mrb[0].mxu0
  %v283 = vadd.f32 %v187, %v282
  %284 = vmatprep.mubr.f32.mxu0 %v35
  %285 = vmatmul.mubr.f32.gmra.mrb[0].mxu0 %v34
  %v286 = vpop.f32.mrb[0].mxu0
  %v287 = vadd.f32 %v183, %v286
  %v288 = vpop.f32.mrb[0].mxu0
  %v289 = vadd.f32 %v187, %v288
  %290 = vmatprep.mubr.f32.mxu0 %v39
  %291 = vmatmul.mubr.f32.gmra.mrb[0].mxu0 %v38
  %v292 = vpop.f32.mrb[0].mxu0
  %v293 = vadd.f32 %v183, %v292
  %v294 = vpop.f32.mrb[0].mxu0
  %v295 = vadd.f32 %v187, %v294
  %296 = vmatprep.mubr.f32.mxu0 %v43
  %297 = vmatmul.mubr.f32.gmra.mrb[0].mxu0 %v42
  %v298 = vpop.f32.mrb[0].mxu0
  %v299 = vadd.f32 %v183, %v298
  %v300 = vpop.f32.mrb[0].mxu0
  %v301 = vadd.f32 %v187, %v300
  %302 = vmatprep.mubr.f32.mxu0 %v47
  %303 = vmatmul.mubr.f32.gmra.mrb[0].mxu0 %v46
  %v304 = vpop.f32.mrb[0].mxu0
  %v305 = vadd.f32 %v183, %v304
  %v306 = vpop.f32.mrb[0].mxu0
  %v307 = vadd.f32 %v187, %v306
  %308 = vdwg.mxu0
  %309 = vmatprep.subr.mxu0 %v115
  %310 = vmatpush1.msra.mxu0 %v114
  %311 = vmatprep.subr.mxu0 %v117
  %312 = vmatpush1.msra.mxu0 %v116
  %313 = vmatprep.subr.mxu0 %v119
  %314 = vmatpush1.msra.mxu0 %v118
  %315 = vmatprep.subr.mxu0 %v121
  %316 = vmatpush1.msra.mxu0 %v120
  %317 = vmatprep.subr.mxu0 %v123
  %318 = vmatpush1.msra.mxu0 %v122
  %319 = vmatprep.subr.mxu0 %v125
  %320 = vmatpush1.msra.mxu0 %v124
  %321 = vmatprep.subr.mxu0 %v127
  %322 = vmatpush1.msra.mxu0 %v126
  %323 = vmatprep.subr.mxu0 %v129
  %324 = vmatpush1.msra.mxu0 %v128
  %325 = vmatprep.subr.mxu0 %v131
  %326 = vmatpush1.msra.mxu0 %v130
  %327 = vmatprep.subr.mxu0 %v133
  %328 = vmatpush1.msra.mxu0 %v132
  %329 = vmatprep.subr.mxu0 %v135
  %330 = vmatpush1.msra.mxu0 %v134
  %331 = vmatprep.subr.mxu0 %v137
  %332 = vmatpush1.msra.mxu0 %v136
  %333 = vmatprep.subr.mxu0 %v139
  %334 = vmatpush1.msra.mxu0 %v138
  %335 = vmatprep.subr.mxu0 %v141
  %336 = vmatpush1.msra.mxu0 %v140
  %337 = vmatprep.subr.mxu0 %v143
  %338 = vmatpush1.msra.mxu0 %v142
  %339 = vmatprep.subr.mxu0 %v145
  %340 = vmatpush1.msra.mxu0 %v144
  %341 = vmatprep.subr.mxu0 %v147
  %342 = vmatpush1.msra.mxu0 %v146
  %343 = vmatprep.subr.mxu0 %v149
  %344 = vmatpush1.msra.mxu0 %v148
  %345 = vmatprep.subr.mxu0 %v151
  %346 = vmatpush1.msra.mxu0 %v150
  %347 = vmatprep.subr.mxu0 %v153
  %348 = vmatpush1.msra.mxu0 %v152
  %349 = vmatprep.subr.mxu0 %v155
  %350 = vmatpush1.msra.mxu0 %v154
  %351 = vmatprep.subr.mxu0 %v157
  %352 = vmatpush1.msra.mxu0 %v156
  %353 = vmatprep.subr.mxu0 %v159
  %354 = vmatpush1.msra.mxu0 %v158
  %355 = vmatprep.subr.mxu0 %v161
  %356 = vmatpush1.msra.mxu0 %v160
  %357 = vmatprep.subr.mxu0 %v163
  %358 = vmatpush1.msra.mxu0 %v162
  %359 = vmatprep.subr.mxu0 %v165
  %360 = vmatpush1.msra.mxu0 %v164
  %361 = vmatprep.subr.mxu0 %v167
  %362 = vmatpush1.msra.mxu0 %v166
  %363 = vmatprep.subr.mxu0 %v169
  %364 = vmatpush1.msra.mxu0 %v168
  %365 = vmatprep.subr.mxu0 %v171
  %366 = vmatpush1.msra.mxu0 %v170
  %367 = vmatprep.subr.mxu0 %v173
  %368 = vmatpush1.msra.mxu0 %v172
  %369 = vmatprep.subr.mxu0 %v175
  %370 = vmatpush1.msra.mxu0 %v174
  %371 = vmatprep.subr.mxu0 %v177
  %372 = vmatpush1.msra.mxu0 %v176
  %373 = vmatprep.mubr.f32.mxu0 %v17
  %374 = vmatmul.mubr.f32.gmra.mrb[0].mxu0 %v16
  %v375 = vpop.f32.mrb[0].mxu0
  %v376 = vadd.f32 %v257, %v375
  %v377 = vpop.f32.mrb[0].mxu0
  %v378 = vadd.f32 %v259, %v377
  %379 = vmatprep.mubr.f32.mxu0 %v21
  %380 = vmatmul.mubr.f32.gmra.mrb[0].mxu0 %v20
  %v381 = vpop.f32.mrb[0].mxu0
  %v382 = vadd.f32 %v263, %v381
  %v383 = vpop.f32.mrb[0].mxu0
  %v384 = vadd.f32 %v265, %v383
  %385 = vmatprep.mubr.f32.mxu0 %v25
  %386 = vmatmul.mubr.f32.gmra.mrb[0].mxu0 %v24
  %v387 = vpop.f32.mrb[0].mxu0
  %v388 = vadd.f32 %v269, %v387
  %v389 = vpop.f32.mrb[0].mxu0
  %v390 = vadd.f32 %v271, %v389
  %391 = vmatprep.mubr.f32.mxu0 %v29
  %392 = vmatmul.mubr.f32.gmra.mrb[0].mxu0 %v28
  %v393 = vpop.f32.mrb[0].mxu0
  %v394 = vadd.f32 %v275, %v393
  %v395 = vpop.f32.mrb[0].mxu0
  %v396 = vadd.f32 %v277, %v395
  %397 = vmatprep.mubr.f32.mxu0 %v33
  %398 = vmatmul.mubr.f32.gmra.mrb[0].mxu0 %v32
  %v399 = vpop.f32.mrb[0].mxu0
  %v400 = vadd.f32 %v281, %v399
  %v401 = vpop.f32.mrb[0].mxu0
  %v402 = vadd.f32 %v283, %v401
  %403 = vmatprep.mubr.f32.mxu0 %v37
  %404 = vmatmul.mubr.f32.gmra.mrb[0].mxu0 %v36
  %v405 = vpop.f32.mrb[0].mxu0
  %v406 = vadd.f32 %v287, %v405
  %v407 = vpop.f32.mrb[0].mxu0
  %v408 = vadd.f32 %v289, %v407
  %409 = vmatprep.mubr.f32.mxu0 %v41
  %410 = vmatmul.mubr.f32.gmra.mrb[0].mxu0 %v40
  %v411 = vpop.f32.mrb[0].mxu0
  %v412 = vadd.f32 %v293, %v411
  %v413 = vpop.f32.mrb[0].mxu0
  %v414 = vadd.f32 %v295, %v413
  %415 = vmatprep.mubr.f32.mxu0 %v45
  %416 = vmatmul.mubr.f32.gmra.mrb[0].mxu0 %v44
  %v417 = vpop.f32.mrb[0].mxu0
  %v418 = vadd.f32 %v299, %v417
  %v419 = vpop.f32.mrb[0].mxu0
  %v420 = vadd.f32 %v301, %v419
  %421 = vmatprep.mubr.f32.mxu0 %v49
  %422 = vmatmul.mubr.f32.gmra.mrb[0].mxu0 %v48
  %v423 = vpop.f32.mrb[0].mxu0
  %v424 = vadd.f32 %v305, %v423
  %v425 = vpop.f32.mrb[0].mxu0
  %v426 = vadd.f32 %v307, %v425
  %427 = vdwg.mxu0
  %v428 = vmax.f32 %v376, 0.0
  %v429 = vmax.f32 %v378, 0.0
  %v430 = vmax.f32 %v382, 0.0
  %v431 = vmax.f32 %v384, 0.0
  %v432 = vmax.f32 %v388, 0.0
  %v433 = vmax.f32 %v390, 0.0
  %v434 = vmax.f32 %v394, 0.0
  %v435 = vmax.f32 %v396, 0.0
  %v436 = vmax.f32 %v400, 0.0
  %v437 = vmax.f32 %v402, 0.0
  %v438 = vmax.f32 %v406, 0.0
  %v439 = vmax.f32 %v408, 0.0
  %v440 = vmax.f32 %v412, 0.0
  %v441 = vmax.f32 %v414, 0.0
  %v442 = vmax.f32 %v418, 0.0
  %v443 = vmax.f32 %v420, 0.0
  %v444 = vmax.f32 %v424, 0.0
  %v445 = vmax.f32 %v426, 0.0
  %446 = vst [vmem:[%s3] sm:$0xff] %v428
  %447 = vst [vmem:[%s3 + $0x8] sm:$0xff] %v429
  %448 = vst [vmem:[%s3 + $0x10] sm:$0xff] %v430
  %449 = vst [vmem:[%s3 + $0x18] sm:$0xff] %v431
  %450 = vst [vmem:[%s3 + $0x20] sm:$0xff] %v432
  %451 = vst [vmem:[%s3 + $0x28] sm:$0xff] %v433
  %452 = vst [vmem:[%s3 + $0x30] sm:$0xff] %v434
  %453 = vst [vmem:[%s3 + $0x38] sm:$0xff] %v435
  %454 = vst [vmem:[%s3 + $0x40] sm:$0xff] %v436
  %455 = vst [vmem:[%s3 + $0x48] sm:$0xff] %v437
  %456 = vst [vmem:[%s3 + $0x50] sm:$0xff] %v438
  %457 = vst [vmem:[%s3 + $0x58] sm:$0xff] %v439
  %458 = vst [vmem:[%s3 + $0x60] sm:$0xff] %v440
  %459 = vst [vmem:[%s3 + $0x68] sm:$0xff] %v441
  %460 = vst [vmem:[%s3 + $0x70] sm:$0xff] %v442
  %461 = vst [vmem:[%s3 + $0x78] sm:$0xff] %v443
  %462 = vst [vmem:[%s3 + $0x80] sm:$0xff] %v444
  %463 = vst [vmem:[%s3 + $0x88] sm:$0xff] %v445
  // Predicated region
  $region14: #{autoencoder_6_forward.13} parent=0 // pred_check
    _
  $region15: #{autoencoder_6_forward.13} parent=0 // pred_check_branch
    %465 = sbr.rel (0) target = $region17
  $region16: #{autoencoder_6_forward.13} parent=0 // pred_region
    _
  $region17: #{autoencoder_6_forward.13} parent=0 // pred_fallthru
    _
  // Predicated region
  $region18: #{autoencoder_6_forward.13} parent=0 // pred_check
    _
  $region19: #{autoencoder_6_forward.13} parent=0 // pred_check_branch
    %467 = sbr.rel (0) target = $region21
  $region20: #{autoencoder_6_forward.13} parent=0 // pred_region
    _
  $region21: #{autoencoder_6_forward.13} parent=0 // pred_fallthru
    _

// kernel: tile.32
$region0: #{tile.32}
  #allocation0 [shape = 's32[1]{0}', space=sflag, size = 0x4, scoped, tag = 'scoped memory for tile.32']
  %s0 = inlined_call_operand.vmem [shape: f32[32], index: 0, kind: input, shape index: {}]
  %s1 = inlined_call_operand.vmem [shape: f32[4,32], index: 1, kind: output, shape index: {}]
  // Predicated region
  $region2: #{tile.32} parent=0 // pred_check
    _
  $region3: #{tile.32} parent=0 // pred_check_branch
    %3 = sbr.rel (0) target = $region5
  $region4: #{tile.32} parent=0 // pred_region
    _
  $region5: #{tile.32} parent=0 // pred_fallthru
    _
  %v4 = vld [vmem:[%s0] ss:$0 sm:$0xff]
  %5 = vst [vmem:[%s1] sm:$0xf] %v4

// kernel: tile.33
$region0: #{tile.33}
  %s0 = inlined_call_operand.vmem [shape: f32[4,32], index: 0, kind: input, shape index: {}]
  %s1 = inlined_call_operand.vmem [shape: f32[1,128], index: 1, kind: output, shape index: {}]
  $region1: #{tile.33} parent=0
    #allocation0 [shape = 'u8[4096]{0}', space=vmem, size = 0x1000, scoped, tag = 'scoped mem for output reshape']
    #allocation1 [shape = 'u8[4096]{0}', space=vmem, size = 0x1000, scoped, tag = 'scoped mem for input reshape']
    %s3 = sshllo.u32 0, 4
    %v4 = vld [vmem:[%s0] sm:%s3]
    %5 = vst [vmem:[#allocation1] sm:%s3] %v4
    %v6 = vld [vmem:[#allocation1] sm:$0x1]
    %vm7 = vcmask 261120
    %8 = vst.msk [vmem:[#allocation0] sm:$0x1] %vm7, %v6
    %s9 = scalar_lea.vmem [#allocation1], 3
    %v10 = vld [vmem:[%s9] sm:$0x1]
    %11 = vrot.lane.b32.xlu0 %v10, 96
    %v12 = vpop.permute.xlu0 %11
    %vm13 = vcmask 1048320
    %14 = vst.msk [vmem:[#allocation0] sm:$0x1] %vm13, %v12
    %s15 = scalar_lea.vmem [#allocation1], 2
    %v16 = vld [vmem:[%s15] sm:$0x1]
    %17 = vrot.lane.b32.xlu0 %v16, 64
    %v18 = vpop.permute.xlu0 %17
    %vm19 = vcmask 785920
    %20 = vst.msk [vmem:[#allocation0] sm:$0x1] %vm19, %v18
    %s21 = scalar_lea.vmem [#allocation1], 1
    %v22 = vld [vmem:[%s21] sm:$0x1]
    %23 = vrot.lane.b32.xlu0 %v22, 32
    %v24 = vpop.permute.xlu0 %23
    %vm25 = vcmask 523520
    %26 = vst.msk [vmem:[#allocation0] sm:$0x1] %vm25, %v24
    %s28 = sshllo.u32 0, 1
    %v30 = vld [vmem:[#allocation0] sm:%s28]
    %s31 = sshllo.u32 0, 1
    %32 = vst [vmem:[%s1] sm:%s31] %v30

// kernel: autoencoder_6_forward.14
$region0: #{autoencoder_6_forward.14}
  #allocation0 [shape = 'u32[]', space=smem, size = 0x4, offset = 0x4, fixed_abs, tag = 'smem constant byte address 0x4 - core index']
  #allocation1 [shape = 'u32[144,128]{1,0:T(1,128)}', space=vmem, size = 0x12000, scoped, tag = 'internal scratch']
  %s0 = inlined_call_operand.vmem [shape: f32[200,256], index: 0, kind: input, shape index: {}]
  %s1 = inlined_call_operand.vmem [shape: f32[256,128], index: 1, kind: input, shape index: {}]
  %s2 = inlined_call_operand.vmem [shape: f32[1,128], index: 2, kind: input, shape index: {}]
  %s3 = inlined_call_operand.vmem [shape: f32[200,128], index: 3, kind: output, shape index: {}]
  %s4 = sld [smem:[#allocation0]]
  $region22: #{autoencoder_6_forward.14} parent=0
    _
  %s6 = ssub.s32 1, %s4
  %s7 = scalar_select 0, %s6, %s4
  // Predicated region
  $region2: #{autoencoder_6_forward.14} parent=0 // pred_check
    _
  $region3: #{autoencoder_6_forward.14} parent=0 // pred_check_branch
    %9 = sbr.rel (0) target = $region5
  $region4: #{autoencoder_6_forward.14} parent=0 // pred_region
    _
  $region5: #{autoencoder_6_forward.14} parent=0 // pred_fallthru
    _
  // Predicated region
  $region6: #{autoencoder_6_forward.14} parent=0 // pred_check
    _
  $region7: #{autoencoder_6_forward.14} parent=0 // pred_check_branch
    %11 = sbr.rel (0) target = $region9
  $region8: #{autoencoder_6_forward.14} parent=0 // pred_region
    _
  $region9: #{autoencoder_6_forward.14} parent=0 // pred_fallthru
    _
  // Predicated region
  $region10: #{autoencoder_6_forward.14} parent=0 // pred_check
    _
  $region11: #{autoencoder_6_forward.14} parent=0 // pred_check_branch
    %13 = sbr.rel (0) target = $region13
  $region12: #{autoencoder_6_forward.14} parent=0 // pred_region
    _
  $region13: #{autoencoder_6_forward.14} parent=0 // pred_fallthru
    _
  %v14 = vld [vmem:[%s0] sm:$0xff]
  %v15 = vld [vmem:[%s0 + $0x8] sm:$0xff]
  %v16 = vld [vmem:[%s0 + $0x10] sm:$0xff]
  %v17 = vld [vmem:[%s0 + $0x18] sm:$0xff]
  %v18 = vld [vmem:[%s0 + $0x20] sm:$0xff]
  %v19 = vld [vmem:[%s0 + $0x28] sm:$0xff]
  %v20 = vld [vmem:[%s0 + $0x30] sm:$0xff]
  %v21 = vld [vmem:[%s0 + $0x38] sm:$0xff]
  %v22 = vld [vmem:[%s0 + $0x40] sm:$0xff]
  %v23 = vld [vmem:[%s0 + $0x48] sm:$0xff]
  %v24 = vld [vmem:[%s0 + $0x50] sm:$0xff]
  %v25 = vld [vmem:[%s0 + $0x58] sm:$0xff]
  %v26 = vld [vmem:[%s0 + $0x60] sm:$0xff]
  %v27 = vld [vmem:[%s0 + $0x68] sm:$0xff]
  %v28 = vld [vmem:[%s0 + $0x70] sm:$0xff]
  %v29 = vld [vmem:[%s0 + $0x78] sm:$0xff]
  %v30 = vld [vmem:[%s0 + $0x80] sm:$0xff]
  %v31 = vld [vmem:[%s0 + $0x88] sm:$0xff]
  %v32 = vld [vmem:[%s0 + $0x90] sm:$0xff]
  %v33 = vld [vmem:[%s0 + $0x98] sm:$0xff]
  %v34 = vld [vmem:[%s0 + $0xa0] sm:$0xff]
  %v35 = vld [vmem:[%s0 + $0xa8] sm:$0xff]
  %v36 = vld [vmem:[%s0 + $0xb0] sm:$0xff]
  %v37 = vld [vmem:[%s0 + $0xb8] sm:$0xff]
  %v38 = vld [vmem:[%s0 + $0xc0] sm:$0xff]
  %v39 = vld [vmem:[%s0 + $0xc8] sm:$0xff]
  %v40 = vld [vmem:[%s0 + $0xd0] sm:$0xff]
  %v41 = vld [vmem:[%s0 + $0xd8] sm:$0xff]
  %v42 = vld [vmem:[%s0 + $0xe0] sm:$0xff]
  %v43 = vld [vmem:[%s0 + $0xe8] sm:$0xff]
  %v44 = vld [vmem:[%s0 + $0xf0] sm:$0xff]
  %v45 = vld [vmem:[%s0 + $0xf8] sm:$0xff]
  %v46 = vld [vmem:[%s0 + $0x100] sm:$0xff]
  %v47 = vld [vmem:[%s0 + $0x108] sm:$0xff]
  %v48 = vld [vmem:[%s0 + $0x110] sm:$0xff]
  %v49 = vld [vmem:[%s0 + $0x118] sm:$0xff]
  %v50 = vld [vmem:[%s0 + $0x120] sm:$0xff]
  %v51 = vld [vmem:[%s0 + $0x128] sm:$0xff]
  %v52 = vld [vmem:[%s0 + $0x130] sm:$0xff]
  %v53 = vld [vmem:[%s0 + $0x138] sm:$0xff]
  %v54 = vld [vmem:[%s0 + $0x140] sm:$0xff]
  %v55 = vld [vmem:[%s0 + $0x148] sm:$0xff]
  %v56 = vld [vmem:[%s0 + $0x150] sm:$0xff]
  %v57 = vld [vmem:[%s0 + $0x158] sm:$0xff]
  %v58 = vld [vmem:[%s0 + $0x160] sm:$0xff]
  %v59 = vld [vmem:[%s0 + $0x168] sm:$0xff]
  %v60 = vld [vmem:[%s0 + $0x170] sm:$0xff]
  %v61 = vld [vmem:[%s0 + $0x178] sm:$0xff]
  %v62 = vld [vmem:[%s0 + $0x180] sm:$0xff]
  %v63 = vld [vmem:[%s0 + $0x188] sm:$0xff]
  %v64 = vld [vmem:[%s1] sm:$0xff]
  %v65 = vld [vmem:[%s1 + $0x8] sm:$0xff]
  %v66 = vld [vmem:[%s1 + $0x10] sm:$0xff]
  %v67 = vld [vmem:[%s1 + $0x18] sm:$0xff]
  %v68 = vld [vmem:[%s1 + $0x20] sm:$0xff]
  %v69 = vld [vmem:[%s1 + $0x28] sm:$0xff]
  %v70 = vld [vmem:[%s1 + $0x30] sm:$0xff]
  %v71 = vld [vmem:[%s1 + $0x38] sm:$0xff]
  %v72 = vld [vmem:[%s1 + $0x40] sm:$0xff]
  %v73 = vld [vmem:[%s1 + $0x48] sm:$0xff]
  %v74 = vld [vmem:[%s1 + $0x50] sm:$0xff]
  %v75 = vld [vmem:[%s1 + $0x58] sm:$0xff]
  %v76 = vld [vmem:[%s1 + $0x60] sm:$0xff]
  %v77 = vld [vmem:[%s1 + $0x68] sm:$0xff]
  %v78 = vld [vmem:[%s1 + $0x70] sm:$0xff]
  %v79 = vld [vmem:[%s1 + $0x78] sm:$0xff]
  %v80 = vld [vmem:[%s1 + $0x80] sm:$0xff]
  %v81 = vld [vmem:[%s1 + $0x88] sm:$0xff]
  %v82 = vld [vmem:[%s1 + $0x90] sm:$0xff]
  %v83 = vld [vmem:[%s1 + $0x98] sm:$0xff]
  %v84 = vld [vmem:[%s1 + $0xa0] sm:$0xff]
  %v85 = vld [vmem:[%s1 + $0xa8] sm:$0xff]
  %v86 = vld [vmem:[%s1 + $0xb0] sm:$0xff]
  %v87 = vld [vmem:[%s1 + $0xb8] sm:$0xff]
  %v88 = vld [vmem:[%s1 + $0xc0] sm:$0xff]
  %v89 = vld [vmem:[%s1 + $0xc8] sm:$0xff]
  %v90 = vld [vmem:[%s1 + $0xd0] sm:$0xff]
  %v91 = vld [vmem:[%s1 + $0xd8] sm:$0xff]
  %v92 = vld [vmem:[%s1 + $0xe0] sm:$0xff]
  %v93 = vld [vmem:[%s1 + $0xe8] sm:$0xff]
  %v94 = vld [vmem:[%s1 + $0xf0] sm:$0xff]
  %v95 = vld [vmem:[%s1 + $0xf8] sm:$0xff]
  %v96 = vld [vmem:[%s2] sm:$0x1]
  %v98 = vlaneseq
  %v99 = vshrl.u32 %v98, 7
  %v100 = vsub.s32 0, %v99
  %v101 = vrot.slane %v96, %v100
  %103 = vmatprep.subr.mxu0 0.0
  %104 = vmatpush1.msra.mxu0 %v64
  %105 = vmatprep.subr.mxu0 0.0
  %106 = vmatpush1.msra.mxu0 %v65
  %107 = vmatprep.subr.mxu0 0.0
  %108 = vmatpush1.msra.mxu0 %v66
  %109 = vmatprep.subr.mxu0 0.0
  %110 = vmatpush1.msra.mxu0 %v67
  %111 = vmatprep.subr.mxu0 0.0
  %112 = vmatpush1.msra.mxu0 %v68
  %113 = vmatprep.subr.mxu0 0.0
  %114 = vmatpush1.msra.mxu0 %v69
  %115 = vmatprep.subr.mxu0 0.0
  %116 = vmatpush1.msra.mxu0 %v70
  %117 = vmatprep.subr.mxu0 0.0
  %118 = vmatpush1.msra.mxu0 %v71
  %119 = vmatprep.subr.mxu0 0.0
  %120 = vmatpush1.msra.mxu0 %v72
  %121 = vmatprep.subr.mxu0 0.0
  %122 = vmatpush1.msra.mxu0 %v73
  %123 = vmatprep.subr.mxu0 0.0
  %124 = vmatpush1.msra.mxu0 %v74
  %125 = vmatprep.subr.mxu0 0.0
  %126 = vmatpush1.msra.mxu0 %v75
  %127 = vmatprep.subr.mxu0 0.0
  %128 = vmatpush1.msra.mxu0 %v76
  %129 = vmatprep.subr.mxu0 0.0
  %130 = vmatpush1.msra.mxu0 %v77
  %131 = vmatprep.subr.mxu0 0.0
  %132 = vmatpush1.msra.mxu0 %v78
  %133 = vmatprep.subr.mxu0 0.0
  %134 = vmatpush1.msra.mxu0 %v79
  %135 = vmatprep.subr.mxu0 0.0
  %136 = vmatpush1.msra.mxu0 %v80
  %137 = vmatprep.subr.mxu0 0.0
  %138 = vmatpush1.msra.mxu0 %v81
  %139 = vmatprep.subr.mxu0 0.0
  %140 = vmatpush1.msra.mxu0 %v82
  %141 = vmatprep.subr.mxu0 0.0
  %142 = vmatpush1.msra.mxu0 %v83
  %143 = vmatprep.subr.mxu0 0.0
  %144 = vmatpush1.msra.mxu0 %v84
  %145 = vmatprep.subr.mxu0 0.0
  %146 = vmatpush1.msra.mxu0 %v85
  %147 = vmatprep.subr.mxu0 0.0
  %148 = vmatpush1.msra.mxu0 %v86
  %149 = vmatprep.subr.mxu0 0.0
  %150 = vmatpush1.msra.mxu0 %v87
  %151 = vmatprep.subr.mxu0 0.0
  %152 = vmatpush1.msra.mxu0 %v88
  %153 = vmatprep.subr.mxu0 0.0
  %154 = vmatpush1.msra.mxu0 %v89
  %155 = vmatprep.subr.mxu0 0.0
  %156 = vmatpush1.msra.mxu0 %v90
  %157 = vmatprep.subr.mxu0 0.0
  %158 = vmatpush1.msra.mxu0 %v91
  %159 = vmatprep.subr.mxu0 0.0
  %160 = vmatpush1.msra.mxu0 %v92
  %161 = vmatprep.subr.mxu0 0.0
  %162 = vmatpush1.msra.mxu0 %v93
  %163 = vmatprep.subr.mxu0 0.0
  %164 = vmatpush1.msra.mxu0 %v94
  %165 = vmatprep.subr.mxu0 0.0
  %166 = vmatpush1.msra.mxu0 %v95
  %167 = vmatprep.mubr.f32.mxu0 %v15
  %168 = vmatmul.mubr.f32.gmra.mrb[0].mxu0 %v14
  %v169 = vpop.f32.mrb[0].mxu0
  %v170 = vadd.f32 %v101, %v169
  %v171 = vpop.f32.mrb[0].mxu0
  %172 = vmatprep.mubr.f32.mxu0 %v17
  %173 = vmatmul.mubr.f32.gmra.mrb[0].mxu0 %v16
  %v174 = vpop.f32.mrb[0].mxu0
  %v175 = vadd.f32 %v101, %v174
  %v176 = vpop.f32.mrb[0].mxu0
  %177 = vmatprep.mubr.f32.mxu0 %v19
  %178 = vmatmul.mubr.f32.gmra.mrb[0].mxu0 %v18
  %v179 = vpop.f32.mrb[0].mxu0
  %v180 = vadd.f32 %v101, %v179
  %v181 = vpop.f32.mrb[0].mxu0
  %182 = vmatprep.mubr.f32.mxu0 %v21
  %183 = vmatmul.mubr.f32.gmra.mrb[0].mxu0 %v20
  %v184 = vpop.f32.mrb[0].mxu0
  %v185 = vadd.f32 %v101, %v184
  %v186 = vpop.f32.mrb[0].mxu0
  %187 = vmatprep.mubr.f32.mxu0 %v23
  %188 = vmatmul.mubr.f32.gmra.mrb[0].mxu0 %v22
  %v189 = vpop.f32.mrb[0].mxu0
  %v190 = vadd.f32 %v101, %v189
  %v191 = vpop.f32.mrb[0].mxu0
  %192 = vmatprep.mubr.f32.mxu0 %v25
  %193 = vmatmul.mubr.f32.gmra.mrb[0].mxu0 %v24
  %v194 = vpop.f32.mrb[0].mxu0
  %v195 = vadd.f32 %v101, %v194
  %v196 = vpop.f32.mrb[0].mxu0
  %197 = vmatprep.mubr.f32.mxu0 %v27
  %198 = vmatmul.mubr.f32.gmra.mrb[0].mxu0 %v26
  %v199 = vpop.f32.mrb[0].mxu0
  %v200 = vadd.f32 %v101, %v199
  %v201 = vpop.f32.mrb[0].mxu0
  %202 = vmatprep.mubr.f32.mxu0 %v29
  %203 = vmatmul.mubr.f32.gmra.mrb[0].mxu0 %v28
  %v204 = vpop.f32.mrb[0].mxu0
  %v205 = vadd.f32 %v101, %v204
  %v206 = vpop.f32.mrb[0].mxu0
  %207 = vmatprep.mubr.f32.mxu0 %v31
  %208 = vmatmul.mubr.f32.gmra.mrb[0].mxu0 %v30
  %v209 = vpop.f32.mrb[0].mxu0
  %v210 = vadd.f32 %v101, %v209
  %v211 = vpop.f32.mrb[0].mxu0
  %212 = vmatprep.mubr.f32.mxu0 %v33
  %213 = vmatmul.mubr.f32.gmra.mrb[0].mxu0 %v32
  %v214 = vpop.f32.mrb[0].mxu0
  %v215 = vadd.f32 %v101, %v214
  %v216 = vpop.f32.mrb[0].mxu0
  %217 = vmatprep.mubr.f32.mxu0 %v35
  %218 = vmatmul.mubr.f32.gmra.mrb[0].mxu0 %v34
  %v219 = vpop.f32.mrb[0].mxu0
  %v220 = vadd.f32 %v101, %v219
  %v221 = vpop.f32.mrb[0].mxu0
  %222 = vmatprep.mubr.f32.mxu0 %v37
  %223 = vmatmul.mubr.f32.gmra.mrb[0].mxu0 %v36
  %v224 = vpop.f32.mrb[0].mxu0
  %v225 = vadd.f32 %v101, %v224
  %v226 = vpop.f32.mrb[0].mxu0
  %227 = vmatprep.mubr.f32.mxu0 %v39
  %228 = vmatmul.mubr.f32.gmra.mrb[0].mxu0 %v38
  %v229 = vpop.f32.mrb[0].mxu0
  %v230 = vadd.f32 %v101, %v229
  %v231 = vpop.f32.mrb[0].mxu0
  %232 = vmatprep.mubr.f32.mxu0 %v41
  %233 = vmatmul.mubr.f32.gmra.mrb[0].mxu0 %v40
  %v234 = vpop.f32.mrb[0].mxu0
  %v235 = vadd.f32 %v101, %v234
  %v236 = vpop.f32.mrb[0].mxu0
  %237 = vmatprep.mubr.f32.mxu0 %v43
  %238 = vmatmul.mubr.f32.gmra.mrb[0].mxu0 %v42
  %v239 = vpop.f32.mrb[0].mxu0
  %v240 = vadd.f32 %v101, %v239
  %v241 = vpop.f32.mrb[0].mxu0
  %242 = vmatprep.mubr.f32.mxu0 %v45
  %243 = vmatmul.mubr.f32.gmra.mrb[0].mxu0 %v44
  %v244 = vpop.f32.mrb[0].mxu0
  %v245 = vadd.f32 %v101, %v244
  %v246 = vpop.f32.mrb[0].mxu0
  %247 = vmatprep.mubr.f32.mxu0 %v47
  %248 = vmatmul.mubr.f32.gmra.mrb[0].mxu0 %v46
  %v249 = vpop.f32.mrb[0].mxu0
  %v250 = vadd.f32 %v101, %v249
  %v251 = vpop.f32.mrb[0].mxu0
  %252 = vmatprep.mubr.f32.mxu0 %v49
  %253 = vmatmul.mubr.f32.gmra.mrb[0].mxu0 %v48
  %v254 = vpop.f32.mrb[0].mxu0
  %v255 = vadd.f32 %v101, %v254
  %v256 = vpop.f32.mrb[0].mxu0
  %257 = vmatprep.mubr.f32.mxu0 %v51
  %258 = vmatmul.mubr.f32.gmra.mrb[0].mxu0 %v50
  %v259 = vpop.f32.mrb[0].mxu0
  %v260 = vadd.f32 %v101, %v259
  %v261 = vpop.f32.mrb[0].mxu0
  %262 = vmatprep.mubr.f32.mxu0 %v53
  %263 = vmatmul.mubr.f32.gmra.mrb[0].mxu0 %v52
  %v264 = vpop.f32.mrb[0].mxu0
  %v265 = vadd.f32 %v101, %v264
  %v266 = vpop.f32.mrb[0].mxu0
  %267 = vmatprep.mubr.f32.mxu0 %v55
  %268 = vmatmul.mubr.f32.gmra.mrb[0].mxu0 %v54
  %v269 = vpop.f32.mrb[0].mxu0
  %v270 = vadd.f32 %v101, %v269
  %v271 = vpop.f32.mrb[0].mxu0
  %272 = vmatprep.mubr.f32.mxu0 %v57
  %273 = vmatmul.mubr.f32.gmra.mrb[0].mxu0 %v56
  %v274 = vpop.f32.mrb[0].mxu0
  %v275 = vadd.f32 %v101, %v274
  %v276 = vpop.f32.mrb[0].mxu0
  %277 = vmatprep.mubr.f32.mxu0 %v59
  %278 = vmatmul.mubr.f32.gmra.mrb[0].mxu0 %v58
  %v279 = vpop.f32.mrb[0].mxu0
  %v280 = vadd.f32 %v101, %v279
  %v281 = vpop.f32.mrb[0].mxu0
  %282 = vmatprep.mubr.f32.mxu0 %v61
  %283 = vmatmul.mubr.f32.gmra.mrb[0].mxu0 %v60
  %v284 = vpop.f32.mrb[0].mxu0
  %v285 = vadd.f32 %v101, %v284
  %v286 = vpop.f32.mrb[0].mxu0
  %287 = vmatprep.mubr.f32.mxu0 %v63
  %288 = vmatmul.mubr.f32.gmra.mrb[0].mxu0 %v62
  %v289 = vpop.f32.mrb[0].mxu0
  %v290 = vadd.f32 %v101, %v289
  %v291 = vpop.f32.mrb[0].mxu0
  %292 = vdwg.mxu0
  %v293 = vmax.f32 %v170, 0.0
  %v294 = vmax.f32 %v175, 0.0
  %v295 = vmax.f32 %v180, 0.0
  %v296 = vmax.f32 %v185, 0.0
  %v297 = vmax.f32 %v190, 0.0
  %v298 = vmax.f32 %v195, 0.0
  %v299 = vmax.f32 %v200, 0.0
  %v300 = vmax.f32 %v205, 0.0
  %v301 = vmax.f32 %v210, 0.0
  %v302 = vmax.f32 %v215, 0.0
  %v303 = vmax.f32 %v220, 0.0
  %v304 = vmax.f32 %v225, 0.0
  %v305 = vmax.f32 %v230, 0.0
  %v306 = vmax.f32 %v235, 0.0
  %v307 = vmax.f32 %v240, 0.0
  %v308 = vmax.f32 %v245, 0.0
  %v309 = vmax.f32 %v250, 0.0
  %v310 = vmax.f32 %v255, 0.0
  %v311 = vmax.f32 %v260, 0.0
  %v312 = vmax.f32 %v265, 0.0
  %v313 = vmax.f32 %v270, 0.0
  %v314 = vmax.f32 %v275, 0.0
  %v315 = vmax.f32 %v280, 0.0
  %v316 = vmax.f32 %v285, 0.0
  %v317 = vmax.f32 %v290, 0.0
  %318 = vst [vmem:[%s3] sm:$0xff] %v293
  %319 = vst [vmem:[%s3 + $0x8] sm:$0xff] %v294
  %320 = vst [vmem:[%s3 + $0x10] sm:$0xff] %v295
  %321 = vst [vmem:[%s3 + $0x18] sm:$0xff] %v296
  %322 = vst [vmem:[%s3 + $0x20] sm:$0xff] %v297
  %323 = vst [vmem:[%s3 + $0x28] sm:$0xff] %v298
  %324 = vst [vmem:[%s3 + $0x30] sm:$0xff] %v299
  %325 = vst [vmem:[%s3 + $0x38] sm:$0xff] %v300
  %326 = vst [vmem:[%s3 + $0x40] sm:$0xff] %v301
  %327 = vst [vmem:[%s3 + $0x48] sm:$0xff] %v302
  %328 = vst [vmem:[%s3 + $0x50] sm:$0xff] %v303
  %329 = vst [vmem:[%s3 + $0x58] sm:$0xff] %v304
  %330 = vst [vmem:[%s3 + $0x60] sm:$0xff] %v305
  %331 = vst [vmem:[%s3 + $0x68] sm:$0xff] %v306
  %332 = vst [vmem:[%s3 + $0x70] sm:$0xff] %v307
  %333 = vst [vmem:[%s3 + $0x78] sm:$0xff] %v308
  %334 = vst [vmem:[%s3 + $0x80] sm:$0xff] %v309
  %335 = vst [vmem:[%s3 + $0x88] sm:$0xff] %v310
  %336 = vst [vmem:[%s3 + $0x90] sm:$0xff] %v311
  %337 = vst [vmem:[%s3 + $0x98] sm:$0xff] %v312
  %338 = vst [vmem:[%s3 + $0xa0] sm:$0xff] %v313
  %339 = vst [vmem:[%s3 + $0xa8] sm:$0xff] %v314
  %340 = vst [vmem:[%s3 + $0xb0] sm:$0xff] %v315
  %341 = vst [vmem:[%s3 + $0xb8] sm:$0xff] %v316
  %342 = vst [vmem:[%s3 + $0xc0] sm:$0xff] %v317
  // Predicated region
  $region14: #{autoencoder_6_forward.14} parent=0 // pred_check
    _
  $region15: #{autoencoder_6_forward.14} parent=0 // pred_check_branch
    %344 = sbr.rel (0) target = $region17
  $region16: #{autoencoder_6_forward.14} parent=0 // pred_region
    _
  $region17: #{autoencoder_6_forward.14} parent=0 // pred_fallthru
    _
  // Predicated region
  $region18: #{autoencoder_6_forward.14} parent=0 // pred_check
    _
  $region19: #{autoencoder_6_forward.14} parent=0 // pred_check_branch
    %346 = sbr.rel (0) target = $region21
  $region20: #{autoencoder_6_forward.14} parent=0 // pred_region
    _
  $region21: #{autoencoder_6_forward.14} parent=0 // pred_fallthru
    _

// kernel: tile.37
$region0: #{tile.37}
  #allocation0 [shape = 's32[1]{0}', space=sflag, size = 0x4, scoped, tag = 'scoped memory for tile.37']
  %s0 = inlined_call_operand.<no memory space> [shape: f32[], index: 0, kind: input, shape index: {}]
  %s1 = inlined_call_operand.vmem [shape: f32[4,1], index: 1, kind: output, shape index: {}]
  %v2 = vstv %s0
  %3 = vst [vmem:[%s1] sm:$0xf] %v2

// kernel: autoencoder_6_forward.15
$region0: #{autoencoder_6_forward.15}
  #allocation0 [shape = 'u32[]', space=smem, size = 0x4, offset = 0x4, fixed_abs, tag = 'smem constant byte address 0x4 - core index']
  #allocation1 [shape = 'u32[144,128]{1,0:T(1,128)}', space=vmem, size = 0x12000, scoped, tag = 'internal scratch']
  %s0 = inlined_call_operand.vmem [shape: f32[800,128], index: 0, kind: input, shape index: {}]
  %s1 = inlined_call_operand.vmem [shape: f32[4,128], index: 1, kind: input, shape index: {}]
  %s2 = inlined_call_operand.vmem [shape: f32[4,1], index: 2, kind: input, shape index: {}]
  %s3 = inlined_call_operand.vmem [shape: f32[4,800], index: 3, kind: output, shape index: {}]
  %s4 = sld [smem:[#allocation0]]
  $region22: #{autoencoder_6_forward.15} parent=0
    _
  %s6 = ssub.s32 1, %s4
  %s7 = scalar_select 0, %s6, %s4
  // Predicated region
  $region2: #{autoencoder_6_forward.15} parent=0 // pred_check
    _
  $region3: #{autoencoder_6_forward.15} parent=0 // pred_check_branch
    %9 = sbr.rel (0) target = $region5
  $region4: #{autoencoder_6_forward.15} parent=0 // pred_region
    _
  $region5: #{autoencoder_6_forward.15} parent=0 // pred_fallthru
    _
  // Predicated region
  $region6: #{autoencoder_6_forward.15} parent=0 // pred_check
    _
  $region7: #{autoencoder_6_forward.15} parent=0 // pred_check_branch
    %11 = sbr.rel (0) target = $region9
  $region8: #{autoencoder_6_forward.15} parent=0 // pred_region
    _
  $region9: #{autoencoder_6_forward.15} parent=0 // pred_fallthru
    _
  // Predicated region
  $region10: #{autoencoder_6_forward.15} parent=0 // pred_check
    _
  $region11: #{autoencoder_6_forward.15} parent=0 // pred_check_branch
    %13 = sbr.rel (0) target = $region13
  $region12: #{autoencoder_6_forward.15} parent=0 // pred_region
    _
  $region13: #{autoencoder_6_forward.15} parent=0 // pred_fallthru
    _
  %v14 = vld [vmem:[%s1] sm:$0xf]
  %v15 = vld [vmem:[%s0] sm:$0xff]
  %v16 = vld [vmem:[%s0 + $0x8] sm:$0xff]
  %v17 = vld [vmem:[%s0 + $0x10] sm:$0xff]
  %v18 = vld [vmem:[%s0 + $0x18] sm:$0xff]
  %v19 = vld [vmem:[%s0 + $0x20] sm:$0xff]
  %v20 = vld [vmem:[%s0 + $0x28] sm:$0xff]
  %v21 = vld [vmem:[%s0 + $0x30] sm:$0xff]
  %v22 = vld [vmem:[%s0 + $0x38] sm:$0xff]
  %v23 = vld [vmem:[%s0 + $0x40] sm:$0xff]
  %v24 = vld [vmem:[%s0 + $0x48] sm:$0xff]
  %v25 = vld [vmem:[%s0 + $0x50] sm:$0xff]
  %v26 = vld [vmem:[%s0 + $0x58] sm:$0xff]
  %v27 = vld [vmem:[%s0 + $0x60] sm:$0xff]
  %v28 = vld [vmem:[%s0 + $0x68] sm:$0xff]
  %v29 = vld [vmem:[%s0 + $0x70] sm:$0xff]
  %v30 = vld [vmem:[%s0 + $0x78] sm:$0xff]
  %v31 = vld [vmem:[%s0 + $0x80] sm:$0xff]
  %v32 = vld [vmem:[%s0 + $0x88] sm:$0xff]
  %v33 = vld [vmem:[%s0 + $0x90] sm:$0xff]
  %v34 = vld [vmem:[%s0 + $0x98] sm:$0xff]
  %v35 = vld [vmem:[%s0 + $0xa0] sm:$0xff]
  %v36 = vld [vmem:[%s0 + $0xa8] sm:$0xff]
  %v37 = vld [vmem:[%s0 + $0xb0] sm:$0xff]
  %v38 = vld [vmem:[%s0 + $0xb8] sm:$0xff]
  %v39 = vld [vmem:[%s0 + $0xc0] sm:$0xff]
  %v40 = vld [vmem:[%s0 + $0xc8] sm:$0xff]
  %v41 = vld [vmem:[%s0 + $0xd0] sm:$0xff]
  %v42 = vld [vmem:[%s0 + $0xd8] sm:$0xff]
  %v43 = vld [vmem:[%s0 + $0xe0] sm:$0xff]
  %v44 = vld [vmem:[%s0 + $0xe8] sm:$0xff]
  %v45 = vld [vmem:[%s0 + $0xf0] sm:$0xff]
  %v46 = vld [vmem:[%s0 + $0xf8] sm:$0xff]
  %v47 = vld [vmem:[%s0 + $0x100] sm:$0xff]
  %v48 = vld [vmem:[%s0 + $0x108] sm:$0xff]
  %v49 = vld [vmem:[%s0 + $0x110] sm:$0xff]
  %v50 = vld [vmem:[%s0 + $0x118] sm:$0xff]
  %v51 = vld [vmem:[%s0 + $0x120] sm:$0xff]
  %v52 = vld [vmem:[%s0 + $0x128] sm:$0xff]
  %v53 = vld [vmem:[%s0 + $0x130] sm:$0xff]
  %v54 = vld [vmem:[%s0 + $0x138] sm:$0xff]
  %v55 = vld [vmem:[%s0 + $0x140] sm:$0xff]
  %v56 = vld [vmem:[%s0 + $0x148] sm:$0xff]
  %v57 = vld [vmem:[%s0 + $0x150] sm:$0xff]
  %v58 = vld [vmem:[%s0 + $0x158] sm:$0xff]
  %v59 = vld [vmem:[%s0 + $0x160] sm:$0xff]
  %v60 = vld [vmem:[%s0 + $0x168] sm:$0xff]
  %v61 = vld [vmem:[%s0 + $0x170] sm:$0xff]
  %v62 = vld [vmem:[%s0 + $0x178] sm:$0xff]
  %v63 = vld [vmem:[%s0 + $0x180] sm:$0xff]
  %v64 = vld [vmem:[%s0 + $0x188] sm:$0xff]
  %v65 = vld [vmem:[%s0 + $0x190] sm:$0xff]
  %v66 = vld [vmem:[%s0 + $0x198] sm:$0xff]
  %v67 = vld [vmem:[%s0 + $0x1a0] sm:$0xff]
  %v68 = vld [vmem:[%s0 + $0x1a8] sm:$0xff]
  %v69 = vld [vmem:[%s0 + $0x1b0] sm:$0xff]
  %v70 = vld [vmem:[%s0 + $0x1b8] sm:$0xff]
  %v71 = vld [vmem:[%s0 + $0x1c0] sm:$0xff]
  %v72 = vld [vmem:[%s0 + $0x1c8] sm:$0xff]
  %v73 = vld [vmem:[%s0 + $0x1d0] sm:$0xff]
  %v74 = vld [vmem:[%s0 + $0x1d8] sm:$0xff]
  %v75 = vld [vmem:[%s0 + $0x1e0] sm:$0xff]
  %v76 = vld [vmem:[%s0 + $0x1e8] sm:$0xff]
  %v77 = vld [vmem:[%s0 + $0x1f0] sm:$0xff]
  %v78 = vld [vmem:[%s0 + $0x1f8] sm:$0xff]
  %v79 = vld [vmem:[%s0 + $0x200] sm:$0xff]
  %v80 = vld [vmem:[%s0 + $0x208] sm:$0xff]
  %v81 = vld [vmem:[%s0 + $0x210] sm:$0xff]
  %v82 = vld [vmem:[%s0 + $0x218] sm:$0xff]
  %v83 = vld [vmem:[%s0 + $0x220] sm:$0xff]
  %v84 = vld [vmem:[%s0 + $0x228] sm:$0xff]
  %v85 = vld [vmem:[%s0 + $0x230] sm:$0xff]
  %v86 = vld [vmem:[%s0 + $0x238] sm:$0xff]
  %v87 = vld [vmem:[%s0 + $0x240] sm:$0xff]
  %v88 = vld [vmem:[%s0 + $0x248] sm:$0xff]
  %v89 = vld [vmem:[%s0 + $0x250] sm:$0xff]
  %v90 = vld [vmem:[%s0 + $0x258] sm:$0xff]
  %v91 = vld [vmem:[%s0 + $0x260] sm:$0xff]
  %v92 = vld [vmem:[%s0 + $0x268] sm:$0xff]
  %v93 = vld [vmem:[%s0 + $0x270] sm:$0xff]
  %v94 = vld [vmem:[%s0 + $0x278] sm:$0xff]
  %v95 = vld [vmem:[%s0 + $0x280] sm:$0xff]
  %v96 = vld [vmem:[%s0 + $0x288] sm:$0xff]
  %v97 = vld [vmem:[%s0 + $0x290] sm:$0xff]
  %v98 = vld [vmem:[%s0 + $0x298] sm:$0xff]
  %v99 = vld [vmem:[%s0 + $0x2a0] sm:$0xff]
  %v100 = vld [vmem:[%s0 + $0x2a8] sm:$0xff]
  %v101 = vld [vmem:[%s0 + $0x2b0] sm:$0xff]
  %v102 = vld [vmem:[%s0 + $0x2b8] sm:$0xff]
  %v103 = vld [vmem:[%s0 + $0x2c0] sm:$0xff]
  %v104 = vld [vmem:[%s0 + $0x2c8] sm:$0xff]
  %v105 = vld [vmem:[%s0 + $0x2d0] sm:$0xff]
  %v106 = vld [vmem:[%s0 + $0x2d8] sm:$0xff]
  %v107 = vld [vmem:[%s0 + $0x2e0] sm:$0xff]
  %v108 = vld [vmem:[%s0 + $0x2e8] sm:$0xff]
  %v109 = vld [vmem:[%s0 + $0x2f0] sm:$0xff]
  %v110 = vld [vmem:[%s0 + $0x2f8] sm:$0xff]
  %v111 = vld [vmem:[%s0 + $0x300] sm:$0xff]
  %v112 = vld [vmem:[%s0 + $0x308] sm:$0xff]
  %v113 = vld [vmem:[%s0 + $0x310] sm:$0xff]
  %v114 = vld [vmem:[%s0 + $0x318] sm:$0xff]
  %v115 = vld [vmem:[%s2] sm:$0xf]
  %117 = vset.pattern.permute.xlu0 0
  %118 = vperm.xlu0 %117, %v115
  %v119 = vpop.permute.xlu0 %118
  %121 = vmatprep.subr.mxu0 0.0
  %122 = vmatpush1.xpose.msra.mxu0 %v15
  %123 = vmatprep.subr.mxu0 0.0
  %124 = vmatpush1.xpose.msra.mxu0 %v16
  %125 = vmatprep.subr.mxu0 0.0
  %126 = vmatpush1.xpose.msra.mxu0 %v17
  %127 = vmatprep.subr.mxu0 0.0
  %128 = vmatpush1.xpose.msra.mxu0 %v18
  %129 = vmatprep.subr.mxu0 0.0
  %130 = vmatpush1.xpose.msra.mxu0 %v19
  %131 = vmatprep.subr.mxu0 0.0
  %132 = vmatpush1.xpose.msra.mxu0 %v20
  %133 = vmatprep.subr.mxu0 0.0
  %134 = vmatpush1.xpose.msra.mxu0 %v21
  %135 = vmatprep.subr.mxu0 0.0
  %136 = vmatpush1.xpose.msra.mxu0 %v22
  %137 = vmatprep.subr.mxu0 0.0
  %138 = vmatpush1.xpose.msra.mxu0 %v23
  %139 = vmatprep.subr.mxu0 0.0
  %140 = vmatpush1.xpose.msra.mxu0 %v24
  %141 = vmatprep.subr.mxu0 0.0
  %142 = vmatpush1.xpose.msra.mxu0 %v25
  %143 = vmatprep.subr.mxu0 0.0
  %144 = vmatpush1.xpose.msra.mxu0 %v26
  %145 = vmatprep.subr.mxu0 0.0
  %146 = vmatpush1.xpose.msra.mxu0 %v27
  %147 = vmatprep.subr.mxu0 0.0
  %148 = vmatpush1.xpose.msra.mxu0 %v28
  %149 = vmatprep.subr.mxu0 0.0
  %150 = vmatpush1.xpose.msra.mxu0 %v29
  %151 = vmatprep.subr.mxu0 0.0
  %152 = vmatpush1.xpose.msra.mxu0 %v30
  %153 = vmatprep.subr.mxu0 0.0
  %154 = vmatpush1.xpose.msra.mxu0 %v31
  %155 = vmatprep.subr.mxu0 0.0
  %156 = vmatpush1.xpose.msra.mxu0 %v32
  %157 = vmatprep.subr.mxu0 0.0
  %158 = vmatpush1.xpose.msra.mxu0 %v33
  %159 = vmatprep.subr.mxu0 0.0
  %160 = vmatpush1.xpose.msra.mxu0 %v34
  %161 = vmatprep.subr.mxu0 0.0
  %162 = vmatpush1.xpose.msra.mxu0 %v35
  %163 = vmatprep.subr.mxu0 0.0
  %164 = vmatpush1.xpose.msra.mxu0 %v36
  %165 = vmatprep.subr.mxu0 0.0
  %166 = vmatpush1.xpose.msra.mxu0 %v37
  %167 = vmatprep.subr.mxu0 0.0
  %168 = vmatpush1.xpose.msra.mxu0 %v38
  %169 = vmatprep.subr.mxu0 0.0
  %170 = vmatpush1.xpose.msra.mxu0 %v39
  %171 = vmatprep.subr.mxu0 0.0
  %172 = vmatpush1.xpose.msra.mxu0 %v40
  %173 = vmatprep.subr.mxu0 0.0
  %174 = vmatpush1.xpose.msra.mxu0 %v41
  %175 = vmatprep.subr.mxu0 0.0
  %176 = vmatpush1.xpose.msra.mxu0 %v42
  %177 = vmatprep.subr.mxu0 0.0
  %178 = vmatpush1.xpose.msra.mxu0 %v43
  %179 = vmatprep.subr.mxu0 0.0
  %180 = vmatpush1.xpose.msra.mxu0 %v44
  %181 = vmatprep.subr.mxu0 0.0
  %182 = vmatpush1.xpose.msra.mxu0 %v45
  %183 = vmatprep.subr.mxu0 0.0
  %184 = vmatpush1.xpose.msra.mxu0 %v46
  %185 = vmatprep.mubr.f32.mxu0 0.0
  %186 = vmatmul.mubr.f32.gmra.mrb[0].mxu0 %v14
  %v187 = vpop.f32.mrb[0].mxu0
  %v188 = vadd.f32 %v119, %v187
  %v189 = vpop.f32.mrb[0].mxu0
  %v190 = vadd.f32 %v119, %v189
  %191 = vdwg.mxu0
  %192 = vmatprep.subr.mxu0 0.0
  %193 = vmatpush1.xpose.msra.mxu0 %v47
  %194 = vmatprep.subr.mxu0 0.0
  %195 = vmatpush1.xpose.msra.mxu0 %v48
  %196 = vmatprep.subr.mxu0 0.0
  %197 = vmatpush1.xpose.msra.mxu0 %v49
  %198 = vmatprep.subr.mxu0 0.0
  %199 = vmatpush1.xpose.msra.mxu0 %v50
  %200 = vmatprep.subr.mxu0 0.0
  %201 = vmatpush1.xpose.msra.mxu0 %v51
  %202 = vmatprep.subr.mxu0 0.0
  %203 = vmatpush1.xpose.msra.mxu0 %v52
  %204 = vmatprep.subr.mxu0 0.0
  %205 = vmatpush1.xpose.msra.mxu0 %v53
  %206 = vmatprep.subr.mxu0 0.0
  %207 = vmatpush1.xpose.msra.mxu0 %v54
  %208 = vmatprep.subr.mxu0 0.0
  %209 = vmatpush1.xpose.msra.mxu0 %v55
  %210 = vmatprep.subr.mxu0 0.0
  %211 = vmatpush1.xpose.msra.mxu0 %v56
  %212 = vmatprep.subr.mxu0 0.0
  %213 = vmatpush1.xpose.msra.mxu0 %v57
  %214 = vmatprep.subr.mxu0 0.0
  %215 = vmatpush1.xpose.msra.mxu0 %v58
  %216 = vmatprep.subr.mxu0 0.0
  %217 = vmatpush1.xpose.msra.mxu0 %v59
  %218 = vmatprep.subr.mxu0 0.0
  %219 = vmatpush1.xpose.msra.mxu0 %v60
  %220 = vmatprep.subr.mxu0 0.0
  %221 = vmatpush1.xpose.msra.mxu0 %v61
  %222 = vmatprep.subr.mxu0 0.0
  %223 = vmatpush1.xpose.msra.mxu0 %v62
  %224 = vmatprep.subr.mxu0 0.0
  %225 = vmatpush1.xpose.msra.mxu0 %v63
  %226 = vmatprep.subr.mxu0 0.0
  %227 = vmatpush1.xpose.msra.mxu0 %v64
  %228 = vmatprep.subr.mxu0 0.0
  %229 = vmatpush1.xpose.msra.mxu0 %v65
  %230 = vmatprep.subr.mxu0 0.0
  %231 = vmatpush1.xpose.msra.mxu0 %v66
  %232 = vmatprep.subr.mxu0 0.0
  %233 = vmatpush1.xpose.msra.mxu0 %v67
  %234 = vmatprep.subr.mxu0 0.0
  %235 = vmatpush1.xpose.msra.mxu0 %v68
  %236 = vmatprep.subr.mxu0 0.0
  %237 = vmatpush1.xpose.msra.mxu0 %v69
  %238 = vmatprep.subr.mxu0 0.0
  %239 = vmatpush1.xpose.msra.mxu0 %v70
  %240 = vmatprep.subr.mxu0 0.0
  %241 = vmatpush1.xpose.msra.mxu0 %v71
  %242 = vmatprep.subr.mxu0 0.0
  %243 = vmatpush1.xpose.msra.mxu0 %v72
  %244 = vmatprep.subr.mxu0 0.0
  %245 = vmatpush1.xpose.msra.mxu0 %v73
  %246 = vmatprep.subr.mxu0 0.0
  %247 = vmatpush1.xpose.msra.mxu0 %v74
  %248 = vmatprep.subr.mxu0 0.0
  %249 = vmatpush1.xpose.msra.mxu0 %v75
  %250 = vmatprep.subr.mxu0 0.0
  %251 = vmatpush1.xpose.msra.mxu0 %v76
  %252 = vmatprep.subr.mxu0 0.0
  %253 = vmatpush1.xpose.msra.mxu0 %v77
  %254 = vmatprep.subr.mxu0 0.0
  %255 = vmatpush1.xpose.msra.mxu0 %v78
  %256 = vmatprep.mubr.f32.mxu0 0.0
  %257 = vmatmul.mubr.f32.gmra.mrb[0].mxu0 %v14
  %v258 = vpop.f32.mrb[0].mxu0
  %v259 = vadd.f32 %v119, %v258
  %v260 = vpop.f32.mrb[0].mxu0
  %v261 = vadd.f32 %v119, %v260
  %262 = vdwg.mxu0
  %263 = vmatprep.subr.mxu0 0.0
  %264 = vmatpush1.xpose.msra.mxu0 %v79
  %265 = vmatprep.subr.mxu0 0.0
  %266 = vmatpush1.xpose.msra.mxu0 %v80
  %267 = vmatprep.subr.mxu0 0.0
  %268 = vmatpush1.xpose.msra.mxu0 %v81
  %269 = vmatprep.subr.mxu0 0.0
  %270 = vmatpush1.xpose.msra.mxu0 %v82
  %271 = vmatprep.subr.mxu0 0.0
  %272 = vmatpush1.xpose.msra.mxu0 %v83
  %273 = vmatprep.subr.mxu0 0.0
  %274 = vmatpush1.xpose.msra.mxu0 %v84
  %275 = vmatprep.subr.mxu0 0.0
  %276 = vmatpush1.xpose.msra.mxu0 %v85
  %277 = vmatprep.subr.mxu0 0.0
  %278 = vmatpush1.xpose.msra.mxu0 %v86
  %279 = vmatprep.subr.mxu0 0.0
  %280 = vmatpush1.xpose.msra.mxu0 %v87
  %281 = vmatprep.subr.mxu0 0.0
  %282 = vmatpush1.xpose.msra.mxu0 %v88
  %283 = vmatprep.subr.mxu0 0.0
  %284 = vmatpush1.xpose.msra.mxu0 %v89
  %285 = vmatprep.subr.mxu0 0.0
  %286 = vmatpush1.xpose.msra.mxu0 %v90
  %287 = vmatprep.subr.mxu0 0.0
  %288 = vmatpush1.xpose.msra.mxu0 %v91
  %289 = vmatprep.subr.mxu0 0.0
  %290 = vmatpush1.xpose.msra.mxu0 %v92
  %291 = vmatprep.subr.mxu0 0.0
  %292 = vmatpush1.xpose.msra.mxu0 %v93
  %293 = vmatprep.subr.mxu0 0.0
  %294 = vmatpush1.xpose.msra.mxu0 %v94
  %295 = vmatprep.subr.mxu0 0.0
  %296 = vmatpush1.xpose.msra.mxu0 %v95
  %297 = vmatprep.subr.mxu0 0.0
  %298 = vmatpush1.xpose.msra.mxu0 %v96
  %299 = vmatprep.subr.mxu0 0.0
  %300 = vmatpush1.xpose.msra.mxu0 %v97
  %301 = vmatprep.subr.mxu0 0.0
  %302 = vmatpush1.xpose.msra.mxu0 %v98
  %303 = vmatprep.subr.mxu0 0.0
  %304 = vmatpush1.xpose.msra.mxu0 %v99
  %305 = vmatprep.subr.mxu0 0.0
  %306 = vmatpush1.xpose.msra.mxu0 %v100
  %307 = vmatprep.subr.mxu0 0.0
  %308 = vmatpush1.xpose.msra.mxu0 %v101
  %309 = vmatprep.subr.mxu0 0.0
  %310 = vmatpush1.xpose.msra.mxu0 %v102
  %311 = vmatprep.subr.mxu0 0.0
  %312 = vmatpush1.xpose.msra.mxu0 %v103
  %313 = vmatprep.subr.mxu0 0.0
  %314 = vmatpush1.xpose.msra.mxu0 %v104
  %315 = vmatprep.subr.mxu0 0.0
  %316 = vmatpush1.xpose.msra.mxu0 %v105
  %317 = vmatprep.subr.mxu0 0.0
  %318 = vmatpush1.xpose.msra.mxu0 %v106
  %319 = vmatprep.subr.mxu0 0.0
  %320 = vmatpush1.xpose.msra.mxu0 %v107
  %321 = vmatprep.subr.mxu0 0.0
  %322 = vmatpush1.xpose.msra.mxu0 %v108
  %323 = vmatprep.subr.mxu0 0.0
  %324 = vmatpush1.xpose.msra.mxu0 %v109
  %325 = vmatprep.subr.mxu0 0.0
  %326 = vmatpush1.xpose.msra.mxu0 %v110
  %327 = vmatprep.mubr.f32.mxu0 0.0
  %328 = vmatmul.mubr.f32.gmra.mrb[0].mxu0 %v14
  %v329 = vpop.f32.mrb[0].mxu0
  %v330 = vadd.f32 %v119, %v329
  %v331 = vpop.f32.mrb[0].mxu0
  %v332 = vadd.f32 %v119, %v331
  %333 = vdwg.mxu0
  %334 = vmatprep.subr.mxu0 0.0
  %335 = vmatpush1.xpose.msra.mxu0 %v111
  %336 = vmatprep.subr.mxu0 0.0
  %337 = vmatpush1.xpose.msra.mxu0 %v112
  %338 = vmatprep.subr.mxu0 0.0
  %339 = vmatpush1.xpose.msra.mxu0 %v113
  %340 = vmatprep.subr.mxu0 0.0
  %341 = vmatpush1.xpose.msra.mxu0 %v114
  %342 = vmatprep.subr.mxu0 0.0
  %343 = vmatpush1.xpose.msra.mxu0 0.0
  %344 = vmatprep.subr.mxu0 0.0
  %345 = vmatpush1.xpose.msra.mxu0 0.0
  %346 = vmatprep.subr.mxu0 0.0
  %347 = vmatpush1.xpose.msra.mxu0 0.0
  %348 = vmatprep.subr.mxu0 0.0
  %349 = vmatpush1.xpose.msra.mxu0 0.0
  %350 = vmatprep.subr.mxu0 0.0
  %351 = vmatpush1.xpose.msra.mxu0 0.0
  %352 = vmatprep.subr.mxu0 0.0
  %353 = vmatpush1.xpose.msra.mxu0 0.0
  %354 = vmatprep.subr.mxu0 0.0
  %355 = vmatpush1.xpose.msra.mxu0 0.0
  %356 = vmatprep.subr.mxu0 0.0
  %357 = vmatpush1.xpose.msra.mxu0 0.0
  %358 = vmatprep.subr.mxu0 0.0
  %359 = vmatpush1.xpose.msra.mxu0 0.0
  %360 = vmatprep.subr.mxu0 0.0
  %361 = vmatpush1.xpose.msra.mxu0 0.0
  %362 = vmatprep.subr.mxu0 0.0
  %363 = vmatpush1.xpose.msra.mxu0 0.0
  %364 = vmatprep.subr.mxu0 0.0
  %365 = vmatpush1.xpose.msra.mxu0 0.0
  %366 = vmatprep.subr.mxu0 0.0
  %367 = vmatpush1.xpose.msra.mxu0 0.0
  %368 = vmatprep.subr.mxu0 0.0
  %369 = vmatpush1.xpose.msra.mxu0 0.0
  %370 = vmatprep.subr.mxu0 0.0
  %371 = vmatpush1.xpose.msra.mxu0 0.0
  %372 = vmatprep.subr.mxu0 0.0
  %373 = vmatpush1.xpose.msra.mxu0 0.0
  %374 = vmatprep.subr.mxu0 0.0
  %375 = vmatpush1.xpose.msra.mxu0 0.0
  %376 = vmatprep.subr.mxu0 0.0
  %377 = vmatpush1.xpose.msra.mxu0 0.0
  %378 = vmatprep.subr.mxu0 0.0
  %379 = vmatpush1.xpose.msra.mxu0 0.0
  %380 = vmatprep.subr.mxu0 0.0
  %381 = vmatpush1.xpose.msra.mxu0 0.0
  %382 = vmatprep.subr.mxu0 0.0
  %383 = vmatpush1.xpose.msra.mxu0 0.0
  %384 = vmatprep.subr.mxu0 0.0
  %385 = vmatpush1.xpose.msra.mxu0 0.0
  %386 = vmatprep.subr.mxu0 0.0
  %387 = vmatpush1.xpose.msra.mxu0 0.0
  %388 = vmatprep.subr.mxu0 0.0
  %389 = vmatpush1.xpose.msra.mxu0 0.0
  %390 = vmatprep.subr.mxu0 0.0
  %391 = vmatpush1.xpose.msra.mxu0 0.0
  %392 = vmatprep.subr.mxu0 0.0
  %393 = vmatpush1.xpose.msra.mxu0 0.0
  %394 = vmatprep.subr.mxu0 0.0
  %395 = vmatpush1.xpose.msra.mxu0 0.0
  %396 = vmatprep.subr.mxu0 0.0
  %397 = vmatpush1.xpose.msra.mxu0 0.0
  %398 = vmatprep.mubr.f32.mxu0 0.0
  %399 = vmatmul.mubr.f32.gmra.mrb[0].mxu0 %v14
  %v400 = vpop.f32.mrb[0].mxu0
  %v401 = vadd.f32 %v119, %v400
  %v402 = vpop.f32.mrb[0].mxu0
  %403 = vdwg.mxu0
  %v410 = vcombine.low %v188, %v190
  %v411 = vcombine.low %v259, %v261
  %v412 = vcombine.low %v330, %v332
  %416 = vst [vmem:[%s3] sm:$0xff] %v410
  %417 = vst [vmem:[%s3 + $0x8] sm:$0xff] %v411
  %418 = vst [vmem:[%s3 + $0x10] sm:$0xff] %v412
  %vm419 = vcmask 257024
  %420 = vst.msk [vmem:[%s3 + $0x18] sm:$0xf] %vm419, %v401
  // Predicated region
  $region14: #{autoencoder_6_forward.15} parent=0 // pred_check
    _
  $region15: #{autoencoder_6_forward.15} parent=0 // pred_check_branch
    %422 = sbr.rel (0) target = $region17
  $region16: #{autoencoder_6_forward.15} parent=0 // pred_region
    _
  $region17: #{autoencoder_6_forward.15} parent=0 // pred_fallthru
    _
  // Predicated region
  $region18: #{autoencoder_6_forward.15} parent=0 // pred_check
    _
  $region19: #{autoencoder_6_forward.15} parent=0 // pred_check_branch
    %424 = sbr.rel (0) target = $region21
  $region20: #{autoencoder_6_forward.15} parent=0 // pred_region
    _
  $region21: #{autoencoder_6_forward.15} parent=0 // pred_fallthru
    _

</llo_original>
